<compile_context>
chip_gen: v7x
topology: tpu7x:2x2x1
jax: 0.10.0
libtpu: 0.0.40
codegen_flags: <defaults>
</compile_context>

<pallas_src>
import functools

import jax
import jax.numpy as jnp
from jax import lax
from jax.experimental import pallas as pl
from jax.experimental.pallas import tpu as pltpu


# ----------------------------------------------------------------------------
# Hardware heuristics
# ----------------------------------------------------------------------------
def _tensorcores_per_chip():
    """Heuristic: v7x exposes 2 TensorCores per chip; v5e/v6e expose 1."""
    try:
        kind = jax.devices()[0].device_kind.lower()
    except Exception:
        return 1
    return 2 if ("v7" in kind or "7x" in kind) else 1


def _pick_batch_block(batch, n_tokens, num_tensorcores):
    """Choose how many batch elements to fold into one grid step.

    * 2-TC chips (v7x): keep >= num_tensorcores "parallel" grid steps, each
      with a folded multi-batch block (both cores busy, large matmul M-dim).
    * 1-TC chips (v5e/v6e): fold only until the projection M-dim reaches
      ~128 rows, so larger batches keep >= 2 grid steps and the x / out DMAs
      pipeline with compute.
    """
    if batch <= 1:
        return 1
    if num_tensorcores >= 2 and batch >= num_tensorcores:
        target = batch // num_tensorcores
    else:
        target = (128 + n_tokens - 1) // n_tokens   # rows needed for M >= 128
    target = max(1, min(target, batch))
    for d in range(target, 0, -1):                  # largest divisor of batch
        if batch % d == 0:
            return d
    return 1


# ----------------------------------------------------------------------------
# Similarity bias (one-time, plain JAX — pure index bookkeeping)
# ----------------------------------------------------------------------------
def build_similarity_bias(similarity_matrix, n_tokens, scaling_factor):
    """Dense (N, N) additive bias replicating the PyTorch double loop:
         if x_idx < N and y_idx < N:
             scores[:, :, i, x_idx] += sf ; scores[:, :, i, y_idx] += sf
    (contributions accumulate if indices repeat). Implemented as a scatter-add
    instead of an O(N*K*N) one-hot expansion."""
    sim = jnp.asarray(similarity_matrix, dtype=jnp.int32)          # (N, K, 2)
    n_rows, k_pairs, _ = sim.shape
    rows = jnp.broadcast_to(jnp.arange(n_rows, dtype=jnp.int32)[:, None],
                            (n_rows, k_pairs))
    x_idx, y_idx = sim[..., 0], sim[..., 1]
    valid = (x_idx < n_tokens) & (y_idx < n_tokens)                # both in range
    vals = jnp.where(valid, jnp.float32(scaling_factor), jnp.float32(0.0))
    safe_x = jnp.where(valid, x_idx, 0)
    safe_y = jnp.where(valid, y_idx, 0)
    bias = jnp.zeros((n_rows, n_tokens), jnp.float32)
    bias = bias.at[rows, safe_x].add(vals)
    bias = bias.at[rows, safe_y].add(vals)
    return bias                                                    # (N, N) f32


# ----------------------------------------------------------------------------
# One-time parameter preparation (call once, reuse across forward calls)
# ----------------------------------------------------------------------------
def prepare_attention_params(params, num_heads, mxu_dtype=jnp.bfloat16):
    """Returns (w_qkv, b_qkv, wo_t, bo) where
         w_qkv : (C, 3C)  [Wq^T * scale | Wk^T | Wv^T], cast to the MXU dtype
         b_qkv : (1, 3C)  [bq * scale   | bk   | bv  ], f32
         wo_t  : (C, C)   Wo^T, cast to the MXU dtype
         bo    : (1, C)   f32
    The 1/sqrt(head_dim) softmax scale is folded into the Q weights/bias here,
    so the kernel does no per-call scaling work."""
    wq, bq, wk, bk, wv, bv, wo, bo = params
    c_dim = wq.shape[0]
    assert c_dim % num_heads == 0
    scale = (c_dim // num_heads) ** (-0.5)
    wdt = jnp.float32 if mxu_dtype is None else mxu_dtype

    # nn.Linear weight is (out, in); we compute x @ W^T, so pre-transpose once.
    w_qkv = jnp.concatenate([wq.T * scale, wk.T, wv.T], axis=1).astype(wdt)   # (C, 3C)
    b_qkv = jnp.concatenate([bq * scale, bk, bv]).reshape(1, 3 * c_dim)
    b_qkv = b_qkv.astype(jnp.float32)
    wo_t = wo.T.astype(wdt)                                                    # (C, C)
    bo_2 = bo.reshape(1, c_dim).astype(jnp.float32)
    return w_qkv, b_qkv, wo_t, bo_2


# ----------------------------------------------------------------------------
# Kernel
# ----------------------------------------------------------------------------
def _attn_kernel(x_ref, wqkv_ref, bqkv_ref, wo_ref, bo_ref, bias_ref, o_ref,
                 qkv_sc, attn_sc, *, num_heads, head_dim, batch_block, mxu_dtype):
    Bblk = batch_block
    H = num_heads
    Dh = head_dim
    N = bias_ref.shape[0]
    C = x_ref.shape[-1]
    M = Bblk * N

    def mx(t):  # cast MXU operands only; accumulation / softmax stay f32
        return t if mxu_dtype is None else t.astype(mxu_dtype)

    # ---- Fused, lane-dense QKV projection on the folded (M, C) block --------
    # One deep (K = C), full-width (3C output lanes) MXU matmul instead of
    # 3*H shallow (M, C) @ (C, Dh) per-head matmuls.  The 1/sqrt(Dh) scale is
    # already folded into Wq / bq by prepare_attention_params.
    xw = mx(x_ref[...].reshape(M, C))
    qkv = jnp.dot(xw, wqkv_ref[...], preferred_element_type=jnp.float32)
    qkv = qkv + bqkv_ref[...]
    # Park in VMEM scratch: bounds vreg live ranges across the head loop.
    qkv_sc[...] = qkv

    bias = bias_ref[...]  # (N, N) f32 additive similarity bias, resident

    # ---- Per-head attention --------------------------------------------------
    # Static head/batch loops with static 64-lane slices of the scratch refs
    # (a dynamic fori head loop would need dynamic lane offsets).  All large
    # intermediates are scratch-resident, so per-iteration vreg pressure stays
    # flat.  head_out is stored at lane offset h*Dh so the output projection
    # below becomes a single full-depth matmul.
    for h in range(H):
        q0 = h * Dh
        k0 = C + h * Dh
        v0 = 2 * C + h * Dh
        for b in range(Bblk):
            r0 = b * N
            qb = mx(qkv_sc[r0:r0 + N, q0:q0 + Dh])
            kb = mx(qkv_sc[r0:r0 + N, k0:k0 + Dh])
            vb = mx(qkv_sc[r0:r0 + N, v0:v0 + Dh])

            # q @ k^T expressed as a dot_general contraction (no transpose).
            s = lax.dot_general(qb, kb, (((1,), (1,)), ((), ())),
                                preferred_element_type=jnp.float32)
            s = s + bias
            s = s - jnp.max(s, axis=-1, keepdims=True)
            p = jnp.exp(s)
            p = p * pl.reciprocal(jnp.sum(p, axis=-1, keepdims=True), approx=True)

            head_out = jnp.dot(mx(p), vb, preferred_element_type=jnp.float32)
            attn_sc[r0:r0 + N, q0:q0 + Dh] = head_out

    # ---- Single full-depth (M, C) @ (C, C) output projection -----------------
    out = jnp.dot(mx(attn_sc[...]), wo_ref[...], preferred_element_type=jnp.float32)
    out = out + bo_ref[...]
    o_ref[...] = out.reshape(Bblk, N, C).astype(o_ref.dtype)


# ----------------------------------------------------------------------------
# Wrapper
# ----------------------------------------------------------------------------
def custom_self_attention(x, prepared_params, bias, num_heads, *,
                          batch_block=None, num_tensorcores=None):
    B, N, C = x.shape
    H = num_heads
    Dh = C // H
    w_qkv, b_qkv, wo_t, bo_2 = prepared_params
    mxu_dtype = None if w_qkv.dtype == jnp.dtype(jnp.float32) else w_qkv.dtype
    bias = bias.astype(jnp.float32)

    if num_tensorcores is None:
        num_tensorcores = _tensorcores_per_chip()
    if batch_block is None:
        batch_block = _pick_batch_block(B, N, num_tensorcores)
    assert B % batch_block == 0, (B, batch_block)
    grid = (B // batch_block,)
    M = batch_block * N

    kernel = functools.partial(_attn_kernel, num_heads=H, head_dim=Dh,
                               batch_block=batch_block, mxu_dtype=mxu_dtype)

    def nbytes(a):
        return a.size * jnp.dtype(a.dtype).itemsize

    out_bytes = B * N * C * jnp.dtype(x.dtype).itemsize
    weight_bytes = nbytes(w_qkv) + nbytes(b_qkv) + nbytes(wo_t) + nbytes(bo_2) + nbytes(bias)

    # Advisory cost estimate so XLA schedules surrounding ops correctly.
    cost = pl.CostEstimate(
        flops=(2 * B * N * C * 3 * C        # fused QKV projection
               + 2 * B * N * C * C          # output projection
               + 4 * B * H * N * N * Dh),   # q@k^T and p@v
        transcendentals=B * H * N * N,      # softmax exp
        bytes_accessed=nbytes(x) + weight_bytes + out_bytes)

    # VMEM budget (x/out blocks double-buffered, weights, scratch) + headroom.
    blk_io = 2 * 2 * batch_block * N * C * jnp.dtype(x.dtype).itemsize
    scratch_bytes = M * 4 * C * 4           # (M, 3C) + (M, C) f32 scratch
    vmem_est = blk_io + 2 * weight_bytes + scratch_bytes + (8 << 20)
    vmem_limit = int(min(max(vmem_est, 32 << 20), 56 << 20))

    scratch_shapes = [pltpu.VMEM((M, 3 * C), jnp.float32),   # fused q|k|v
                      pltpu.VMEM((M, C), jnp.float32)]       # per-head attn out

    def run(single_buffer_weights):
        def wspec(shape):
            idx = lambda g: (0,) * len(shape)
            if single_buffer_weights:
                # Grid-invariant weights: no double buffering -> half the VMEM.
                return pl.BlockSpec(shape, idx, pipeline_mode=pl.Buffered(1))
            return pl.BlockSpec(shape, idx)

        grid_spec = pltpu.PrefetchScalarGridSpec(
            num_scalar_prefetch=0,
            grid=grid,
            in_specs=[
                pl.BlockSpec((batch_block, N, C), lambda g: (g, 0, 0)),  # x
                wspec((C, 3 * C)),                                        # W_qkv
                wspec((1, 3 * C)),                                        # b_qkv
                wspec((C, C)),                                            # Wo^T
                wspec((1, C)),                                            # bo
                wspec((N, N)),                                            # bias
            ],
            out_specs=pl.BlockSpec((batch_block, N, C), lambda g: (g, 0, 0)),
            scratch_shapes=scratch_shapes)

        return pl.pallas_call(
            kernel,
            out_shape=jax.ShapeDtypeStruct((B, N, C), x.dtype),
            grid_spec=grid_spec,
            compiler_params=pltpu.CompilerParams(
                dimension_semantics=("parallel",),
                vmem_limit_bytes=vmem_limit),
            cost_estimate=cost,
        )(x, w_qkv, b_qkv, wo_t, bo_2, bias)

    try:
        return run(True)
    except Exception:
        # Older JAX without BlockSpec.pipeline_mode / pl.Buffered (or a backend
        # rejecting single-buffered operands): fall back to default buffering.
        return run(False)


# ----------------------------------------------------------------------------
# Pure-JAX reference (matches the PyTorch forward)
# ----------------------------------------------------------------------------
def reference_self_attention(x, params, bias, num_heads):
    B, N, C = x.shape
    Dh = C // num_heads
    wq, bq, wk, bk, wv, bv, wo, bo = params

    def lin(a, w, b):
        return a @ w.T + b

    Q = lin(x, wq, bq).reshape(B, N, num_heads, Dh).transpose(0, 2, 1, 3)
    K = lin(x, wk, bk).reshape(B, N, num_heads, Dh).transpose(0, 2, 1, 3)
    V = lin(x, wv, bv).reshape(B, N, num_heads, Dh).transpose(0, 2, 1, 3)
    scores = jnp.einsum("bhnd,bhmd->bhnm", Q, K) * (Dh ** -0.5)
    scores = scores + bias[None, None]
    w = jax.nn.softmax(scores, axis=-1)
    out = jnp.einsum("bhnm,bhmd->bhnd", w, V)
    out = out.transpose(0, 2, 1, 3).reshape(B, N, C)
    return lin(out, wo, bo)


if __name__ == "__main__":
    # Small shapes consistent with the module: B=2 sequences of N=64 patches,
    # embed_dim=128 (lane-dense, like the module's 768), num_heads=2 (Dh=64).
    # similarity_matrix mirrors torch.randint(0, 8, (64, 5, 2)).
    B, N, C = 2, 64, 128
    num_heads = 2
    scaling_factor = 1.0

    key = jax.random.PRNGKey(0)
    kx, ksim, *kw = jax.random.split(key, 11)

    x = jax.random.uniform(kx, (B, N, C), dtype=jnp.float32)
    similarity_matrix = jax.random.randint(ksim, (N, 5, 2), 0, 8, dtype=jnp.int32)

    def init_linear(kweight, kbias, fan_in, fan_out):
        bound = 1.0 / (fan_in ** 0.5)
        w = jax.random.uniform(kweight, (fan_out, fan_in), minval=-bound, maxval=bound)
        b = jax.random.uniform(kbias, (fan_out,), minval=-bound, maxval=bound)
        return w.astype(jnp.float32), b.astype(jnp.float32)

    wq, bq = init_linear(kw[0], kw[1], C, C)
    wk, bk = init_linear(kw[2], kw[3], C, C)
    wv, bv = init_linear(kw[4], kw[5], C, C)
    wo, bo = init_linear(kw[6], kw[7], C, C)
    params = (wq, bq, wk, bk, wv, bv, wo, bo)

    # One-time prep: dense similarity bias + fused / scaled / cast weights.
    bias = build_similarity_bias(similarity_matrix, N, scaling_factor)
    prep_bf16 = prepare_attention_params(params, num_heads)                  # default: bf16 MXU
    prep_f32 = prepare_attention_params(params, num_heads, mxu_dtype=None)   # f32 MXU check

    ref = reference_self_attention(x, params, bias, num_heads)

    # Default path: bf16 MXU operands, f32 accumulate/softmax, auto batch fold.
    out_bf16 = jax.block_until_ready(
        custom_self_attention(x, prep_bf16, bias, num_heads))
    assert out_bf16.shape == (B, N, C), out_bf16.shape
    assert jnp.allclose(out_bf16, ref, atol=5e-2, rtol=5e-2), \
        float(jnp.max(jnp.abs(out_bf16 - ref)))

    # Per-batch grid (v7x-style sharding across the 2 TensorCores).
    out_grid = jax.block_until_ready(
        custom_self_attention(x, prep_bf16, bias, num_heads, batch_block=1))
    assert jnp.allclose(out_grid, ref, atol=5e-2, rtol=5e-2), \
        float(jnp.max(jnp.abs(out_grid - ref)))

    # f32 MXU operands for a tighter numerical check (folded batch).
    out_f32 = jax.block_until_ready(
        custom_self_attention(x, prep_f32, bias, num_heads, batch_block=B))
    assert jnp.allclose(out_f32, ref, atol=2e-3, rtol=2e-3), \
        float(jnp.max(jnp.abs(out_f32 - ref)))

    print("KERNEL_OK")
</pallas_src>

<mosaic_0001>
module attributes {stable_mosaic.version = 11 : i64} {
  func.func @_attn_kernel(%arg0: i32, %arg1: memref<2x64x128xf32, #tpu.memory_space<vmem>>, %arg2: memref<128x384xbf16, #tpu.memory_space<vmem>>, %arg3: memref<1x384xf32, #tpu.memory_space<vmem>>, %arg4: memref<128x128xbf16, #tpu.memory_space<vmem>>, %arg5: memref<1x128xf32, #tpu.memory_space<vmem>>, %arg6: memref<64x64xf32, #tpu.memory_space<vmem>>, %arg7: memref<2x64x128xf32, #tpu.memory_space<vmem>>, %arg8: memref<128x384xf32, #tpu.memory_space<vmem>>, %arg9: memref<128x128xf32, #tpu.memory_space<vmem>>) attributes {dimension_semantics = [#tpu.dimension_semantics<parallel>], iteration_bounds = array<i64: 1>, scalar_prefetch = 0 : i64, scratch_operands = 2 : i64, tpu.core_type = #tpu.core_type<tc>, window_params = [{transform_indices = @transform_0, window_bounds = array<i64: 2, 64, 128>}, {pipeline_mode = #tpu.pipeline_mode<synchronous>, transform_indices = @transform_1, window_bounds = array<i64: 128, 384>}, {pipeline_mode = #tpu.pipeline_mode<synchronous>, transform_indices = @transform_2, window_bounds = array<i64: 1, 384>}, {pipeline_mode = #tpu.pipeline_mode<synchronous>, transform_indices = @transform_3, window_bounds = array<i64: 128, 128>}, {pipeline_mode = #tpu.pipeline_mode<synchronous>, transform_indices = @transform_4, window_bounds = array<i64: 1, 128>}, {pipeline_mode = #tpu.pipeline_mode<synchronous>, transform_indices = @transform_5, window_bounds = array<i64: 64, 64>}, {transform_indices = @transform_6, window_bounds = array<i64: 2, 64, 128>}]} {
    %c0 = arith.constant 0 : index
    %c0_0 = arith.constant 0 : index
    %c0_1 = arith.constant 0 : index
    %0 = vector.load %arg1[%c0, %c0_0, %c0_1] : memref<2x64x128xf32, #tpu.memory_space<vmem>>, vector<2x64x128xf32>
    %1 = vector.shape_cast %0 : vector<2x64x128xf32> to vector<128x128xf32>
    %2 = arith.truncf %1 : vector<128x128xf32> to vector<128x128xbf16>
    %c0_2 = arith.constant 0 : index
    %c0_3 = arith.constant 0 : index
    %3 = vector.load %arg2[%c0_2, %c0_3] : memref<128x384xbf16, #tpu.memory_space<vmem>>, vector<128x384xbf16>
    %cst = arith.constant dense<0.000000e+00> : vector<128x384xf32>
    %4 = tpu.matmul %2, %3, %cst {dimension_numbers = #tpu.dot_dimension_numbers<[1], [0], [0], [1], [0, 0, 1, 1], [], []>} : vector<128x128xbf16>, vector<128x384xbf16>, vector<128x384xf32> -> vector<128x384xf32>
    %c0_4 = arith.constant 0 : index
    %c0_5 = arith.constant 0 : index
    %5 = vector.load %arg3[%c0_4, %c0_5] : memref<1x384xf32, #tpu.memory_space<vmem>>, vector<1x384xf32>
    %6 = vector.broadcast %5 : vector<1x384xf32> to vector<128x384xf32>
    %7 = arith.addf %4, %6 : vector<128x384xf32>
    %c0_6 = arith.constant 0 : index
    %c0_7 = arith.constant 0 : index
    %8 = vector.load %arg8[%c0_6, %c0_7] : memref<128x384xf32, #tpu.memory_space<vmem>>, vector<128x384xf32>
    tpu.vector_store %arg8[%c0_6, %c0_7], %7 {strides = array<i32>} : memref<128x384xf32, #tpu.memory_space<vmem>>, vector<128x384xf32>,
    %c0_8 = arith.constant 0 : index
    %c0_9 = arith.constant 0 : index
    %9 = vector.load %arg6[%c0_8, %c0_9] : memref<64x64xf32, #tpu.memory_space<vmem>>, vector<64x64xf32>
    %c0_10 = arith.constant 0 : index
    %c0_11 = arith.constant 0 : index
    %10 = vector.load %arg8[%c0_10, %c0_11] : memref<128x384xf32, #tpu.memory_space<vmem>>, vector<64x64xf32>
    %11 = arith.truncf %10 : vector<64x64xf32> to vector<64x64xbf16>
    %c0_12 = arith.constant 0 : index
    %c128 = arith.constant 128 : index
    %12 = vector.load %arg8[%c0_12, %c128] : memref<128x384xf32, #tpu.memory_space<vmem>>, vector<64x64xf32>
    %13 = arith.truncf %12 : vector<64x64xf32> to vector<64x64xbf16>
    %c0_13 = arith.constant 0 : index
    %c256 = arith.constant 256 : index
    %14 = vector.load %arg8[%c0_13, %c256] : memref<128x384xf32, #tpu.memory_space<vmem>>, vector<64x64xf32>
    %15 = arith.truncf %14 : vector<64x64xf32> to vector<64x64xbf16>
    %cst_14 = arith.constant dense<0.000000e+00> : vector<64x64xf32>
    %16 = tpu.matmul %11, %13, %cst_14 {dimension_numbers = #tpu.dot_dimension_numbers<[1], [1], [0], [0], [0, 0, 1, 0], [], []>} : vector<64x64xbf16>, vector<64x64xbf16>, vector<64x64xf32> -> vector<64x64xf32>
    %17 = arith.addf %16, %9 : vector<64x64xf32>
    %cst_15 = arith.constant dense<0xFF800000> : vector<64xf32>
    %18 = vector.multi_reduction <maximumf>, %17, %cst_15 [1] : vector<64x64xf32> to vector<64xf32>
    %19 = vector.shape_cast %18 : vector<64xf32> to vector<64x1xf32>
    %20 = vector.broadcast %19 : vector<64x1xf32> to vector<64x64xf32>
    %21 = arith.subf %17, %20 : vector<64x64xf32>
    %22 = math.exp %21 : vector<64x64xf32>
    %cst_16 = arith.constant dense<0.000000e+00> : vector<64xf32>
    %23 = vector.multi_reduction <add>, %22, %cst_16 [1] : vector<64x64xf32> to vector<64xf32>
    %24 = vector.shape_cast %23 : vector<64xf32> to vector<64x1xf32>
    %25 = tpu.reciprocal %24 {approx = true} : vector<64x1xf32> -> vector<64x1xf32>
    %26 = vector.broadcast %25 : vector<64x1xf32> to vector<64x64xf32>
    %27 = arith.mulf %22, %26 : vector<64x64xf32>
    %28 = arith.truncf %27 : vector<64x64xf32> to vector<64x64xbf16>
    %cst_17 = arith.constant dense<0.000000e+00> : vector<64x64xf32>
    %29 = tpu.matmul %28, %15, %cst_17 {dimension_numbers = #tpu.dot_dimension_numbers<[1], [0], [0], [1], [0, 0, 1, 1], [], []>} : vector<64x64xbf16>, vector<64x64xbf16>, vector<64x64xf32> -> vector<64x64xf32>
    %c0_18 = arith.constant 0 : index
    %c0_19 = arith.constant 0 : index
    %30 = vector.load %arg9[%c0_18, %c0_19] : memref<128x128xf32, #tpu.memory_space<vmem>>, vector<64x64xf32>
    tpu.vector_store %arg9[%c0_18, %c0_19], %29 {strides = array<i32>} : memref<128x128xf32, #tpu.memory_space<vmem>>, vector<64x64xf32>,
    %c64 = arith.constant 64 : index
    %c0_20 = arith.constant 0 : index
    %31 = vector.load %arg8[%c64, %c0_20] : memref<128x384xf32, #tpu.memory_space<vmem>>, vector<64x64xf32>
    %32 = arith.truncf %31 : vector<64x64xf32> to vector<64x64xbf16>
    %c64_21 = arith.constant 64 : index
    %c128_22 = arith.constant 128 : index
    %33 = vector.load %arg8[%c64_21, %c128_22] : memref<128x384xf32, #tpu.memory_space<vmem>>, vector<64x64xf32>
    %34 = arith.truncf %33 : vector<64x64xf32> to vector<64x64xbf16>
    %c64_23 = arith.constant 64 : index
    %c256_24 = arith.constant 256 : index
    %35 = vector.load %arg8[%c64_23, %c256_24] : memref<128x384xf32, #tpu.memory_space<vmem>>, vector<64x64xf32>
    %36 = arith.truncf %35 : vector<64x64xf32> to vector<64x64xbf16>
    %cst_25 = arith.constant dense<0.000000e+00> : vector<64x64xf32>
    %37 = tpu.matmul %32, %34, %cst_25 {dimension_numbers = #tpu.dot_dimension_numbers<[1], [1], [0], [0], [0, 0, 1, 0], [], []>} : vector<64x64xbf16>, vector<64x64xbf16>, vector<64x64xf32> -> vector<64x64xf32>
    %38 = arith.addf %37, %9 : vector<64x64xf32>
    %cst_26 = arith.constant dense<0xFF800000> : vector<64xf32>
    %39 = vector.multi_reduction <maximumf>, %38, %cst_26 [1] : vector<64x64xf32> to vector<64xf32>
    %40 = vector.shape_cast %39 : vector<64xf32> to vector<64x1xf32>
    %41 = vector.broadcast %40 : vector<64x1xf32> to vector<64x64xf32>
    %42 = arith.subf %38, %41 : vector<64x64xf32>
    %43 = math.exp %42 : vector<64x64xf32>
    %cst_27 = arith.constant dense<0.000000e+00> : vector<64xf32>
    %44 = vector.multi_reduction <add>, %43, %cst_27 [1] : vector<64x64xf32> to vector<64xf32>
    %45 = vector.shape_cast %44 : vector<64xf32> to vector<64x1xf32>
    %46 = tpu.reciprocal %45 {approx = true} : vector<64x1xf32> -> vector<64x1xf32>
    %47 = vector.broadcast %46 : vector<64x1xf32> to vector<64x64xf32>
    %48 = arith.mulf %43, %47 : vector<64x64xf32>
    %49 = arith.truncf %48 : vector<64x64xf32> to vector<64x64xbf16>
    %cst_28 = arith.constant dense<0.000000e+00> : vector<64x64xf32>
    %50 = tpu.matmul %49, %36, %cst_28 {dimension_numbers = #tpu.dot_dimension_numbers<[1], [0], [0], [1], [0, 0, 1, 1], [], []>} : vector<64x64xbf16>, vector<64x64xbf16>, vector<64x64xf32> -> vector<64x64xf32>
    %c64_29 = arith.constant 64 : index
    %c0_30 = arith.constant 0 : index
    %51 = vector.load %arg9[%c64_29, %c0_30] : memref<128x128xf32, #tpu.memory_space<vmem>>, vector<64x64xf32>
    tpu.vector_store %arg9[%c64_29, %c0_30], %50 {strides = array<i32>} : memref<128x128xf32, #tpu.memory_space<vmem>>, vector<64x64xf32>,
    %c0_31 = arith.constant 0 : index
    %c64_32 = arith.constant 64 : index
    %52 = vector.load %arg8[%c0_31, %c64_32] : memref<128x384xf32, #tpu.memory_space<vmem>>, vector<64x64xf32>
    %53 = arith.truncf %52 : vector<64x64xf32> to vector<64x64xbf16>
    %c0_33 = arith.constant 0 : index
    %c192 = arith.constant 192 : index
    %54 = vector.load %arg8[%c0_33, %c192] : memref<128x384xf32, #tpu.memory_space<vmem>>, vector<64x64xf32>
    %55 = arith.truncf %54 : vector<64x64xf32> to vector<64x64xbf16>
    %c0_34 = arith.constant 0 : index
    %c320 = arith.constant 320 : index
    %56 = vector.load %arg8[%c0_34, %c320] : memref<128x384xf32, #tpu.memory_space<vmem>>, vector<64x64xf32>
    %57 = arith.truncf %56 : vector<64x64xf32> to vector<64x64xbf16>
    %cst_35 = arith.constant dense<0.000000e+00> : vector<64x64xf32>
    %58 = tpu.matmul %53, %55, %cst_35 {dimension_numbers = #tpu.dot_dimension_numbers<[1], [1], [0], [0], [0, 0, 1, 0], [], []>} : vector<64x64xbf16>, vector<64x64xbf16>, vector<64x64xf32> -> vector<64x64xf32>
    %59 = arith.addf %58, %9 : vector<64x64xf32>
    %cst_36 = arith.constant dense<0xFF800000> : vector<64xf32>
    %60 = vector.multi_reduction <maximumf>, %59, %cst_36 [1] : vector<64x64xf32> to vector<64xf32>
    %61 = vector.shape_cast %60 : vector<64xf32> to vector<64x1xf32>
    %62 = vector.broadcast %61 : vector<64x1xf32> to vector<64x64xf32>
    %63 = arith.subf %59, %62 : vector<64x64xf32>
    %64 = math.exp %63 : vector<64x64xf32>
    %cst_37 = arith.constant dense<0.000000e+00> : vector<64xf32>
    %65 = vector.multi_reduction <add>, %64, %cst_37 [1] : vector<64x64xf32> to vector<64xf32>
    %66 = vector.shape_cast %65 : vector<64xf32> to vector<64x1xf32>
    %67 = tpu.reciprocal %66 {approx = true} : vector<64x1xf32> -> vector<64x1xf32>
    %68 = vector.broadcast %67 : vector<64x1xf32> to vector<64x64xf32>
    %69 = arith.mulf %64, %68 : vector<64x64xf32>
    %70 = arith.truncf %69 : vector<64x64xf32> to vector<64x64xbf16>
    %cst_38 = arith.constant dense<0.000000e+00> : vector<64x64xf32>
    %71 = tpu.matmul %70, %57, %cst_38 {dimension_numbers = #tpu.dot_dimension_numbers<[1], [0], [0], [1], [0, 0, 1, 1], [], []>} : vector<64x64xbf16>, vector<64x64xbf16>, vector<64x64xf32> -> vector<64x64xf32>
    %c0_39 = arith.constant 0 : index
    %c64_40 = arith.constant 64 : index
    %72 = vector.load %arg9[%c0_39, %c64_40] : memref<128x128xf32, #tpu.memory_space<vmem>>, vector<64x64xf32>
    tpu.vector_store %arg9[%c0_39, %c64_40], %71 {strides = array<i32>} : memref<128x128xf32, #tpu.memory_space<vmem>>, vector<64x64xf32>,
    %c64_41 = arith.constant 64 : index
    %c64_42 = arith.constant 64 : index
    %73 = vector.load %arg8[%c64_41, %c64_42] : memref<128x384xf32, #tpu.memory_space<vmem>>, vector<64x64xf32>
    %74 = arith.truncf %73 : vector<64x64xf32> to vector<64x64xbf16>
    %c64_43 = arith.constant 64 : index
    %c192_44 = arith.constant 192 : index
    %75 = vector.load %arg8[%c64_43, %c192_44] : memref<128x384xf32, #tpu.memory_space<vmem>>, vector<64x64xf32>
    %76 = arith.truncf %75 : vector<64x64xf32> to vector<64x64xbf16>
    %c64_45 = arith.constant 64 : index
    %c320_46 = arith.constant 320 : index
    %77 = vector.load %arg8[%c64_45, %c320_46] : memref<128x384xf32, #tpu.memory_space<vmem>>, vector<64x64xf32>
    %78 = arith.truncf %77 : vector<64x64xf32> to vector<64x64xbf16>
    %cst_47 = arith.constant dense<0.000000e+00> : vector<64x64xf32>
    %79 = tpu.matmul %74, %76, %cst_47 {dimension_numbers = #tpu.dot_dimension_numbers<[1], [1], [0], [0], [0, 0, 1, 0], [], []>} : vector<64x64xbf16>, vector<64x64xbf16>, vector<64x64xf32> -> vector<64x64xf32>
    %80 = arith.addf %79, %9 : vector<64x64xf32>
    %cst_48 = arith.constant dense<0xFF800000> : vector<64xf32>
    %81 = vector.multi_reduction <maximumf>, %80, %cst_48 [1] : vector<64x64xf32> to vector<64xf32>
    %82 = vector.shape_cast %81 : vector<64xf32> to vector<64x1xf32>
    %83 = vector.broadcast %82 : vector<64x1xf32> to vector<64x64xf32>
    %84 = arith.subf %80, %83 : vector<64x64xf32>
    %85 = math.exp %84 : vector<64x64xf32>
    %cst_49 = arith.constant dense<0.000000e+00> : vector<64xf32>
    %86 = vector.multi_reduction <add>, %85, %cst_49 [1] : vector<64x64xf32> to vector<64xf32>
    %87 = vector.shape_cast %86 : vector<64xf32> to vector<64x1xf32>
    %88 = tpu.reciprocal %87 {approx = true} : vector<64x1xf32> -> vector<64x1xf32>
    %89 = vector.broadcast %88 : vector<64x1xf32> to vector<64x64xf32>
    %90 = arith.mulf %85, %89 : vector<64x64xf32>
    %91 = arith.truncf %90 : vector<64x64xf32> to vector<64x64xbf16>
    %cst_50 = arith.constant dense<0.000000e+00> : vector<64x64xf32>
    %92 = tpu.matmul %91, %78, %cst_50 {dimension_numbers = #tpu.dot_dimension_numbers<[1], [0], [0], [1], [0, 0, 1, 1], [], []>} : vector<64x64xbf16>, vector<64x64xbf16>, vector<64x64xf32> -> vector<64x64xf32>
    %c64_51 = arith.constant 64 : index
    %c64_52 = arith.constant 64 : index
    %93 = vector.load %arg9[%c64_51, %c64_52] : memref<128x128xf32, #tpu.memory_space<vmem>>, vector<64x64xf32>
    tpu.vector_store %arg9[%c64_51, %c64_52], %92 {strides = array<i32>} : memref<128x128xf32, #tpu.memory_space<vmem>>, vector<64x64xf32>,
    %c0_53 = arith.constant 0 : index
    %c0_54 = arith.constant 0 : index
    %94 = vector.load %arg9[%c0_53, %c0_54] : memref<128x128xf32, #tpu.memory_space<vmem>>, vector<128x128xf32>
    %95 = arith.truncf %94 : vector<128x128xf32> to vector<128x128xbf16>
    %c0_55 = arith.constant 0 : index
    %c0_56 = arith.constant 0 : index
    %96 = vector.load %arg4[%c0_55, %c0_56] : memref<128x128xbf16, #tpu.memory_space<vmem>>, vector<128x128xbf16>
    %cst_57 = arith.constant dense<0.000000e+00> : vector<128x128xf32>
    %97 = tpu.matmul %95, %96, %cst_57 {dimension_numbers = #tpu.dot_dimension_numbers<[1], [0], [0], [1], [0, 0, 1, 1], [], []>} : vector<128x128xbf16>, vector<128x128xbf16>, vector<128x128xf32> -> vector<128x128xf32>
    %c0_58 = arith.constant 0 : index
    %c0_59 = arith.constant 0 : index
    %98 = vector.load %arg5[%c0_58, %c0_59] : memref<1x128xf32, #tpu.memory_space<vmem>>, vector<1x128xf32>
    %99 = vector.broadcast %98 : vector<1x128xf32> to vector<128x128xf32>
    %100 = arith.addf %97, %99 : vector<128x128xf32>
    %101 = vector.shape_cast %100 : vector<128x128xf32> to vector<2x64x128xf32>
    %c0_60 = arith.constant 0 : index
    %c0_61 = arith.constant 0 : index
    %c0_62 = arith.constant 0 : index
    %102 = vector.load %arg7[%c0_60, %c0_61, %c0_62] : memref<2x64x128xf32, #tpu.memory_space<vmem>>, vector<2x64x128xf32>
    tpu.vector_store %arg7[%c0_60, %c0_61, %c0_62], %101 {strides = array<i32>} : memref<2x64x128xf32, #tpu.memory_space<vmem>>, vector<2x64x128xf32>,
    return
  }
  func.func @transform_0(%arg0: i32) -> (i32, i32, i32) {
    %c0_i32 = arith.constant 0 : i32
    %c0_i32_0 = arith.constant 0 : i32
    %c0_i32_1 = arith.constant 0 : i32
    return %arg0, %c0_i32, %c0_i32_0 : i32, i32, i32
  }
  func.func @transform_1(%arg0: i32) -> (i32, i32) {
    %c0_i32 = arith.constant 0 : i32
    %c0_i32_0 = arith.constant 0 : i32
    %c0_i32_1 = arith.constant 0 : i32
    return %c0_i32, %c0_i32_0 : i32, i32
  }
  func.func @transform_2(%arg0: i32) -> (i32, i32) {
    %c0_i32 = arith.constant 0 : i32
    %c0_i32_0 = arith.constant 0 : i32
    %c0_i32_1 = arith.constant 0 : i32
    return %c0_i32, %c0_i32_0 : i32, i32
  }
  func.func @transform_3(%arg0: i32) -> (i32, i32) {
    %c0_i32 = arith.constant 0 : i32
    %c0_i32_0 = arith.constant 0 : i32
    %c0_i32_1 = arith.constant 0 : i32
    return %c0_i32, %c0_i32_0 : i32, i32
  }
  func.func @transform_4(%arg0: i32) -> (i32, i32) {
    %c0_i32 = arith.constant 0 : i32
    %c0_i32_0 = arith.constant 0 : i32
    %c0_i32_1 = arith.constant 0 : i32
    return %c0_i32, %c0_i32_0 : i32, i32
  }
  func.func @transform_5(%arg0: i32) -> (i32, i32) {
    %c0_i32 = arith.constant 0 : i32
    %c0_i32_0 = arith.constant 0 : i32
    %c0_i32_1 = arith.constant 0 : i32
    return %c0_i32, %c0_i32_0 : i32, i32
  }
  func.func @transform_6(%arg0: i32) -> (i32, i32, i32) {
    %c0_i32 = arith.constant 0 : i32
    %c0_i32_0 = arith.constant 0 : i32
    %c0_i32_1 = arith.constant 0 : i32
    return %arg0, %c0_i32, %c0_i32_0 : i32, i32, i32
  }
}

module attributes {stable_mosaic.version = 11 : i64} {
  func.func @_attn_kernel(%arg0: i32, %arg1: memref<2x64x128xf32, #tpu.memory_space<vmem>>, %arg2: memref<128x384xbf16, #tpu.memory_space<vmem>>, %arg3: memref<1x384xf32, #tpu.memory_space<vmem>>, %arg4: memref<128x128xbf16, #tpu.memory_space<vmem>>, %arg5: memref<1x128xf32, #tpu.memory_space<vmem>>, %arg6: memref<64x64xf32, #tpu.memory_space<vmem>>, %arg7: memref<2x64x128xf32, #tpu.memory_space<vmem>>, %arg8: memref<128x384xf32, #tpu.memory_space<vmem>>, %arg9: memref<128x128xf32, #tpu.memory_space<vmem>>) attributes {dimension_semantics = [#tpu.dimension_semantics<parallel>], iteration_bounds = array<i64: 1>, scalar_prefetch = 0 : i64, scratch_operands = 2 : i64, tpu.core_type = #tpu.core_type<tc>, window_params = [{transform_indices = @transform_0, window_bounds = array<i64: 2, 64, 128>}, {pipeline_mode = #tpu.pipeline_mode<synchronous>, transform_indices = @transform_1, window_bounds = array<i64: 128, 384>}, {pipeline_mode = #tpu.pipeline_mode<synchronous>, transform_indices = @transform_2, window_bounds = array<i64: 1, 384>}, {pipeline_mode = #tpu.pipeline_mode<synchronous>, transform_indices = @transform_3, window_bounds = array<i64: 128, 128>}, {pipeline_mode = #tpu.pipeline_mode<synchronous>, transform_indices = @transform_4, window_bounds = array<i64: 1, 128>}, {pipeline_mode = #tpu.pipeline_mode<synchronous>, transform_indices = @transform_5, window_bounds = array<i64: 64, 64>}, {transform_indices = @transform_6, window_bounds = array<i64: 2, 64, 128>}]} {
    %c0 = arith.constant 0 : index
    %c0_0 = arith.constant 0 : index
    %c0_1 = arith.constant 0 : index
    %0 = vector.load %arg1[%c0, %c0_0, %c0_1] : memref<2x64x128xf32, #tpu.memory_space<vmem>>, vector<2x64x128xf32>
    %1 = vector.shape_cast %0 : vector<2x64x128xf32> to vector<128x128xf32>
    %2 = arith.truncf %1 : vector<128x128xf32> to vector<128x128xbf16>
    %c0_2 = arith.constant 0 : index
    %c0_3 = arith.constant 0 : index
    %3 = vector.load %arg2[%c0_2, %c0_3] : memref<128x384xbf16, #tpu.memory_space<vmem>>, vector<128x384xbf16>
    %cst = arith.constant dense<0.000000e+00> : vector<128x384xf32>
    %4 = tpu.matmul %2, %3, %cst {dimension_numbers = #tpu.dot_dimension_numbers<[1], [0], [0], [1], [0, 0, 1, 1], [], []>} : vector<128x128xbf16>, vector<128x384xbf16>, vector<128x384xf32> -> vector<128x384xf32>
    %c0_4 = arith.constant 0 : index
    %c0_5 = arith.constant 0 : index
    %5 = vector.load %arg3[%c0_4, %c0_5] : memref<1x384xf32, #tpu.memory_space<vmem>>, vector<1x384xf32>
    %6 = vector.broadcast %5 : vector<1x384xf32> to vector<128x384xf32>
    %7 = arith.addf %4, %6 : vector<128x384xf32>
    %c0_6 = arith.constant 0 : index
    %c0_7 = arith.constant 0 : index
    %8 = vector.load %arg8[%c0_6, %c0_7] : memref<128x384xf32, #tpu.memory_space<vmem>>, vector<128x384xf32>
    tpu.vector_store %arg8[%c0_6, %c0_7], %7 {strides = array<i32>} : memref<128x384xf32, #tpu.memory_space<vmem>>, vector<128x384xf32>,
    %c0_8 = arith.constant 0 : index
    %c0_9 = arith.constant 0 : index
    %9 = vector.load %arg6[%c0_8, %c0_9] : memref<64x64xf32, #tpu.memory_space<vmem>>, vector<64x64xf32>
    %c0_10 = arith.constant 0 : index
    %c0_11 = arith.constant 0 : index
    %10 = vector.load %arg8[%c0_10, %c0_11] : memref<128x384xf32, #tpu.memory_space<vmem>>, vector<64x64xf32>
    %11 = arith.truncf %10 : vector<64x64xf32> to vector<64x64xbf16>
    %c0_12 = arith.constant 0 : index
    %c128 = arith.constant 128 : index
    %12 = vector.load %arg8[%c0_12, %c128] : memref<128x384xf32, #tpu.memory_space<vmem>>, vector<64x64xf32>
    %13 = arith.truncf %12 : vector<64x64xf32> to vector<64x64xbf16>
    %c0_13 = arith.constant 0 : index
    %c256 = arith.constant 256 : index
    %14 = vector.load %arg8[%c0_13, %c256] : memref<128x384xf32, #tpu.memory_space<vmem>>, vector<64x64xf32>
    %15 = arith.truncf %14 : vector<64x64xf32> to vector<64x64xbf16>
    %cst_14 = arith.constant dense<0.000000e+00> : vector<64x64xf32>
    %16 = tpu.matmul %11, %13, %cst_14 {dimension_numbers = #tpu.dot_dimension_numbers<[1], [1], [0], [0], [0, 0, 1, 0], [], []>} : vector<64x64xbf16>, vector<64x64xbf16>, vector<64x64xf32> -> vector<64x64xf32>
    %17 = arith.addf %16, %9 : vector<64x64xf32>
    %cst_15 = arith.constant dense<0xFF800000> : vector<64xf32>
    %18 = vector.multi_reduction <maximumf>, %17, %cst_15 [1] : vector<64x64xf32> to vector<64xf32>
    %19 = vector.shape_cast %18 : vector<64xf32> to vector<64x1xf32>
    %20 = vector.broadcast %19 : vector<64x1xf32> to vector<64x64xf32>
    %21 = arith.subf %17, %20 : vector<64x64xf32>
    %22 = math.exp %21 : vector<64x64xf32>
    %cst_16 = arith.constant dense<0.000000e+00> : vector<64xf32>
    %23 = vector.multi_reduction <add>, %22, %cst_16 [1] : vector<64x64xf32> to vector<64xf32>
    %24 = vector.shape_cast %23 : vector<64xf32> to vector<64x1xf32>
    %25 = tpu.reciprocal %24 {approx = true} : vector<64x1xf32> -> vector<64x1xf32>
    %26 = vector.broadcast %25 : vector<64x1xf32> to vector<64x64xf32>
    %27 = arith.mulf %22, %26 : vector<64x64xf32>
    %28 = arith.truncf %27 : vector<64x64xf32> to vector<64x64xbf16>
    %cst_17 = arith.constant dense<0.000000e+00> : vector<64x64xf32>
    %29 = tpu.matmul %28, %15, %cst_17 {dimension_numbers = #tpu.dot_dimension_numbers<[1], [0], [0], [1], [0, 0, 1, 1], [], []>} : vector<64x64xbf16>, vector<64x64xbf16>, vector<64x64xf32> -> vector<64x64xf32>
    %c0_18 = arith.constant 0 : index
    %c0_19 = arith.constant 0 : index
    %30 = vector.load %arg9[%c0_18, %c0_19] : memref<128x128xf32, #tpu.memory_space<vmem>>, vector<64x64xf32>
    tpu.vector_store %arg9[%c0_18, %c0_19], %29 {strides = array<i32>} : memref<128x128xf32, #tpu.memory_space<vmem>>, vector<64x64xf32>,
    %c64 = arith.constant 64 : index
    %c0_20 = arith.constant 0 : index
    %31 = vector.load %arg8[%c64, %c0_20] : memref<128x384xf32, #tpu.memory_space<vmem>>, vector<64x64xf32>
    %32 = arith.truncf %31 : vector<64x64xf32> to vector<64x64xbf16>
    %c64_21 = arith.constant 64 : index
    %c128_22 = arith.constant 128 : index
    %33 = vector.load %arg8[%c64_21, %c128_22] : memref<128x384xf32, #tpu.memory_space<vmem>>, vector<64x64xf32>
    %34 = arith.truncf %33 : vector<64x64xf32> to vector<64x64xbf16>
    %c64_23 = arith.constant 64 : index
    %c256_24 = arith.constant 256 : index
    %35 = vector.load %arg8[%c64_23, %c256_24] : memref<128x384xf32, #tpu.memory_space<vmem>>, vector<64x64xf32>
    %36 = arith.truncf %35 : vector<64x64xf32> to vector<64x64xbf16>
    %cst_25 = arith.constant dense<0.000000e+00> : vector<64x64xf32>
    %37 = tpu.matmul %32, %34, %cst_25 {dimension_numbers = #tpu.dot_dimension_numbers<[1], [1], [0], [0], [0, 0, 1, 0], [], []>} : vector<64x64xbf16>, vector<64x64xbf16>, vector<64x64xf32> -> vector<64x64xf32>
    %38 = arith.addf %37, %9 : vector<64x64xf32>
    %cst_26 = arith.constant dense<0xFF800000> : vector<64xf32>
    %39 = vector.multi_reduction <maximumf>, %38, %cst_26 [1] : vector<64x64xf32> to vector<64xf32>
    %40 = vector.shape_cast %39 : vector<64xf32> to vector<64x1xf32>
    %41 = vector.broadcast %40 : vector<64x1xf32> to vector<64x64xf32>
    %42 = arith.subf %38, %41 : vector<64x64xf32>
    %43 = math.exp %42 : vector<64x64xf32>
    %cst_27 = arith.constant dense<0.000000e+00> : vector<64xf32>
    %44 = vector.multi_reduction <add>, %43, %cst_27 [1] : vector<64x64xf32> to vector<64xf32>
    %45 = vector.shape_cast %44 : vector<64xf32> to vector<64x1xf32>
    %46 = tpu.reciprocal %45 {approx = true} : vector<64x1xf32> -> vector<64x1xf32>
    %47 = vector.broadcast %46 : vector<64x1xf32> to vector<64x64xf32>
    %48 = arith.mulf %43, %47 : vector<64x64xf32>
    %49 = arith.truncf %48 : vector<64x64xf32> to vector<64x64xbf16>
    %cst_28 = arith.constant dense<0.000000e+00> : vector<64x64xf32>
    %50 = tpu.matmul %49, %36, %cst_28 {dimension_numbers = #tpu.dot_dimension_numbers<[1], [0], [0], [1], [0, 0, 1, 1], [], []>} : vector<64x64xbf16>, vector<64x64xbf16>, vector<64x64xf32> -> vector<64x64xf32>
    %c64_29 = arith.constant 64 : index
    %c0_30 = arith.constant 0 : index
    %51 = vector.load %arg9[%c64_29, %c0_30] : memref<128x128xf32, #tpu.memory_space<vmem>>, vector<64x64xf32>
    tpu.vector_store %arg9[%c64_29, %c0_30], %50 {strides = array<i32>} : memref<128x128xf32, #tpu.memory_space<vmem>>, vector<64x64xf32>,
    %c0_31 = arith.constant 0 : index
    %c64_32 = arith.constant 64 : index
    %52 = vector.load %arg8[%c0_31, %c64_32] : memref<128x384xf32, #tpu.memory_space<vmem>>, vector<64x64xf32>
    %53 = arith.truncf %52 : vector<64x64xf32> to vector<64x64xbf16>
    %c0_33 = arith.constant 0 : index
    %c192 = arith.constant 192 : index
    %54 = vector.load %arg8[%c0_33, %c192] : memref<128x384xf32, #tpu.memory_space<vmem>>, vector<64x64xf32>
    %55 = arith.truncf %54 : vector<64x64xf32> to vector<64x64xbf16>
    %c0_34 = arith.constant 0 : index
    %c320 = arith.constant 320 : index
    %56 = vector.load %arg8[%c0_34, %c320] : memref<128x384xf32, #tpu.memory_space<vmem>>, vector<64x64xf32>
    %57 = arith.truncf %56 : vector<64x64xf32> to vector<64x64xbf16>
    %cst_35 = arith.constant dense<0.000000e+00> : vector<64x64xf32>
    %58 = tpu.matmul %53, %55, %cst_35 {dimension_numbers = #tpu.dot_dimension_numbers<[1], [1], [0], [0], [0, 0, 1, 0], [], []>} : vector<64x64xbf16>, vector<64x64xbf16>, vector<64x64xf32> -> vector<64x64xf32>
    %59 = arith.addf %58, %9 : vector<64x64xf32>
    %cst_36 = arith.constant dense<0xFF800000> : vector<64xf32>
    %60 = vector.multi_reduction <maximumf>, %59, %cst_36 [1] : vector<64x64xf32> to vector<64xf32>
    %61 = vector.shape_cast %60 : vector<64xf32> to vector<64x1xf32>
    %62 = vector.broadcast %61 : vector<64x1xf32> to vector<64x64xf32>
    %63 = arith.subf %59, %62 : vector<64x64xf32>
    %64 = math.exp %63 : vector<64x64xf32>
    %cst_37 = arith.constant dense<0.000000e+00> : vector<64xf32>
    %65 = vector.multi_reduction <add>, %64, %cst_37 [1] : vector<64x64xf32> to vector<64xf32>
    %66 = vector.shape_cast %65 : vector<64xf32> to vector<64x1xf32>
    %67 = tpu.reciprocal %66 {approx = true} : vector<64x1xf32> -> vector<64x1xf32>
    %68 = vector.broadcast %67 : vector<64x1xf32> to vector<64x64xf32>
    %69 = arith.mulf %64, %68 : vector<64x64xf32>
    %70 = arith.truncf %69 : vector<64x64xf32> to vector<64x64xbf16>
    %cst_38 = arith.constant dense<0.000000e+00> : vector<64x64xf32>
    %71 = tpu.matmul %70, %57, %cst_38 {dimension_numbers = #tpu.dot_dimension_numbers<[1], [0], [0], [1], [0, 0, 1, 1], [], []>} : vector<64x64xbf16>, vector<64x64xbf16>, vector<64x64xf32> -> vector<64x64xf32>
    %c0_39 = arith.constant 0 : index
    %c64_40 = arith.constant 64 : index
    %72 = vector.load %arg9[%c0_39, %c64_40] : memref<128x128xf32, #tpu.memory_space<vmem>>, vector<64x64xf32>
    tpu.vector_store %arg9[%c0_39, %c64_40], %71 {strides = array<i32>} : memref<128x128xf32, #tpu.memory_space<vmem>>, vector<64x64xf32>,
    %c64_41 = arith.constant 64 : index
    %c64_42 = arith.constant 64 : index
    %73 = vector.load %arg8[%c64_41, %c64_42] : memref<128x384xf32, #tpu.memory_space<vmem>>, vector<64x64xf32>
    %74 = arith.truncf %73 : vector<64x64xf32> to vector<64x64xbf16>
    %c64_43 = arith.constant 64 : index
    %c192_44 = arith.constant 192 : index
    %75 = vector.load %arg8[%c64_43, %c192_44] : memref<128x384xf32, #tpu.memory_space<vmem>>, vector<64x64xf32>
    %76 = arith.truncf %75 : vector<64x64xf32> to vector<64x64xbf16>
    %c64_45 = arith.constant 64 : index
    %c320_46 = arith.constant 320 : index
    %77 = vector.load %arg8[%c64_45, %c320_46] : memref<128x384xf32, #tpu.memory_space<vmem>>, vector<64x64xf32>
    %78 = arith.truncf %77 : vector<64x64xf32> to vector<64x64xbf16>
    %cst_47 = arith.constant dense<0.000000e+00> : vector<64x64xf32>
    %79 = tpu.matmul %74, %76, %cst_47 {dimension_numbers = #tpu.dot_dimension_numbers<[1], [1], [0], [0], [0, 0, 1, 0], [], []>} : vector<64x64xbf16>, vector<64x64xbf16>, vector<64x64xf32> -> vector<64x64xf32>
    %80 = arith.addf %79, %9 : vector<64x64xf32>
    %cst_48 = arith.constant dense<0xFF800000> : vector<64xf32>
    %81 = vector.multi_reduction <maximumf>, %80, %cst_48 [1] : vector<64x64xf32> to vector<64xf32>
    %82 = vector.shape_cast %81 : vector<64xf32> to vector<64x1xf32>
    %83 = vector.broadcast %82 : vector<64x1xf32> to vector<64x64xf32>
    %84 = arith.subf %80, %83 : vector<64x64xf32>
    %85 = math.exp %84 : vector<64x64xf32>
    %cst_49 = arith.constant dense<0.000000e+00> : vector<64xf32>
    %86 = vector.multi_reduction <add>, %85, %cst_49 [1] : vector<64x64xf32> to vector<64xf32>
    %87 = vector.shape_cast %86 : vector<64xf32> to vector<64x1xf32>
    %88 = tpu.reciprocal %87 {approx = true} : vector<64x1xf32> -> vector<64x1xf32>
    %89 = vector.broadcast %88 : vector<64x1xf32> to vector<64x64xf32>
    %90 = arith.mulf %85, %89 : vector<64x64xf32>
    %91 = arith.truncf %90 : vector<64x64xf32> to vector<64x64xbf16>
    %cst_50 = arith.constant dense<0.000000e+00> : vector<64x64xf32>
    %92 = tpu.matmul %91, %78, %cst_50 {dimension_numbers = #tpu.dot_dimension_numbers<[1], [0], [0], [1], [0, 0, 1, 1], [], []>} : vector<64x64xbf16>, vector<64x64xbf16>, vector<64x64xf32> -> vector<64x64xf32>
    %c64_51 = arith.constant 64 : index
    %c64_52 = arith.constant 64 : index
    %93 = vector.load %arg9[%c64_51, %c64_52] : memref<128x128xf32, #tpu.memory_space<vmem>>, vector<64x64xf32>
    tpu.vector_store %arg9[%c64_51, %c64_52], %92 {strides = array<i32>} : memref<128x128xf32, #tpu.memory_space<vmem>>, vector<64x64xf32>,
    %c0_53 = arith.constant 0 : index
    %c0_54 = arith.constant 0 : index
    %94 = vector.load %arg9[%c0_53, %c0_54] : memref<128x128xf32, #tpu.memory_space<vmem>>, vector<128x128xf32>
    %95 = arith.truncf %94 : vector<128x128xf32> to vector<128x128xbf16>
    %c0_55 = arith.constant 0 : index
    %c0_56 = arith.constant 0 : index
    %96 = vector.load %arg4[%c0_55, %c0_56] : memref<128x128xbf16, #tpu.memory_space<vmem>>, vector<128x128xbf16>
    %cst_57 = arith.constant dense<0.000000e+00> : vector<128x128xf32>
    %97 = tpu.matmul %95, %96, %cst_57 {dimension_numbers = #tpu.dot_dimension_numbers<[1], [0], [0], [1], [0, 0, 1, 1], [], []>} : vector<128x128xbf16>, vector<128x128xbf16>, vector<128x128xf32> -> vector<128x128xf32>
    %c0_58 = arith.constant 0 : index
    %c0_59 = arith.constant 0 : index
    %98 = vector.load %arg5[%c0_58, %c0_59] : memref<1x128xf32, #tpu.memory_space<vmem>>, vector<1x128xf32>
    %99 = vector.broadcast %98 : vector<1x128xf32> to vector<128x128xf32>
    %100 = arith.addf %97, %99 : vector<128x128xf32>
    %101 = vector.shape_cast %100 : vector<128x128xf32> to vector<2x64x128xf32>
    %c0_60 = arith.constant 0 : index
    %c0_61 = arith.constant 0 : index
    %c0_62 = arith.constant 0 : index
    %102 = vector.load %arg7[%c0_60, %c0_61, %c0_62] : memref<2x64x128xf32, #tpu.memory_space<vmem>>, vector<2x64x128xf32>
    tpu.vector_store %arg7[%c0_60, %c0_61, %c0_62], %101 {strides = array<i32>} : memref<2x64x128xf32, #tpu.memory_space<vmem>>, vector<2x64x128xf32>,
    return
  }
  func.func @transform_0(%arg0: i32) -> (i32, i32, i32) {
    %c0_i32 = arith.constant 0 : i32
    %c0_i32_0 = arith.constant 0 : i32
    %c0_i32_1 = arith.constant 0 : i32
    return %arg0, %c0_i32, %c0_i32_0 : i32, i32, i32
  }
  func.func @transform_1(%arg0: i32) -> (i32, i32) {
    %c0_i32 = arith.constant 0 : i32
    %c0_i32_0 = arith.constant 0 : i32
    %c0_i32_1 = arith.constant 0 : i32
    return %c0_i32, %c0_i32_0 : i32, i32
  }
  func.func @transform_2(%arg0: i32) -> (i32, i32) {
    %c0_i32 = arith.constant 0 : i32
    %c0_i32_0 = arith.constant 0 : i32
    %c0_i32_1 = arith.constant 0 : i32
    return %c0_i32, %c0_i32_0 : i32, i32
  }
  func.func @transform_3(%arg0: i32) -> (i32, i32) {
    %c0_i32 = arith.constant 0 : i32
    %c0_i32_0 = arith.constant 0 : i32
    %c0_i32_1 = arith.constant 0 : i32
    return %c0_i32, %c0_i32_0 : i32, i32
  }
  func.func @transform_4(%arg0: i32) -> (i32, i32) {
    %c0_i32 = arith.constant 0 : i32
    %c0_i32_0 = arith.constant 0 : i32
    %c0_i32_1 = arith.constant 0 : i32
    return %c0_i32, %c0_i32_0 : i32, i32
  }
  func.func @transform_5(%arg0: i32) -> (i32, i32) {
    %c0_i32 = arith.constant 0 : i32
    %c0_i32_0 = arith.constant 0 : i32
    %c0_i32_1 = arith.constant 0 : i32
    return %c0_i32, %c0_i32_0 : i32, i32
  }
  func.func @transform_6(%arg0: i32) -> (i32, i32, i32) {
    %c0_i32 = arith.constant 0 : i32
    %c0_i32_0 = arith.constant 0 : i32
    %c0_i32_1 = arith.constant 0 : i32
    return %arg0, %c0_i32, %c0_i32_0 : i32, i32, i32
  }
}

</mosaic_0001>

<llo_original>
// kernel: tpu_custom_call.1
$region0: #{tpu_custom_call.1}
  #allocation0 [shape = 'u32[]', space=smem, size = 0x4, offset = 0x4, fixed_abs, tag = 'smem constant byte address 0x4 - core index']
  #allocation1 [shape = 'u32[144,128]{1,0:T(1,128)}', space=vmem, size = 0x12000, scoped, tag = 'internal scratch']
  #allocation2 [shape = 'f32[128,384]{1,0:T(8,128)}', space=vmem, size = 0x30000, scoped, tag = 'scratch operand']
  #allocation3 [shape = 'f32[128,128]{1,0:T(8,128)}', space=vmem, size = 0x10000, scoped, tag = 'scratch operand']
  %s0 = inlined_call_operand.hbm [shape: f32[2,64,128], index: 0, kind: input, shape index: {}]
  %s1 = inlined_call_operand.hbm [shape: bf16[128,384], index: 1, kind: input, shape index: {}]
  %s2 = inlined_call_operand.vmem [shape: f32[1,384], index: 2, kind: input, shape index: {}]
  %s3 = inlined_call_operand.hbm [shape: bf16[128,128], index: 3, kind: input, shape index: {}]
  %s4 = inlined_call_operand.vmem [shape: f32[1,128], index: 4, kind: input, shape index: {}]
  %s5 = inlined_call_operand.hbm [shape: f32[64,64], index: 5, kind: input, shape index: {}]
  %s6 = inlined_call_operand.hbm [shape: f32[2,64,128], index: 6, kind: output, shape index: {}]
  %s7 = sld [smem:[#allocation0]]
  $region50: #{tpu_custom_call.1} parent=0
    _
  %s9 = ssub.s32 1, %s7
  %s10 = scalar_select 0, %s9, %s7
  $region1: #{tpu_custom_call.1} parent=0
    #allocation4 [shape = 'u8[65536]{0}', space=vmem, size = 0x10000, scoped, tag = 'input window, operand 0, single buffered']
    #allocation5 [shape = 's32[1]{0}', space=sflag, size = 0x4, scoped, tag = 'scoped memory for tpu_custom_call.1']
    #allocation6 [shape = 's32[1]{0}', space=sflag, size = 0x4, scoped, tag = 'scoped memory for tpu_custom_call.1']
    #allocation7 [shape = 'u8[98304]{0}', space=vmem, size = 0x18000, scoped, tag = 'input window, operand 1, single buffered']
    #allocation8 [shape = 's32[1]{0}', space=sflag, size = 0x4, scoped, tag = 'scoped memory for tpu_custom_call.1']
    #allocation9 [shape = 'u8[32768]{0}', space=vmem, size = 0x8000, scoped, tag = 'input window, operand 3, single buffered']
    #allocation10 [shape = 'u8[32768]{0}', space=vmem, size = 0x8000, scoped, tag = 'input window, operand 5, single buffered']
    #allocation11 [shape = 's32[1]{0}', space=sflag, size = 0x4, scoped, tag = 'scoped memory for tpu_custom_call.1']
    #allocation12 [shape = 'u8[65536]{0}', space=vmem, size = 0x10000, scoped, tag = 'output window, operand 0, single buffered']
    %11 = vsyncpa [#allocation5], 0
    %12 = vsyncpa [#allocation8], 0
    %13 = vsyncpa [#allocation11], 0
    %14 = vsyncpa [#allocation6], 0
    // Predicated region
    $region2: #{tpu_custom_call.1} parent=1 // pred_check
      _
    $region3: #{tpu_custom_call.1} parent=1 // pred_check_branch
      %16 = sbr.rel (0) target = $region5
    $region4: #{tpu_custom_call.1} parent=1 // pred_region
      %s18 = ssub.s32 2048, 2048
      %19 = vsyncadd [#allocation5], %s18
      %s20 = sshll.u32 [#allocation4], 4
      %s21 = int_to_ptr.vmem [resolvable:$true] %s20
      %26 = dma.hbm_to_vmem [thread:$0]  %s0, 2048, %s21, [#allocation5], 128, 128, 8
    $region5: #{tpu_custom_call.1} parent=1 // pred_fallthru
      _
    // Predicated region
    $region6: #{tpu_custom_call.1} parent=1 // pred_check
      _
    $region7: #{tpu_custom_call.1} parent=1 // pred_check_branch
      %28 = sbr.rel (0) target = $region9
    $region8: #{tpu_custom_call.1} parent=1 // pred_region
      %s30 = ssub.s32 3072, 3072
      %31 = vsyncadd [#allocation8], %s30
      %s32 = sshll.u32 [#allocation7], 4
      %s33 = int_to_ptr.vmem [resolvable:$true] %s32
      %38 = dma.hbm_to_vmem [thread:$0]  %s1, 3072, %s33, [#allocation8], 192, 192, 12
    $region9: #{tpu_custom_call.1} parent=1 // pred_fallthru
      _
    // Predicated region
    $region10: #{tpu_custom_call.1} parent=1 // pred_check
      _
    $region11: #{tpu_custom_call.1} parent=1 // pred_check_branch
      %40 = sbr.rel (0) target = $region13
    $region12: #{tpu_custom_call.1} parent=1 // pred_region
      _
    $region13: #{tpu_custom_call.1} parent=1 // pred_fallthru
      _
    // Predicated region
    $region14: #{tpu_custom_call.1} parent=1 // pred_check
      _
    $region15: #{tpu_custom_call.1} parent=1 // pred_check_branch
      %42 = sbr.rel (0) target = $region17
    $region16: #{tpu_custom_call.1} parent=1 // pred_region
      %s44 = ssub.s32 1024, 1024
      %45 = vsyncadd [#allocation8], %s44
      %s46 = sshll.u32 [#allocation9], 4
      %s47 = int_to_ptr.vmem [resolvable:$true] %s46
      %52 = dma.hbm_to_vmem [thread:$0]  %s3, 1024, %s47, [#allocation8], 64, 64, 4
    $region17: #{tpu_custom_call.1} parent=1 // pred_fallthru
      _
    // Predicated region
    $region18: #{tpu_custom_call.1} parent=1 // pred_check
      _
    $region19: #{tpu_custom_call.1} parent=1 // pred_check_branch
      %54 = sbr.rel (0) target = $region21
    $region20: #{tpu_custom_call.1} parent=1 // pred_region
      _
    $region21: #{tpu_custom_call.1} parent=1 // pred_fallthru
      _
    // Predicated region
    $region22: #{tpu_custom_call.1} parent=1 // pred_check
      _
    $region23: #{tpu_custom_call.1} parent=1 // pred_check_branch
      %56 = sbr.rel (0) target = $region25
    $region24: #{tpu_custom_call.1} parent=1 // pred_region
      %s58 = ssub.s32 1024, 1024
      %59 = vsyncadd [#allocation11], %s58
      %s60 = sshll.u32 [#allocation10], 4
      %s61 = int_to_ptr.vmem [resolvable:$true] %s60
      %66 = dma.hbm_to_vmem [thread:$0]  %s5, 1024, %s61, [#allocation11], 128, 128, 8
    $region25: #{tpu_custom_call.1} parent=1 // pred_fallthru
      _
    // Predicated region
    $region26: #{tpu_custom_call.1} parent=1 // pred_check
      _
    $region27: #{tpu_custom_call.1} parent=1 // pred_check_branch
      %68 = sbr.rel (0) target = $region29
    $region28: #{tpu_custom_call.1} parent=1 // pred_region
      %69 = dma.done [#allocation5], 2048
    $region29: #{tpu_custom_call.1} parent=1 // pred_fallthru
      _
    // Predicated region
    $region30: #{tpu_custom_call.1} parent=1 // pred_check
      _
    $region31: #{tpu_custom_call.1} parent=1 // pred_check_branch
      %71 = sbr.rel (0) target = $region33
    $region32: #{tpu_custom_call.1} parent=1 // pred_region
      %72 = dma.done [#allocation8], 3072
    $region33: #{tpu_custom_call.1} parent=1 // pred_fallthru
      _
    // Predicated region
    $region34: #{tpu_custom_call.1} parent=1 // pred_check
      _
    $region35: #{tpu_custom_call.1} parent=1 // pred_check_branch
      %74 = sbr.rel (0) target = $region37
    $region36: #{tpu_custom_call.1} parent=1 // pred_region
      %75 = dma.done [#allocation8], 1024
    $region37: #{tpu_custom_call.1} parent=1 // pred_fallthru
      _
    // Predicated region
    $region38: #{tpu_custom_call.1} parent=1 // pred_check
      _
    $region39: #{tpu_custom_call.1} parent=1 // pred_check_branch
      %77 = sbr.rel (0) target = $region41
    $region40: #{tpu_custom_call.1} parent=1 // pred_region
      %78 = dma.done [#allocation11], 1024
    $region41: #{tpu_custom_call.1} parent=1 // pred_fallthru
      _
    %v80 = vld [vmem:[#allocation4] sm:$0xff]
    %v81 = vld [vmem:[#allocation4 + $0x8] sm:$0xff]
    %v82 = vld [vmem:[#allocation4 + $0x10] sm:$0xff]
    %v83 = vld [vmem:[#allocation4 + $0x18] sm:$0xff]
    %v84 = vld [vmem:[#allocation4 + $0x20] sm:$0xff]
    %v85 = vld [vmem:[#allocation4 + $0x28] sm:$0xff]
    %v86 = vld [vmem:[#allocation4 + $0x30] sm:$0xff]
    %v87 = vld [vmem:[#allocation4 + $0x38] sm:$0xff]
    %v88 = vld [vmem:[#allocation4 + $0x40] sm:$0xff]
    %v89 = vld [vmem:[#allocation4 + $0x48] sm:$0xff]
    %v90 = vld [vmem:[#allocation4 + $0x50] sm:$0xff]
    %v91 = vld [vmem:[#allocation4 + $0x58] sm:$0xff]
    %v92 = vld [vmem:[#allocation4 + $0x60] sm:$0xff]
    %v93 = vld [vmem:[#allocation4 + $0x68] sm:$0xff]
    %v94 = vld [vmem:[#allocation4 + $0x70] sm:$0xff]
    %v95 = vld [vmem:[#allocation4 + $0x78] sm:$0xff]
    %v96 = vpack.c.bf16 %v81, %v80
    %v97 = vpack.c.bf16 %v83, %v82
    %v98 = vpack.c.bf16 %v85, %v84
    %v99 = vpack.c.bf16 %v87, %v86
    %v100 = vpack.c.bf16 %v89, %v88
    %v101 = vpack.c.bf16 %v91, %v90
    %v102 = vpack.c.bf16 %v93, %v92
    %v103 = vpack.c.bf16 %v95, %v94
    %v104 = vld [vmem:[#allocation7] sm:$0xff]
    %v105 = vld [vmem:[#allocation7 + $0x8] sm:$0xf]
    %v106 = vld [vmem:[#allocation7 + $0xc] sm:$0xff]
    %v107 = vld [vmem:[#allocation7 + $0x14] sm:$0xf]
    %v108 = vld [vmem:[#allocation7 + $0x18] sm:$0xff]
    %v109 = vld [vmem:[#allocation7 + $0x20] sm:$0xf]
    %v110 = vld [vmem:[#allocation7 + $0x24] sm:$0xff]
    %v111 = vld [vmem:[#allocation7 + $0x2c] sm:$0xf]
    %v112 = vld [vmem:[#allocation7 + $0x30] sm:$0xff]
    %v113 = vld [vmem:[#allocation7 + $0x38] sm:$0xf]
    %v114 = vld [vmem:[#allocation7 + $0x3c] sm:$0xff]
    %v115 = vld [vmem:[#allocation7 + $0x44] sm:$0xf]
    %v116 = vld [vmem:[#allocation7 + $0x48] sm:$0xff]
    %v117 = vld [vmem:[#allocation7 + $0x50] sm:$0xf]
    %v118 = vld [vmem:[#allocation7 + $0x54] sm:$0xff]
    %v119 = vld [vmem:[#allocation7 + $0x5c] sm:$0xf]
    %v120 = vld [vmem:[#allocation7 + $0x60] sm:$0xff]
    %v121 = vld [vmem:[#allocation7 + $0x68] sm:$0xf]
    %v122 = vld [vmem:[#allocation7 + $0x6c] sm:$0xff]
    %v123 = vld [vmem:[#allocation7 + $0x74] sm:$0xf]
    %v124 = vld [vmem:[#allocation7 + $0x78] sm:$0xff]
    %v125 = vld [vmem:[#allocation7 + $0x80] sm:$0xf]
    %v126 = vld [vmem:[#allocation7 + $0x84] sm:$0xff]
    %v127 = vld [vmem:[#allocation7 + $0x8c] sm:$0xf]
    %v128 = vld [vmem:[#allocation7 + $0x90] sm:$0xff]
    %v129 = vld [vmem:[#allocation7 + $0x98] sm:$0xf]
    %v130 = vld [vmem:[#allocation7 + $0x9c] sm:$0xff]
    %v131 = vld [vmem:[#allocation7 + $0xa4] sm:$0xf]
    %v132 = vld [vmem:[#allocation7 + $0xa8] sm:$0xff]
    %v133 = vld [vmem:[#allocation7 + $0xb0] sm:$0xf]
    %v134 = vld [vmem:[#allocation7 + $0xb4] sm:$0xff]
    %v135 = vld [vmem:[#allocation7 + $0xbc] sm:$0xf]
    %v136 = vld [vmem:[%s2] sm:$0x7]
    %v138 = vlaneseq
    %v139 = vshrl.u32 %v138, 7
    %v140 = vsub.s32 0, %v139
    %v141 = vrot.slane %v136, %v140
    %v142 = vlaneseq
    %v143 = vshrl.u32 %v142, 7
    %v144 = vsub.s32 1, %v143
    %v145 = vrot.slane %v136, %v144
    %v146 = vlaneseq
    %v147 = vshrl.u32 %v146, 7
    %v148 = vsub.s32 2, %v147
    %v149 = vrot.slane %v136, %v148
    %v185 = vunpack.c.l.b16 %v104
    %v186 = vunpack.c.h.b16 %v104
    %v187 = vunpack.c.l.b16 %v105
    %v188 = vunpack.c.l.b16 %v106
    %v189 = vunpack.c.h.b16 %v106
    %v190 = vunpack.c.l.b16 %v107
    %v191 = vunpack.c.l.b16 %v108
    %v192 = vunpack.c.h.b16 %v108
    %v193 = vunpack.c.l.b16 %v109
    %v194 = vunpack.c.l.b16 %v110
    %v195 = vunpack.c.h.b16 %v110
    %v196 = vunpack.c.l.b16 %v111
    %v197 = vunpack.c.l.b16 %v112
    %v198 = vunpack.c.h.b16 %v112
    %v199 = vunpack.c.l.b16 %v113
    %v200 = vunpack.c.l.b16 %v114
    %v201 = vunpack.c.h.b16 %v114
    %v202 = vunpack.c.l.b16 %v115
    %v203 = vunpack.c.l.b16 %v116
    %v204 = vunpack.c.h.b16 %v116
    %v205 = vunpack.c.l.b16 %v117
    %v206 = vunpack.c.l.b16 %v118
    %v207 = vunpack.c.h.b16 %v118
    %v208 = vunpack.c.l.b16 %v119
    %v209 = vunpack.c.l.b16 %v120
    %v210 = vunpack.c.h.b16 %v120
    %v211 = vunpack.c.l.b16 %v121
    %v212 = vunpack.c.l.b16 %v122
    %v213 = vunpack.c.h.b16 %v122
    %v214 = vunpack.c.l.b16 %v123
    %v215 = vunpack.c.l.b16 %v124
    %v216 = vunpack.c.h.b16 %v124
    %v217 = vunpack.c.l.b16 %v125
    %v218 = vunpack.c.l.b16 %v126
    %v219 = vunpack.c.h.b16 %v126
    %v220 = vunpack.c.l.b16 %v127
    %v221 = vunpack.c.l.b16 %v128
    %v222 = vunpack.c.h.b16 %v128
    %v223 = vunpack.c.l.b16 %v129
    %v224 = vunpack.c.l.b16 %v130
    %v225 = vunpack.c.h.b16 %v130
    %v226 = vunpack.c.l.b16 %v131
    %v227 = vunpack.c.l.b16 %v132
    %v228 = vunpack.c.h.b16 %v132
    %v229 = vunpack.c.l.b16 %v133
    %v230 = vunpack.c.l.b16 %v134
    %v231 = vunpack.c.h.b16 %v134
    %v232 = vunpack.c.l.b16 %v135
    %v233 = vpack.c.b16 %v188, %v185
    %v234 = vpack.c.b16 %v189, %v186
    %v235 = vpack.c.b16 %v190, %v187
    %v236 = vpack.c.b16 %v194, %v191
    %v237 = vpack.c.b16 %v195, %v192
    %v238 = vpack.c.b16 %v196, %v193
    %v239 = vpack.c.b16 %v200, %v197
    %v240 = vpack.c.b16 %v201, %v198
    %v241 = vpack.c.b16 %v202, %v199
    %v242 = vpack.c.b16 %v206, %v203
    %v243 = vpack.c.b16 %v207, %v204
    %v244 = vpack.c.b16 %v208, %v205
    %v245 = vpack.c.b16 %v212, %v209
    %v246 = vpack.c.b16 %v213, %v210
    %v247 = vpack.c.b16 %v214, %v211
    %v248 = vpack.c.b16 %v218, %v215
    %v249 = vpack.c.b16 %v219, %v216
    %v250 = vpack.c.b16 %v220, %v217
    %v251 = vpack.c.b16 %v224, %v221
    %v252 = vpack.c.b16 %v225, %v222
    %v253 = vpack.c.b16 %v226, %v223
    %v254 = vpack.c.b16 %v230, %v227
    %v255 = vpack.c.b16 %v231, %v228
    %v256 = vpack.c.b16 %v232, %v229
    %281 = vmatprep.subr.bf16.mxu0 %v234
    %282 = vmatpush1.bf16.msra.mxu0 %v233
    %283 = vmatprep.subr.bf16.mxu0 %v237
    %284 = vmatpush1.bf16.msra.mxu0 %v236
    %285 = vmatprep.subr.bf16.mxu0 %v240
    %286 = vmatpush1.bf16.msra.mxu0 %v239
    %287 = vmatprep.subr.bf16.mxu0 %v243
    %288 = vmatpush1.bf16.msra.mxu0 %v242
    %289 = vmatprep.subr.bf16.mxu0 %v246
    %290 = vmatpush1.bf16.msra.mxu0 %v245
    %291 = vmatprep.subr.bf16.mxu0 %v249
    %292 = vmatpush1.bf16.msra.mxu0 %v248
    %293 = vmatprep.subr.bf16.mxu0 %v252
    %294 = vmatpush1.bf16.msra.mxu0 %v251
    %295 = vmatprep.subr.bf16.mxu0 %v255
    %296 = vmatpush1.bf16.msra.mxu0 %v254
    %297 = vmatprep.subr.bf16.mxu0 0
    %298 = vmatpush1.bf16.msra.mxu0 0
    %299 = vmatprep.subr.bf16.mxu0 0
    %300 = vmatpush1.bf16.msra.mxu0 0
    %301 = vmatprep.subr.bf16.mxu0 0
    %302 = vmatpush1.bf16.msra.mxu0 0
    %303 = vmatprep.subr.bf16.mxu0 0
    %304 = vmatpush1.bf16.msra.mxu0 0
    %305 = vmatprep.subr.bf16.mxu0 0
    %306 = vmatpush1.bf16.msra.mxu0 0
    %307 = vmatprep.subr.bf16.mxu0 0
    %308 = vmatpush1.bf16.msra.mxu0 0
    %309 = vmatprep.subr.bf16.mxu0 0
    %310 = vmatpush1.bf16.msra.mxu0 0
    %311 = vmatprep.subr.bf16.mxu0 0
    %312 = vmatpush1.bf16.msra.mxu0 0
    %313 = vmatprep.mubr.bf16.mxu0 0
    %314 = vmatmul.mubr.bf16.gmra.mrb[0].mxu0 %v96
    %v315 = vpop.f32.mrb[0].mxu0
    %v316 = vadd.f32 %v141, %v315
    %v317 = vpop.f32.mrb[0].mxu0
    %v318 = vadd.f32 %v145, %v317
    %v319 = vpop.f32.mrb[0].mxu0
    %v320 = vadd.f32 %v141, %v319
    %v321 = vpop.f32.mrb[0].mxu0
    %v322 = vadd.f32 %v145, %v321
    %323 = vmatprep.mubr.bf16.mxu0 0
    %324 = vmatmul.mubr.bf16.gmra.mrb[0].mxu0 %v97
    %v325 = vpop.f32.mrb[0].mxu0
    %v326 = vadd.f32 %v141, %v325
    %v327 = vpop.f32.mrb[0].mxu0
    %v328 = vadd.f32 %v145, %v327
    %v329 = vpop.f32.mrb[0].mxu0
    %v330 = vadd.f32 %v141, %v329
    %v331 = vpop.f32.mrb[0].mxu0
    %v332 = vadd.f32 %v145, %v331
    %333 = vmatprep.mubr.bf16.mxu0 0
    %334 = vmatmul.mubr.bf16.gmra.mrb[0].mxu0 %v98
    %v335 = vpop.f32.mrb[0].mxu0
    %v336 = vadd.f32 %v141, %v335
    %v337 = vpop.f32.mrb[0].mxu0
    %v338 = vadd.f32 %v145, %v337
    %v339 = vpop.f32.mrb[0].mxu0
    %v340 = vadd.f32 %v141, %v339
    %v341 = vpop.f32.mrb[0].mxu0
    %v342 = vadd.f32 %v145, %v341
    %343 = vmatprep.mubr.bf16.mxu0 0
    %344 = vmatmul.mubr.bf16.gmra.mrb[0].mxu0 %v99
    %v345 = vpop.f32.mrb[0].mxu0
    %v346 = vadd.f32 %v141, %v345
    %v347 = vpop.f32.mrb[0].mxu0
    %v348 = vadd.f32 %v145, %v347
    %v349 = vpop.f32.mrb[0].mxu0
    %v350 = vadd.f32 %v141, %v349
    %v351 = vpop.f32.mrb[0].mxu0
    %v352 = vadd.f32 %v145, %v351
    %353 = vmatprep.mubr.bf16.mxu0 0
    %354 = vmatmul.mubr.bf16.gmra.mrb[0].mxu0 %v100
    %v355 = vpop.f32.mrb[0].mxu0
    %v356 = vadd.f32 %v141, %v355
    %v357 = vpop.f32.mrb[0].mxu0
    %v358 = vadd.f32 %v145, %v357
    %v359 = vpop.f32.mrb[0].mxu0
    %v360 = vadd.f32 %v141, %v359
    %v361 = vpop.f32.mrb[0].mxu0
    %v362 = vadd.f32 %v145, %v361
    %363 = vmatprep.mubr.bf16.mxu0 0
    %364 = vmatmul.mubr.bf16.gmra.mrb[0].mxu0 %v101
    %v365 = vpop.f32.mrb[0].mxu0
    %v366 = vadd.f32 %v141, %v365
    %v367 = vpop.f32.mrb[0].mxu0
    %v368 = vadd.f32 %v145, %v367
    %v369 = vpop.f32.mrb[0].mxu0
    %v370 = vadd.f32 %v141, %v369
    %v371 = vpop.f32.mrb[0].mxu0
    %v372 = vadd.f32 %v145, %v371
    %373 = vmatprep.mubr.bf16.mxu0 0
    %374 = vmatmul.mubr.bf16.gmra.mrb[0].mxu0 %v102
    %v375 = vpop.f32.mrb[0].mxu0
    %v376 = vadd.f32 %v141, %v375
    %v377 = vpop.f32.mrb[0].mxu0
    %v378 = vadd.f32 %v145, %v377
    %v379 = vpop.f32.mrb[0].mxu0
    %v380 = vadd.f32 %v141, %v379
    %v381 = vpop.f32.mrb[0].mxu0
    %v382 = vadd.f32 %v145, %v381
    %383 = vmatprep.mubr.bf16.mxu0 0
    %384 = vmatmul.mubr.bf16.gmra.mrb[0].mxu0 %v103
    %v385 = vpop.f32.mrb[0].mxu0
    %v386 = vadd.f32 %v141, %v385
    %v387 = vpop.f32.mrb[0].mxu0
    %v388 = vadd.f32 %v145, %v387
    %v389 = vpop.f32.mrb[0].mxu0
    %v390 = vadd.f32 %v141, %v389
    %v391 = vpop.f32.mrb[0].mxu0
    %v392 = vadd.f32 %v145, %v391
    %393 = vdwg.mxu0
    %394 = vmatprep.subr.bf16.mxu0 0
    %395 = vmatpush1.bf16.msra.mxu0 %v235
    %396 = vmatprep.subr.bf16.mxu0 0
    %397 = vmatpush1.bf16.msra.mxu0 %v238
    %398 = vmatprep.subr.bf16.mxu0 0
    %399 = vmatpush1.bf16.msra.mxu0 %v241
    %400 = vmatprep.subr.bf16.mxu0 0
    %401 = vmatpush1.bf16.msra.mxu0 %v244
    %402 = vmatprep.subr.bf16.mxu0 0
    %403 = vmatpush1.bf16.msra.mxu0 %v247
    %404 = vmatprep.subr.bf16.mxu0 0
    %405 = vmatpush1.bf16.msra.mxu0 %v250
    %406 = vmatprep.subr.bf16.mxu0 0
    %407 = vmatpush1.bf16.msra.mxu0 %v253
    %408 = vmatprep.subr.bf16.mxu0 0
    %409 = vmatpush1.bf16.msra.mxu0 %v256
    %410 = vmatprep.subr.bf16.mxu0 0
    %411 = vmatpush1.bf16.msra.mxu0 0
    %412 = vmatprep.subr.bf16.mxu0 0
    %413 = vmatpush1.bf16.msra.mxu0 0
    %414 = vmatprep.subr.bf16.mxu0 0
    %415 = vmatpush1.bf16.msra.mxu0 0
    %416 = vmatprep.subr.bf16.mxu0 0
    %417 = vmatpush1.bf16.msra.mxu0 0
    %418 = vmatprep.subr.bf16.mxu0 0
    %419 = vmatpush1.bf16.msra.mxu0 0
    %420 = vmatprep.subr.bf16.mxu0 0
    %421 = vmatpush1.bf16.msra.mxu0 0
    %422 = vmatprep.subr.bf16.mxu0 0
    %423 = vmatpush1.bf16.msra.mxu0 0
    %424 = vmatprep.subr.bf16.mxu0 0
    %425 = vmatpush1.bf16.msra.mxu0 0
    %426 = vmatprep.mubr.bf16.mxu0 0
    %427 = vmatmul.mubr.bf16.gmra.mrb[0].mxu0 %v96
    %v428 = vpop.f32.mrb[0].mxu0
    %v429 = vadd.f32 %v149, %v428
    %v430 = vpop.f32.mrb[0].mxu0
    %v431 = vpop.f32.mrb[0].mxu0
    %v432 = vadd.f32 %v149, %v431
    %v433 = vpop.f32.mrb[0].mxu0
    %434 = vmatprep.mubr.bf16.mxu0 0
    %435 = vmatmul.mubr.bf16.gmra.mrb[0].mxu0 %v97
    %v436 = vpop.f32.mrb[0].mxu0
    %v437 = vadd.f32 %v149, %v436
    %v438 = vpop.f32.mrb[0].mxu0
    %v439 = vpop.f32.mrb[0].mxu0
    %v440 = vadd.f32 %v149, %v439
    %v441 = vpop.f32.mrb[0].mxu0
    %442 = vmatprep.mubr.bf16.mxu0 0
    %443 = vmatmul.mubr.bf16.gmra.mrb[0].mxu0 %v98
    %v444 = vpop.f32.mrb[0].mxu0
    %v445 = vadd.f32 %v149, %v444
    %v446 = vpop.f32.mrb[0].mxu0
    %v447 = vpop.f32.mrb[0].mxu0
    %v448 = vadd.f32 %v149, %v447
    %v449 = vpop.f32.mrb[0].mxu0
    %450 = vmatprep.mubr.bf16.mxu0 0
    %451 = vmatmul.mubr.bf16.gmra.mrb[0].mxu0 %v99
    %v452 = vpop.f32.mrb[0].mxu0
    %v453 = vadd.f32 %v149, %v452
    %v454 = vpop.f32.mrb[0].mxu0
    %v455 = vpop.f32.mrb[0].mxu0
    %v456 = vadd.f32 %v149, %v455
    %v457 = vpop.f32.mrb[0].mxu0
    %458 = vmatprep.mubr.bf16.mxu0 0
    %459 = vmatmul.mubr.bf16.gmra.mrb[0].mxu0 %v100
    %v460 = vpop.f32.mrb[0].mxu0
    %v461 = vadd.f32 %v149, %v460
    %v462 = vpop.f32.mrb[0].mxu0
    %v463 = vpop.f32.mrb[0].mxu0
    %v464 = vadd.f32 %v149, %v463
    %v465 = vpop.f32.mrb[0].mxu0
    %466 = vmatprep.mubr.bf16.mxu0 0
    %467 = vmatmul.mubr.bf16.gmra.mrb[0].mxu0 %v101
    %v468 = vpop.f32.mrb[0].mxu0
    %v469 = vadd.f32 %v149, %v468
    %v470 = vpop.f32.mrb[0].mxu0
    %v471 = vpop.f32.mrb[0].mxu0
    %v472 = vadd.f32 %v149, %v471
    %v473 = vpop.f32.mrb[0].mxu0
    %474 = vmatprep.mubr.bf16.mxu0 0
    %475 = vmatmul.mubr.bf16.gmra.mrb[0].mxu0 %v102
    %v476 = vpop.f32.mrb[0].mxu0
    %v477 = vadd.f32 %v149, %v476
    %v478 = vpop.f32.mrb[0].mxu0
    %v479 = vpop.f32.mrb[0].mxu0
    %v480 = vadd.f32 %v149, %v479
    %v481 = vpop.f32.mrb[0].mxu0
    %482 = vmatprep.mubr.bf16.mxu0 0
    %483 = vmatmul.mubr.bf16.gmra.mrb[0].mxu0 %v103
    %v484 = vpop.f32.mrb[0].mxu0
    %v485 = vadd.f32 %v149, %v484
    %v486 = vpop.f32.mrb[0].mxu0
    %v487 = vpop.f32.mrb[0].mxu0
    %v488 = vadd.f32 %v149, %v487
    %v489 = vpop.f32.mrb[0].mxu0
    %490 = vdwg.mxu0
    %491 = vst [vmem:[#allocation2] sm:$0xff] %v316
    %492 = vst [vmem:[#allocation2 + $0x8] sm:$0xff] %v318
    %493 = vst [vmem:[#allocation2 + $0x10] sm:$0xff] %v429
    %494 = vst [vmem:[#allocation2 + $0x18] sm:$0xff] %v320
    %495 = vst [vmem:[#allocation2 + $0x20] sm:$0xff] %v322
    %496 = vst [vmem:[#allocation2 + $0x28] sm:$0xff] %v432
    %497 = vst [vmem:[#allocation2 + $0x30] sm:$0xff] %v326
    %498 = vst [vmem:[#allocation2 + $0x38] sm:$0xff] %v328
    %499 = vst [vmem:[#allocation2 + $0x40] sm:$0xff] %v437
    %500 = vst [vmem:[#allocation2 + $0x48] sm:$0xff] %v330
    %501 = vst [vmem:[#allocation2 + $0x50] sm:$0xff] %v332
    %502 = vst [vmem:[#allocation2 + $0x58] sm:$0xff] %v440
    %503 = vst [vmem:[#allocation2 + $0x60] sm:$0xff] %v336
    %504 = vst [vmem:[#allocation2 + $0x68] sm:$0xff] %v338
    %505 = vst [vmem:[#allocation2 + $0x70] sm:$0xff] %v445
    %506 = vst [vmem:[#allocation2 + $0x78] sm:$0xff] %v340
    %507 = vst [vmem:[#allocation2 + $0x80] sm:$0xff] %v342
    %508 = vst [vmem:[#allocation2 + $0x88] sm:$0xff] %v448
    %509 = vst [vmem:[#allocation2 + $0x90] sm:$0xff] %v346
    %510 = vst [vmem:[#allocation2 + $0x98] sm:$0xff] %v348
    %511 = vst [vmem:[#allocation2 + $0xa0] sm:$0xff] %v453
    %512 = vst [vmem:[#allocation2 + $0xa8] sm:$0xff] %v350
    %513 = vst [vmem:[#allocation2 + $0xb0] sm:$0xff] %v352
    %514 = vst [vmem:[#allocation2 + $0xb8] sm:$0xff] %v456
    %515 = vst [vmem:[#allocation2 + $0xc0] sm:$0xff] %v356
    %516 = vst [vmem:[#allocation2 + $0xc8] sm:$0xff] %v358
    %517 = vst [vmem:[#allocation2 + $0xd0] sm:$0xff] %v461
    %518 = vst [vmem:[#allocation2 + $0xd8] sm:$0xff] %v360
    %519 = vst [vmem:[#allocation2 + $0xe0] sm:$0xff] %v362
    %520 = vst [vmem:[#allocation2 + $0xe8] sm:$0xff] %v464
    %521 = vst [vmem:[#allocation2 + $0xf0] sm:$0xff] %v366
    %522 = vst [vmem:[#allocation2 + $0xf8] sm:$0xff] %v368
    %523 = vst [vmem:[#allocation2 + $0x100] sm:$0xff] %v469
    %524 = vst [vmem:[#allocation2 + $0x108] sm:$0xff] %v370
    %525 = vst [vmem:[#allocation2 + $0x110] sm:$0xff] %v372
    %526 = vst [vmem:[#allocation2 + $0x118] sm:$0xff] %v472
    %527 = vst [vmem:[#allocation2 + $0x120] sm:$0xff] %v376
    %528 = vst [vmem:[#allocation2 + $0x128] sm:$0xff] %v378
    %529 = vst [vmem:[#allocation2 + $0x130] sm:$0xff] %v477
    %530 = vst [vmem:[#allocation2 + $0x138] sm:$0xff] %v380
    %531 = vst [vmem:[#allocation2 + $0x140] sm:$0xff] %v382
    %532 = vst [vmem:[#allocation2 + $0x148] sm:$0xff] %v480
    %533 = vst [vmem:[#allocation2 + $0x150] sm:$0xff] %v386
    %534 = vst [vmem:[#allocation2 + $0x158] sm:$0xff] %v388
    %535 = vst [vmem:[#allocation2 + $0x160] sm:$0xff] %v485
    %536 = vst [vmem:[#allocation2 + $0x168] sm:$0xff] %v390
    %537 = vst [vmem:[#allocation2 + $0x170] sm:$0xff] %v392
    %538 = vst [vmem:[#allocation2 + $0x178] sm:$0xff] %v488
    %v539 = vld [vmem:[#allocation10] sm:$0xff]
    %v540 = vld [vmem:[#allocation10 + $0x8] sm:$0xff]
    %v541 = vld [vmem:[#allocation10 + $0x10] sm:$0xff]
    %v542 = vld [vmem:[#allocation10 + $0x18] sm:$0xff]
    %v543 = vld [vmem:[#allocation10 + $0x20] sm:$0xff]
    %v544 = vld [vmem:[#allocation10 + $0x28] sm:$0xff]
    %v545 = vld [vmem:[#allocation10 + $0x30] sm:$0xff]
    %v546 = vld [vmem:[#allocation10 + $0x38] sm:$0xff]
    %v547 = vld [vmem:[#allocation2] sm:$0xff]
    %v548 = vld [vmem:[#allocation2 + $0x18] sm:$0xff]
    %v549 = vld [vmem:[#allocation2 + $0x30] sm:$0xff]
    %v550 = vld [vmem:[#allocation2 + $0x48] sm:$0xff]
    %v551 = vld [vmem:[#allocation2 + $0x60] sm:$0xff]
    %v552 = vld [vmem:[#allocation2 + $0x78] sm:$0xff]
    %v553 = vld [vmem:[#allocation2 + $0x90] sm:$0xff]
    %v554 = vld [vmem:[#allocation2 + $0xa8] sm:$0xff]
    %v555 = vpack.c.bf16 %v548, %v547
    %v556 = vpack.c.bf16 %v550, %v549
    %v557 = vpack.c.bf16 %v552, %v551
    %v558 = vpack.c.bf16 %v554, %v553
    %v559 = vld [vmem:[#allocation2 + $0x8] sm:$0xff]
    %v560 = vld [vmem:[#allocation2 + $0x20] sm:$0xff]
    %v561 = vld [vmem:[#allocation2 + $0x38] sm:$0xff]
    %v562 = vld [vmem:[#allocation2 + $0x50] sm:$0xff]
    %v563 = vld [vmem:[#allocation2 + $0x68] sm:$0xff]
    %v564 = vld [vmem:[#allocation2 + $0x80] sm:$0xff]
    %v565 = vld [vmem:[#allocation2 + $0x98] sm:$0xff]
    %v566 = vld [vmem:[#allocation2 + $0xb0] sm:$0xff]
    %v567 = vpack.c.bf16 %v560, %v559
    %v568 = vpack.c.bf16 %v562, %v561
    %v569 = vpack.c.bf16 %v564, %v563
    %v570 = vpack.c.bf16 %v566, %v565
    %v571 = vld [vmem:[#allocation2 + $0x10] sm:$0xff]
    %v572 = vld [vmem:[#allocation2 + $0x28] sm:$0xff]
    %v573 = vld [vmem:[#allocation2 + $0x40] sm:$0xff]
    %v574 = vld [vmem:[#allocation2 + $0x58] sm:$0xff]
    %v575 = vld [vmem:[#allocation2 + $0x70] sm:$0xff]
    %v576 = vld [vmem:[#allocation2 + $0x88] sm:$0xff]
    %v577 = vld [vmem:[#allocation2 + $0xa0] sm:$0xff]
    %v578 = vld [vmem:[#allocation2 + $0xb8] sm:$0xff]
    %v579 = vpack.c.bf16 %v572, %v571
    %v580 = vpack.c.bf16 %v574, %v573
    %v581 = vpack.c.bf16 %v576, %v575
    %v582 = vpack.c.bf16 %v578, %v577
    %vm583 = vcmask 523264
    %v585 = vsel %vm583, %v555, 0
    %v588 = vsel %vm583, %v556, 0
    %v591 = vsel %vm583, %v557, 0
    %v594 = vsel %vm583, %v558, 0
    %v597 = vsel %vm583, %v567, 0
    %v600 = vsel %vm583, %v568, 0
    %v603 = vsel %vm583, %v569, 0
    %v606 = vsel %vm583, %v570, 0
    %608 = vmatprep.subr.bf16.mxu0 0
    %609 = vmatpush1.bf16.xpose.msra.mxu0 %v597
    %610 = vmatprep.subr.bf16.mxu0 0
    %611 = vmatpush1.bf16.xpose.msra.mxu0 %v600
    %612 = vmatprep.subr.bf16.mxu0 0
    %613 = vmatpush1.bf16.xpose.msra.mxu0 %v603
    %614 = vmatprep.subr.bf16.mxu0 0
    %615 = vmatpush1.bf16.xpose.msra.mxu0 %v606
    %616 = vmatprep.subr.bf16.mxu0 0
    %617 = vmatpush1.bf16.xpose.msra.mxu0 0
    %618 = vmatprep.subr.bf16.mxu0 0
    %619 = vmatpush1.bf16.xpose.msra.mxu0 0
    %620 = vmatprep.subr.bf16.mxu0 0
    %621 = vmatpush1.bf16.xpose.msra.mxu0 0
    %622 = vmatprep.subr.bf16.mxu0 0
    %623 = vmatpush1.bf16.xpose.msra.mxu0 0
    %624 = vmatprep.subr.bf16.mxu0 0
    %625 = vmatpush1.bf16.xpose.msra.mxu0 0
    %626 = vmatprep.subr.bf16.mxu0 0
    %627 = vmatpush1.bf16.xpose.msra.mxu0 0
    %628 = vmatprep.subr.bf16.mxu0 0
    %629 = vmatpush1.bf16.xpose.msra.mxu0 0
    %630 = vmatprep.subr.bf16.mxu0 0
    %631 = vmatpush1.bf16.xpose.msra.mxu0 0
    %632 = vmatprep.subr.bf16.mxu0 0
    %633 = vmatpush1.bf16.xpose.msra.mxu0 0
    %634 = vmatprep.subr.bf16.mxu0 0
    %635 = vmatpush1.bf16.xpose.msra.mxu0 0
    %636 = vmatprep.subr.bf16.mxu0 0
    %637 = vmatpush1.bf16.xpose.msra.mxu0 0
    %638 = vmatprep.subr.bf16.mxu0 0
    %639 = vmatpush1.bf16.xpose.msra.mxu0 0
    %640 = vmatprep.mubr.bf16.mxu0 0
    %641 = vmatmul.mubr.bf16.gmra.mrb[0].mxu0 %v585
    %v642 = vpop.f32.mrb[0].mxu0
    %v643 = vadd.f32 %v539, %v642
    %v644 = vpop.f32.mrb[0].mxu0
    %v645 = vpop.f32.mrb[0].mxu0
    %v646 = vadd.f32 %v540, %v645
    %v647 = vpop.f32.mrb[0].mxu0
    %648 = vmatprep.mubr.bf16.mxu0 0
    %649 = vmatmul.mubr.bf16.gmra.mrb[0].mxu0 %v588
    %v650 = vpop.f32.mrb[0].mxu0
    %v651 = vadd.f32 %v541, %v650
    %v652 = vpop.f32.mrb[0].mxu0
    %v653 = vpop.f32.mrb[0].mxu0
    %v654 = vadd.f32 %v542, %v653
    %v655 = vpop.f32.mrb[0].mxu0
    %656 = vmatprep.mubr.bf16.mxu0 0
    %657 = vmatmul.mubr.bf16.gmra.mrb[0].mxu0 %v591
    %v658 = vpop.f32.mrb[0].mxu0
    %v659 = vadd.f32 %v543, %v658
    %v660 = vpop.f32.mrb[0].mxu0
    %v661 = vpop.f32.mrb[0].mxu0
    %v662 = vadd.f32 %v544, %v661
    %v663 = vpop.f32.mrb[0].mxu0
    %664 = vmatprep.mubr.bf16.mxu0 0
    %665 = vmatmul.mubr.bf16.gmra.mrb[0].mxu0 %v594
    %v666 = vpop.f32.mrb[0].mxu0
    %v667 = vadd.f32 %v545, %v666
    %v668 = vpop.f32.mrb[0].mxu0
    %v669 = vpop.f32.mrb[0].mxu0
    %v670 = vadd.f32 %v546, %v669
    %v671 = vpop.f32.mrb[0].mxu0
    %672 = vdwg.mxu0
    %v673 = vsel %vm583, %v643, -inf
    %674 = vmax.xlane.f32.xlu0 %v673
    %v675 = vpop.xlane.xlu0 %674
    %v676 = vsel %vm583, %v646, -inf
    %677 = vmax.xlane.f32.xlu0 %v676
    %v678 = vpop.xlane.xlu0 %677
    %v679 = vsel %vm583, %v651, -inf
    %680 = vmax.xlane.f32.xlu0 %v679
    %v681 = vpop.xlane.xlu0 %680
    %v682 = vsel %vm583, %v654, -inf
    %683 = vmax.xlane.f32.xlu0 %v682
    %v684 = vpop.xlane.xlu0 %683
    %v685 = vsel %vm583, %v659, -inf
    %686 = vmax.xlane.f32.xlu0 %v685
    %v687 = vpop.xlane.xlu0 %686
    %v688 = vsel %vm583, %v662, -inf
    %689 = vmax.xlane.f32.xlu0 %v688
    %v690 = vpop.xlane.xlu0 %689
    %v691 = vsel %vm583, %v667, -inf
    %692 = vmax.xlane.f32.xlu0 %v691
    %v693 = vpop.xlane.xlu0 %692
    %v694 = vsel %vm583, %v670, -inf
    %695 = vmax.xlane.f32.xlu0 %v694
    %v696 = vpop.xlane.xlu0 %695
    %v697 = vsub.f32 %v643, %v675
    %v698 = vsub.f32 %v646, %v678
    %v699 = vsub.f32 %v651, %v681
    %v700 = vsub.f32 %v654, %v684
    %v701 = vsub.f32 %v659, %v687
    %v702 = vsub.f32 %v662, %v690
    %v703 = vsub.f32 %v667, %v693
    %v704 = vsub.f32 %v670, %v696
    %v705 = vmul.f32 %v697, 1.442695
    %v706 = vpow.pop %v705
    %v707 = vmul.f32 %v698, 1.442695
    %v708 = vpow.pop %v707
    %v709 = vmul.f32 %v699, 1.442695
    %v710 = vpow.pop %v709
    %v711 = vmul.f32 %v700, 1.442695
    %v712 = vpow.pop %v711
    %v713 = vmul.f32 %v701, 1.442695
    %v714 = vpow.pop %v713
    %v715 = vmul.f32 %v702, 1.442695
    %v716 = vpow.pop %v715
    %v717 = vmul.f32 %v703, 1.442695
    %v718 = vpow.pop %v717
    %v719 = vmul.f32 %v704, 1.442695
    %v720 = vpow.pop %v719
    %v721 = vsel %vm583, %v706, 0.0
    %722 = vadd.xlane.f32.xlu0 %v721
    %v723 = vpop.xlane.xlu0 %722
    %v724 = vsel %vm583, %v708, 0.0
    %725 = vadd.xlane.f32.xlu0 %v724
    %v726 = vpop.xlane.xlu0 %725
    %v727 = vsel %vm583, %v710, 0.0
    %728 = vadd.xlane.f32.xlu0 %v727
    %v729 = vpop.xlane.xlu0 %728
    %v730 = vsel %vm583, %v712, 0.0
    %731 = vadd.xlane.f32.xlu0 %v730
    %v732 = vpop.xlane.xlu0 %731
    %v733 = vsel %vm583, %v714, 0.0
    %734 = vadd.xlane.f32.xlu0 %v733
    %v735 = vpop.xlane.xlu0 %734
    %v736 = vsel %vm583, %v716, 0.0
    %737 = vadd.xlane.f32.xlu0 %v736
    %v738 = vpop.xlane.xlu0 %737
    %v739 = vsel %vm583, %v718, 0.0
    %740 = vadd.xlane.f32.xlu0 %v739
    %v741 = vpop.xlane.xlu0 %740
    %v742 = vsel %vm583, %v720, 0.0
    %743 = vadd.xlane.f32.xlu0 %v742
    %v744 = vpop.xlane.xlu0 %743
    %v745 = vrcp.pop %v723
    %v746 = vrcp.pop %v726
    %v747 = vrcp.pop %v729
    %v748 = vrcp.pop %v732
    %v749 = vrcp.pop %v735
    %v750 = vrcp.pop %v738
    %v751 = vrcp.pop %v741
    %v752 = vrcp.pop %v744
    %v753 = vmul.f32 %v706, %v745
    %v754 = vmul.f32 %v708, %v746
    %v755 = vmul.f32 %v710, %v747
    %v756 = vmul.f32 %v712, %v748
    %v757 = vmul.f32 %v714, %v749
    %v758 = vmul.f32 %v716, %v750
    %v759 = vmul.f32 %v718, %v751
    %v760 = vmul.f32 %v720, %v752
    %v761 = vpack.c.bf16 %v754, %v753
    %v762 = vpack.c.bf16 %v756, %v755
    %v763 = vpack.c.bf16 %v758, %v757
    %v764 = vpack.c.bf16 %v760, %v759
    %v766 = vsel %vm583, %v761, 0
    %v769 = vsel %vm583, %v762, 0
    %v772 = vsel %vm583, %v763, 0
    %v775 = vsel %vm583, %v764, 0
    %777 = vmatprep.subr.bf16.mxu0 0
    %778 = vmatpush1.bf16.msra.mxu0 %v579
    %779 = vmatprep.subr.bf16.mxu0 0
    %780 = vmatpush1.bf16.msra.mxu0 %v580
    %781 = vmatprep.subr.bf16.mxu0 0
    %782 = vmatpush1.bf16.msra.mxu0 %v581
    %783 = vmatprep.subr.bf16.mxu0 0
    %784 = vmatpush1.bf16.msra.mxu0 %v582
    %785 = vmatprep.subr.bf16.mxu0 0
    %786 = vmatpush1.bf16.msra.mxu0 0
    %787 = vmatprep.subr.bf16.mxu0 0
    %788 = vmatpush1.bf16.msra.mxu0 0
    %789 = vmatprep.subr.bf16.mxu0 0
    %790 = vmatpush1.bf16.msra.mxu0 0
    %791 = vmatprep.subr.bf16.mxu0 0
    %792 = vmatpush1.bf16.msra.mxu0 0
    %793 = vmatprep.subr.bf16.mxu0 0
    %794 = vmatpush1.bf16.msra.mxu0 0
    %795 = vmatprep.subr.bf16.mxu0 0
    %796 = vmatpush1.bf16.msra.mxu0 0
    %797 = vmatprep.subr.bf16.mxu0 0
    %798 = vmatpush1.bf16.msra.mxu0 0
    %799 = vmatprep.subr.bf16.mxu0 0
    %800 = vmatpush1.bf16.msra.mxu0 0
    %801 = vmatprep.subr.bf16.mxu0 0
    %802 = vmatpush1.bf16.msra.mxu0 0
    %803 = vmatprep.subr.bf16.mxu0 0
    %804 = vmatpush1.bf16.msra.mxu0 0
    %805 = vmatprep.subr.bf16.mxu0 0
    %806 = vmatpush1.bf16.msra.mxu0 0
    %807 = vmatprep.subr.bf16.mxu0 0
    %808 = vmatpush1.bf16.msra.mxu0 0
    %809 = vmatprep.mubr.bf16.mxu0 0
    %810 = vmatmul.mubr.bf16.gmra.mrb[0].mxu0 %v766
    %v811 = vpop.f32.mrb[0].mxu0
    %v812 = vadd.f32 0.0, %v811
    %v813 = vpop.f32.mrb[0].mxu0
    %v814 = vpop.f32.mrb[0].mxu0
    %v815 = vadd.f32 0.0, %v814
    %v816 = vpop.f32.mrb[0].mxu0
    %817 = vmatprep.mubr.bf16.mxu0 0
    %818 = vmatmul.mubr.bf16.gmra.mrb[0].mxu0 %v769
    %v819 = vpop.f32.mrb[0].mxu0
    %v820 = vadd.f32 0.0, %v819
    %v821 = vpop.f32.mrb[0].mxu0
    %v822 = vpop.f32.mrb[0].mxu0
    %v823 = vadd.f32 0.0, %v822
    %v824 = vpop.f32.mrb[0].mxu0
    %825 = vmatprep.mubr.bf16.mxu0 0
    %826 = vmatmul.mubr.bf16.gmra.mrb[0].mxu0 %v772
    %v827 = vpop.f32.mrb[0].mxu0
    %v828 = vadd.f32 0.0, %v827
    %v829 = vpop.f32.mrb[0].mxu0
    %v830 = vpop.f32.mrb[0].mxu0
    %v831 = vadd.f32 0.0, %v830
    %v832 = vpop.f32.mrb[0].mxu0
    %833 = vmatprep.mubr.bf16.mxu0 0
    %834 = vmatmul.mubr.bf16.gmra.mrb[0].mxu0 %v775
    %v835 = vpop.f32.mrb[0].mxu0
    %v836 = vadd.f32 0.0, %v835
    %v837 = vpop.f32.mrb[0].mxu0
    %v838 = vpop.f32.mrb[0].mxu0
    %v839 = vadd.f32 0.0, %v838
    %v840 = vpop.f32.mrb[0].mxu0
    %841 = vdwg.mxu0
    %842 = vst.msk [vmem:[#allocation3] sm:$0xff] %vm583, %v812
    %843 = vst.msk [vmem:[#allocation3 + $0x8] sm:$0xff] %vm583, %v815
    %844 = vst.msk [vmem:[#allocation3 + $0x10] sm:$0xff] %vm583, %v820
    %845 = vst.msk [vmem:[#allocation3 + $0x18] sm:$0xff] %vm583, %v823
    %846 = vst.msk [vmem:[#allocation3 + $0x20] sm:$0xff] %vm583, %v828
    %847 = vst.msk [vmem:[#allocation3 + $0x28] sm:$0xff] %vm583, %v831
    %848 = vst.msk [vmem:[#allocation3 + $0x30] sm:$0xff] %vm583, %v836
    %849 = vst.msk [vmem:[#allocation3 + $0x38] sm:$0xff] %vm583, %v839
    %v850 = vld [vmem:[#allocation2 + $0xc0] sm:$0xff]
    %v851 = vld [vmem:[#allocation2 + $0xd8] sm:$0xff]
    %v852 = vld [vmem:[#allocation2 + $0xf0] sm:$0xff]
    %v853 = vld [vmem:[#allocation2 + $0x108] sm:$0xff]
    %v854 = vld [vmem:[#allocation2 + $0x120] sm:$0xff]
    %v855 = vld [vmem:[#allocation2 + $0x138] sm:$0xff]
    %v856 = vld [vmem:[#allocation2 + $0x150] sm:$0xff]
    %v857 = vld [vmem:[#allocation2 + $0x168] sm:$0xff]
    %v858 = vpack.c.bf16 %v851, %v850
    %v859 = vpack.c.bf16 %v853, %v852
    %v860 = vpack.c.bf16 %v855, %v854
    %v861 = vpack.c.bf16 %v857, %v856
    %v862 = vld [vmem:[#allocation2 + $0xc8] sm:$0xff]
    %v863 = vld [vmem:[#allocation2 + $0xe0] sm:$0xff]
    %v864 = vld [vmem:[#allocation2 + $0xf8] sm:$0xff]
    %v865 = vld [vmem:[#allocation2 + $0x110] sm:$0xff]
    %v866 = vld [vmem:[#allocation2 + $0x128] sm:$0xff]
    %v867 = vld [vmem:[#allocation2 + $0x140] sm:$0xff]
    %v868 = vld [vmem:[#allocation2 + $0x158] sm:$0xff]
    %v869 = vld [vmem:[#allocation2 + $0x170] sm:$0xff]
    %v870 = vpack.c.bf16 %v863, %v862
    %v871 = vpack.c.bf16 %v865, %v864
    %v872 = vpack.c.bf16 %v867, %v866
    %v873 = vpack.c.bf16 %v869, %v868
    %v874 = vld [vmem:[#allocation2 + $0xd0] sm:$0xff]
    %v875 = vld [vmem:[#allocation2 + $0xe8] sm:$0xff]
    %v876 = vld [vmem:[#allocation2 + $0x100] sm:$0xff]
    %v877 = vld [vmem:[#allocation2 + $0x118] sm:$0xff]
    %v878 = vld [vmem:[#allocation2 + $0x130] sm:$0xff]
    %v879 = vld [vmem:[#allocation2 + $0x148] sm:$0xff]
    %v880 = vld [vmem:[#allocation2 + $0x160] sm:$0xff]
    %v881 = vld [vmem:[#allocation2 + $0x178] sm:$0xff]
    %v882 = vpack.c.bf16 %v875, %v874
    %v883 = vpack.c.bf16 %v877, %v876
    %v884 = vpack.c.bf16 %v879, %v878
    %v885 = vpack.c.bf16 %v881, %v880
    %v887 = vsel %vm583, %v858, 0
    %v890 = vsel %vm583, %v859, 0
    %v893 = vsel %vm583, %v860, 0
    %v896 = vsel %vm583, %v861, 0
    %v899 = vsel %vm583, %v870, 0
    %v902 = vsel %vm583, %v871, 0
    %v905 = vsel %vm583, %v872, 0
    %v908 = vsel %vm583, %v873, 0
    %910 = vmatprep.subr.bf16.mxu0 0
    %911 = vmatpush1.bf16.xpose.msra.mxu0 %v899
    %912 = vmatprep.subr.bf16.mxu0 0
    %913 = vmatpush1.bf16.xpose.msra.mxu0 %v902
    %914 = vmatprep.subr.bf16.mxu0 0
    %915 = vmatpush1.bf16.xpose.msra.mxu0 %v905
    %916 = vmatprep.subr.bf16.mxu0 0
    %917 = vmatpush1.bf16.xpose.msra.mxu0 %v908
    %918 = vmatprep.subr.bf16.mxu0 0
    %919 = vmatpush1.bf16.xpose.msra.mxu0 0
    %920 = vmatprep.subr.bf16.mxu0 0
    %921 = vmatpush1.bf16.xpose.msra.mxu0 0
    %922 = vmatprep.subr.bf16.mxu0 0
    %923 = vmatpush1.bf16.xpose.msra.mxu0 0
    %924 = vmatprep.subr.bf16.mxu0 0
    %925 = vmatpush1.bf16.xpose.msra.mxu0 0
    %926 = vmatprep.subr.bf16.mxu0 0
    %927 = vmatpush1.bf16.xpose.msra.mxu0 0
    %928 = vmatprep.subr.bf16.mxu0 0
    %929 = vmatpush1.bf16.xpose.msra.mxu0 0
    %930 = vmatprep.subr.bf16.mxu0 0
    %931 = vmatpush1.bf16.xpose.msra.mxu0 0
    %932 = vmatprep.subr.bf16.mxu0 0
    %933 = vmatpush1.bf16.xpose.msra.mxu0 0
    %934 = vmatprep.subr.bf16.mxu0 0
    %935 = vmatpush1.bf16.xpose.msra.mxu0 0
    %936 = vmatprep.subr.bf16.mxu0 0
    %937 = vmatpush1.bf16.xpose.msra.mxu0 0
    %938 = vmatprep.subr.bf16.mxu0 0
    %939 = vmatpush1.bf16.xpose.msra.mxu0 0
    %940 = vmatprep.subr.bf16.mxu0 0
    %941 = vmatpush1.bf16.xpose.msra.mxu0 0
    %942 = vmatprep.mubr.bf16.mxu0 0
    %943 = vmatmul.mubr.bf16.gmra.mrb[0].mxu0 %v887
    %v944 = vpop.f32.mrb[0].mxu0
    %v945 = vadd.f32 %v539, %v944
    %v946 = vpop.f32.mrb[0].mxu0
    %v947 = vpop.f32.mrb[0].mxu0
    %v948 = vadd.f32 %v540, %v947
    %v949 = vpop.f32.mrb[0].mxu0
    %950 = vmatprep.mubr.bf16.mxu0 0
    %951 = vmatmul.mubr.bf16.gmra.mrb[0].mxu0 %v890
    %v952 = vpop.f32.mrb[0].mxu0
    %v953 = vadd.f32 %v541, %v952
    %v954 = vpop.f32.mrb[0].mxu0
    %v955 = vpop.f32.mrb[0].mxu0
    %v956 = vadd.f32 %v542, %v955
    %v957 = vpop.f32.mrb[0].mxu0
    %958 = vmatprep.mubr.bf16.mxu0 0
    %959 = vmatmul.mubr.bf16.gmra.mrb[0].mxu0 %v893
    %v960 = vpop.f32.mrb[0].mxu0
    %v961 = vadd.f32 %v543, %v960
    %v962 = vpop.f32.mrb[0].mxu0
    %v963 = vpop.f32.mrb[0].mxu0
    %v964 = vadd.f32 %v544, %v963
    %v965 = vpop.f32.mrb[0].mxu0
    %966 = vmatprep.mubr.bf16.mxu0 0
    %967 = vmatmul.mubr.bf16.gmra.mrb[0].mxu0 %v896
    %v968 = vpop.f32.mrb[0].mxu0
    %v969 = vadd.f32 %v545, %v968
    %v970 = vpop.f32.mrb[0].mxu0
    %v971 = vpop.f32.mrb[0].mxu0
    %v972 = vadd.f32 %v546, %v971
    %v973 = vpop.f32.mrb[0].mxu0
    %974 = vdwg.mxu0
    %v975 = vsel %vm583, %v945, -inf
    %976 = vmax.xlane.f32.xlu0 %v975
    %v977 = vpop.xlane.xlu0 %976
    %v978 = vsel %vm583, %v948, -inf
    %979 = vmax.xlane.f32.xlu0 %v978
    %v980 = vpop.xlane.xlu0 %979
    %v981 = vsel %vm583, %v953, -inf
    %982 = vmax.xlane.f32.xlu0 %v981
    %v983 = vpop.xlane.xlu0 %982
    %v984 = vsel %vm583, %v956, -inf
    %985 = vmax.xlane.f32.xlu0 %v984
    %v986 = vpop.xlane.xlu0 %985
    %v987 = vsel %vm583, %v961, -inf
    %988 = vmax.xlane.f32.xlu0 %v987
    %v989 = vpop.xlane.xlu0 %988
    %v990 = vsel %vm583, %v964, -inf
    %991 = vmax.xlane.f32.xlu0 %v990
    %v992 = vpop.xlane.xlu0 %991
    %v993 = vsel %vm583, %v969, -inf
    %994 = vmax.xlane.f32.xlu0 %v993
    %v995 = vpop.xlane.xlu0 %994
    %v996 = vsel %vm583, %v972, -inf
    %997 = vmax.xlane.f32.xlu0 %v996
    %v998 = vpop.xlane.xlu0 %997
    %v999 = vsub.f32 %v945, %v977
    %v1000 = vsub.f32 %v948, %v980
    %v1001 = vsub.f32 %v953, %v983
    %v1002 = vsub.f32 %v956, %v986
    %v1003 = vsub.f32 %v961, %v989
    %v1004 = vsub.f32 %v964, %v992
    %v1005 = vsub.f32 %v969, %v995
    %v1006 = vsub.f32 %v972, %v998
    %v1007 = vmul.f32 %v999, 1.442695
    %v1008 = vpow.pop %v1007
    %v1009 = vmul.f32 %v1000, 1.442695
    %v1010 = vpow.pop %v1009
    %v1011 = vmul.f32 %v1001, 1.442695
    %v1012 = vpow.pop %v1011
    %v1013 = vmul.f32 %v1002, 1.442695
    %v1014 = vpow.pop %v1013
    %v1015 = vmul.f32 %v1003, 1.442695
    %v1016 = vpow.pop %v1015
    %v1017 = vmul.f32 %v1004, 1.442695
    %v1018 = vpow.pop %v1017
    %v1019 = vmul.f32 %v1005, 1.442695
    %v1020 = vpow.pop %v1019
    %v1021 = vmul.f32 %v1006, 1.442695
    %v1022 = vpow.pop %v1021
    %v1023 = vsel %vm583, %v1008, 0.0
    %1024 = vadd.xlane.f32.xlu0 %v1023
    %v1025 = vpop.xlane.xlu0 %1024
    %v1026 = vsel %vm583, %v1010, 0.0
    %1027 = vadd.xlane.f32.xlu0 %v1026
    %v1028 = vpop.xlane.xlu0 %1027
    %v1029 = vsel %vm583, %v1012, 0.0
    %1030 = vadd.xlane.f32.xlu0 %v1029
    %v1031 = vpop.xlane.xlu0 %1030
    %v1032 = vsel %vm583, %v1014, 0.0
    %1033 = vadd.xlane.f32.xlu0 %v1032
    %v1034 = vpop.xlane.xlu0 %1033
    %v1035 = vsel %vm583, %v1016, 0.0
    %1036 = vadd.xlane.f32.xlu0 %v1035
    %v1037 = vpop.xlane.xlu0 %1036
    %v1038 = vsel %vm583, %v1018, 0.0
    %1039 = vadd.xlane.f32.xlu0 %v1038
    %v1040 = vpop.xlane.xlu0 %1039
    %v1041 = vsel %vm583, %v1020, 0.0
    %1042 = vadd.xlane.f32.xlu0 %v1041
    %v1043 = vpop.xlane.xlu0 %1042
    %v1044 = vsel %vm583, %v1022, 0.0
    %1045 = vadd.xlane.f32.xlu0 %v1044
    %v1046 = vpop.xlane.xlu0 %1045
    %v1047 = vrcp.pop %v1025
    %v1048 = vrcp.pop %v1028
    %v1049 = vrcp.pop %v1031
    %v1050 = vrcp.pop %v1034
    %v1051 = vrcp.pop %v1037
    %v1052 = vrcp.pop %v1040
    %v1053 = vrcp.pop %v1043
    %v1054 = vrcp.pop %v1046
    %v1055 = vmul.f32 %v1008, %v1047
    %v1056 = vmul.f32 %v1010, %v1048
    %v1057 = vmul.f32 %v1012, %v1049
    %v1058 = vmul.f32 %v1014, %v1050
    %v1059 = vmul.f32 %v1016, %v1051
    %v1060 = vmul.f32 %v1018, %v1052
    %v1061 = vmul.f32 %v1020, %v1053
    %v1062 = vmul.f32 %v1022, %v1054
    %v1063 = vpack.c.bf16 %v1056, %v1055
    %v1064 = vpack.c.bf16 %v1058, %v1057
    %v1065 = vpack.c.bf16 %v1060, %v1059
    %v1066 = vpack.c.bf16 %v1062, %v1061
    %v1068 = vsel %vm583, %v1063, 0
    %v1071 = vsel %vm583, %v1064, 0
    %v1074 = vsel %vm583, %v1065, 0
    %v1077 = vsel %vm583, %v1066, 0
    %1079 = vmatprep.subr.bf16.mxu0 0
    %1080 = vmatpush1.bf16.msra.mxu0 %v882
    %1081 = vmatprep.subr.bf16.mxu0 0
    %1082 = vmatpush1.bf16.msra.mxu0 %v883
    %1083 = vmatprep.subr.bf16.mxu0 0
    %1084 = vmatpush1.bf16.msra.mxu0 %v884
    %1085 = vmatprep.subr.bf16.mxu0 0
    %1086 = vmatpush1.bf16.msra.mxu0 %v885
    %1087 = vmatprep.subr.bf16.mxu0 0
    %1088 = vmatpush1.bf16.msra.mxu0 0
    %1089 = vmatprep.subr.bf16.mxu0 0
    %1090 = vmatpush1.bf16.msra.mxu0 0
    %1091 = vmatprep.subr.bf16.mxu0 0
    %1092 = vmatpush1.bf16.msra.mxu0 0
    %1093 = vmatprep.subr.bf16.mxu0 0
    %1094 = vmatpush1.bf16.msra.mxu0 0
    %1095 = vmatprep.subr.bf16.mxu0 0
    %1096 = vmatpush1.bf16.msra.mxu0 0
    %1097 = vmatprep.subr.bf16.mxu0 0
    %1098 = vmatpush1.bf16.msra.mxu0 0
    %1099 = vmatprep.subr.bf16.mxu0 0
    %1100 = vmatpush1.bf16.msra.mxu0 0
    %1101 = vmatprep.subr.bf16.mxu0 0
    %1102 = vmatpush1.bf16.msra.mxu0 0
    %1103 = vmatprep.subr.bf16.mxu0 0
    %1104 = vmatpush1.bf16.msra.mxu0 0
    %1105 = vmatprep.subr.bf16.mxu0 0
    %1106 = vmatpush1.bf16.msra.mxu0 0
    %1107 = vmatprep.subr.bf16.mxu0 0
    %1108 = vmatpush1.bf16.msra.mxu0 0
    %1109 = vmatprep.subr.bf16.mxu0 0
    %1110 = vmatpush1.bf16.msra.mxu0 0
    %1111 = vmatprep.mubr.bf16.mxu0 0
    %1112 = vmatmul.mubr.bf16.gmra.mrb[0].mxu0 %v1068
    %v1113 = vpop.f32.mrb[0].mxu0
    %v1114 = vadd.f32 0.0, %v1113
    %v1115 = vpop.f32.mrb[0].mxu0
    %v1116 = vpop.f32.mrb[0].mxu0
    %v1117 = vadd.f32 0.0, %v1116
    %v1118 = vpop.f32.mrb[0].mxu0
    %1119 = vmatprep.mubr.bf16.mxu0 0
    %1120 = vmatmul.mubr.bf16.gmra.mrb[0].mxu0 %v1071
    %v1121 = vpop.f32.mrb[0].mxu0
    %v1122 = vadd.f32 0.0, %v1121
    %v1123 = vpop.f32.mrb[0].mxu0
    %v1124 = vpop.f32.mrb[0].mxu0
    %v1125 = vadd.f32 0.0, %v1124
    %v1126 = vpop.f32.mrb[0].mxu0
    %1127 = vmatprep.mubr.bf16.mxu0 0
    %1128 = vmatmul.mubr.bf16.gmra.mrb[0].mxu0 %v1074
    %v1129 = vpop.f32.mrb[0].mxu0
    %v1130 = vadd.f32 0.0, %v1129
    %v1131 = vpop.f32.mrb[0].mxu0
    %v1132 = vpop.f32.mrb[0].mxu0
    %v1133 = vadd.f32 0.0, %v1132
    %v1134 = vpop.f32.mrb[0].mxu0
    %1135 = vmatprep.mubr.bf16.mxu0 0
    %1136 = vmatmul.mubr.bf16.gmra.mrb[0].mxu0 %v1077
    %v1137 = vpop.f32.mrb[0].mxu0
    %v1138 = vadd.f32 0.0, %v1137
    %v1139 = vpop.f32.mrb[0].mxu0
    %v1140 = vpop.f32.mrb[0].mxu0
    %v1141 = vadd.f32 0.0, %v1140
    %v1142 = vpop.f32.mrb[0].mxu0
    %1143 = vdwg.mxu0
    %1144 = vst.msk [vmem:[#allocation3 + $0x40] sm:$0xff] %vm583, %v1114
    %1145 = vst.msk [vmem:[#allocation3 + $0x48] sm:$0xff] %vm583, %v1117
    %1146 = vst.msk [vmem:[#allocation3 + $0x50] sm:$0xff] %vm583, %v1122
    %1147 = vst.msk [vmem:[#allocation3 + $0x58] sm:$0xff] %vm583, %v1125
    %1148 = vst.msk [vmem:[#allocation3 + $0x60] sm:$0xff] %vm583, %v1130
    %1149 = vst.msk [vmem:[#allocation3 + $0x68] sm:$0xff] %vm583, %v1133
    %1150 = vst.msk [vmem:[#allocation3 + $0x70] sm:$0xff] %vm583, %v1138
    %1151 = vst.msk [vmem:[#allocation3 + $0x78] sm:$0xff] %vm583, %v1141
    %v1152 = vld [vmem:[#allocation2] sm:$0xff]
    %v1153 = vld [vmem:[#allocation2 + $0x18] sm:$0xff]
    %v1154 = vld [vmem:[#allocation2 + $0x30] sm:$0xff]
    %v1155 = vld [vmem:[#allocation2 + $0x48] sm:$0xff]
    %v1156 = vld [vmem:[#allocation2 + $0x60] sm:$0xff]
    %v1157 = vld [vmem:[#allocation2 + $0x78] sm:$0xff]
    %v1158 = vld [vmem:[#allocation2 + $0x90] sm:$0xff]
    %v1159 = vld [vmem:[#allocation2 + $0xa8] sm:$0xff]
    %v1160 = vpack.c.bf16 %v1153, %v1152
    %v1161 = vpack.c.bf16 %v1155, %v1154
    %v1162 = vpack.c.bf16 %v1157, %v1156
    %v1163 = vpack.c.bf16 %v1159, %v1158
    %v1164 = vld [vmem:[#allocation2 + $0x8] sm:$0xff]
    %v1165 = vld [vmem:[#allocation2 + $0x20] sm:$0xff]
    %v1166 = vld [vmem:[#allocation2 + $0x38] sm:$0xff]
    %v1167 = vld [vmem:[#allocation2 + $0x50] sm:$0xff]
    %v1168 = vld [vmem:[#allocation2 + $0x68] sm:$0xff]
    %v1169 = vld [vmem:[#allocation2 + $0x80] sm:$0xff]
    %v1170 = vld [vmem:[#allocation2 + $0x98] sm:$0xff]
    %v1171 = vld [vmem:[#allocation2 + $0xb0] sm:$0xff]
    %v1172 = vpack.c.bf16 %v1165, %v1164
    %v1173 = vpack.c.bf16 %v1167, %v1166
    %v1174 = vpack.c.bf16 %v1169, %v1168
    %v1175 = vpack.c.bf16 %v1171, %v1170
    %v1176 = vld [vmem:[#allocation2 + $0x10] sm:$0xff]
    %v1177 = vld [vmem:[#allocation2 + $0x28] sm:$0xff]
    %v1178 = vld [vmem:[#allocation2 + $0x40] sm:$0xff]
    %v1179 = vld [vmem:[#allocation2 + $0x58] sm:$0xff]
    %v1180 = vld [vmem:[#allocation2 + $0x70] sm:$0xff]
    %v1181 = vld [vmem:[#allocation2 + $0x88] sm:$0xff]
    %v1182 = vld [vmem:[#allocation2 + $0xa0] sm:$0xff]
    %v1183 = vld [vmem:[#allocation2 + $0xb8] sm:$0xff]
    %v1184 = vpack.c.bf16 %v1177, %v1176
    %v1185 = vpack.c.bf16 %v1179, %v1178
    %v1186 = vpack.c.bf16 %v1181, %v1180
    %v1187 = vpack.c.bf16 %v1183, %v1182
    %1192 = vrot.lane.b32.xlu0 %v1160, 64
    %v1193 = vpop.permute.xlu0 %1192
    %1194 = vrot.lane.b32.xlu0 %v1161, 64
    %v1195 = vpop.permute.xlu0 %1194
    %1196 = vrot.lane.b32.xlu0 %v1162, 64
    %v1197 = vpop.permute.xlu0 %1196
    %1198 = vrot.lane.b32.xlu0 %v1163, 64
    %v1199 = vpop.permute.xlu0 %1198
    %1204 = vrot.lane.b32.xlu0 %v1172, 64
    %v1205 = vpop.permute.xlu0 %1204
    %1206 = vrot.lane.b32.xlu0 %v1173, 64
    %v1207 = vpop.permute.xlu0 %1206
    %1208 = vrot.lane.b32.xlu0 %v1174, 64
    %v1209 = vpop.permute.xlu0 %1208
    %1210 = vrot.lane.b32.xlu0 %v1175, 64
    %v1211 = vpop.permute.xlu0 %1210
    %v1213 = vsel %vm583, %v1193, 0
    %v1216 = vsel %vm583, %v1195, 0
    %v1219 = vsel %vm583, %v1197, 0
    %v1222 = vsel %vm583, %v1199, 0
    %v1225 = vsel %vm583, %v1205, 0
    %v1228 = vsel %vm583, %v1207, 0
    %v1231 = vsel %vm583, %v1209, 0
    %v1234 = vsel %vm583, %v1211, 0
    %1236 = vmatprep.subr.bf16.mxu0 0
    %1237 = vmatpush1.bf16.xpose.msra.mxu0 %v1225
    %1238 = vmatprep.subr.bf16.mxu0 0
    %1239 = vmatpush1.bf16.xpose.msra.mxu0 %v1228
    %1240 = vmatprep.subr.bf16.mxu0 0
    %1241 = vmatpush1.bf16.xpose.msra.mxu0 %v1231
    %1242 = vmatprep.subr.bf16.mxu0 0
    %1243 = vmatpush1.bf16.xpose.msra.mxu0 %v1234
    %1244 = vmatprep.subr.bf16.mxu0 0
    %1245 = vmatpush1.bf16.xpose.msra.mxu0 0
    %1246 = vmatprep.subr.bf16.mxu0 0
    %1247 = vmatpush1.bf16.xpose.msra.mxu0 0
    %1248 = vmatprep.subr.bf16.mxu0 0
    %1249 = vmatpush1.bf16.xpose.msra.mxu0 0
    %1250 = vmatprep.subr.bf16.mxu0 0
    %1251 = vmatpush1.bf16.xpose.msra.mxu0 0
    %1252 = vmatprep.subr.bf16.mxu0 0
    %1253 = vmatpush1.bf16.xpose.msra.mxu0 0
    %1254 = vmatprep.subr.bf16.mxu0 0
    %1255 = vmatpush1.bf16.xpose.msra.mxu0 0
    %1256 = vmatprep.subr.bf16.mxu0 0
    %1257 = vmatpush1.bf16.xpose.msra.mxu0 0
    %1258 = vmatprep.subr.bf16.mxu0 0
    %1259 = vmatpush1.bf16.xpose.msra.mxu0 0
    %1260 = vmatprep.subr.bf16.mxu0 0
    %1261 = vmatpush1.bf16.xpose.msra.mxu0 0
    %1262 = vmatprep.subr.bf16.mxu0 0
    %1263 = vmatpush1.bf16.xpose.msra.mxu0 0
    %1264 = vmatprep.subr.bf16.mxu0 0
    %1265 = vmatpush1.bf16.xpose.msra.mxu0 0
    %1266 = vmatprep.subr.bf16.mxu0 0
    %1267 = vmatpush1.bf16.xpose.msra.mxu0 0
    %1268 = vmatprep.mubr.bf16.mxu0 0
    %1269 = vmatmul.mubr.bf16.gmra.mrb[0].mxu0 %v1213
    %v1270 = vpop.f32.mrb[0].mxu0
    %v1271 = vadd.f32 %v539, %v1270
    %v1272 = vpop.f32.mrb[0].mxu0
    %v1273 = vpop.f32.mrb[0].mxu0
    %v1274 = vadd.f32 %v540, %v1273
    %v1275 = vpop.f32.mrb[0].mxu0
    %1276 = vmatprep.mubr.bf16.mxu0 0
    %1277 = vmatmul.mubr.bf16.gmra.mrb[0].mxu0 %v1216
    %v1278 = vpop.f32.mrb[0].mxu0
    %v1279 = vadd.f32 %v541, %v1278
    %v1280 = vpop.f32.mrb[0].mxu0
    %v1281 = vpop.f32.mrb[0].mxu0
    %v1282 = vadd.f32 %v542, %v1281
    %v1283 = vpop.f32.mrb[0].mxu0
    %1284 = vmatprep.mubr.bf16.mxu0 0
    %1285 = vmatmul.mubr.bf16.gmra.mrb[0].mxu0 %v1219
    %v1286 = vpop.f32.mrb[0].mxu0
    %v1287 = vadd.f32 %v543, %v1286
    %v1288 = vpop.f32.mrb[0].mxu0
    %v1289 = vpop.f32.mrb[0].mxu0
    %v1290 = vadd.f32 %v544, %v1289
    %v1291 = vpop.f32.mrb[0].mxu0
    %1292 = vmatprep.mubr.bf16.mxu0 0
    %1293 = vmatmul.mubr.bf16.gmra.mrb[0].mxu0 %v1222
    %v1294 = vpop.f32.mrb[0].mxu0
    %v1295 = vadd.f32 %v545, %v1294
    %v1296 = vpop.f32.mrb[0].mxu0
    %v1297 = vpop.f32.mrb[0].mxu0
    %v1298 = vadd.f32 %v546, %v1297
    %v1299 = vpop.f32.mrb[0].mxu0
    %1300 = vdwg.mxu0
    %v1301 = vsel %vm583, %v1271, -inf
    %1302 = vmax.xlane.f32.xlu0 %v1301
    %v1303 = vpop.xlane.xlu0 %1302
    %v1304 = vsel %vm583, %v1274, -inf
    %1305 = vmax.xlane.f32.xlu0 %v1304
    %v1306 = vpop.xlane.xlu0 %1305
    %v1307 = vsel %vm583, %v1279, -inf
    %1308 = vmax.xlane.f32.xlu0 %v1307
    %v1309 = vpop.xlane.xlu0 %1308
    %v1310 = vsel %vm583, %v1282, -inf
    %1311 = vmax.xlane.f32.xlu0 %v1310
    %v1312 = vpop.xlane.xlu0 %1311
    %v1313 = vsel %vm583, %v1287, -inf
    %1314 = vmax.xlane.f32.xlu0 %v1313
    %v1315 = vpop.xlane.xlu0 %1314
    %v1316 = vsel %vm583, %v1290, -inf
    %1317 = vmax.xlane.f32.xlu0 %v1316
    %v1318 = vpop.xlane.xlu0 %1317
    %v1319 = vsel %vm583, %v1295, -inf
    %1320 = vmax.xlane.f32.xlu0 %v1319
    %v1321 = vpop.xlane.xlu0 %1320
    %v1322 = vsel %vm583, %v1298, -inf
    %1323 = vmax.xlane.f32.xlu0 %v1322
    %v1324 = vpop.xlane.xlu0 %1323
    %v1325 = vsub.f32 %v1271, %v1303
    %v1326 = vsub.f32 %v1274, %v1306
    %v1327 = vsub.f32 %v1279, %v1309
    %v1328 = vsub.f32 %v1282, %v1312
    %v1329 = vsub.f32 %v1287, %v1315
    %v1330 = vsub.f32 %v1290, %v1318
    %v1331 = vsub.f32 %v1295, %v1321
    %v1332 = vsub.f32 %v1298, %v1324
    %v1333 = vmul.f32 %v1325, 1.442695
    %v1334 = vpow.pop %v1333
    %v1335 = vmul.f32 %v1326, 1.442695
    %v1336 = vpow.pop %v1335
    %v1337 = vmul.f32 %v1327, 1.442695
    %v1338 = vpow.pop %v1337
    %v1339 = vmul.f32 %v1328, 1.442695
    %v1340 = vpow.pop %v1339
    %v1341 = vmul.f32 %v1329, 1.442695
    %v1342 = vpow.pop %v1341
    %v1343 = vmul.f32 %v1330, 1.442695
    %v1344 = vpow.pop %v1343
    %v1345 = vmul.f32 %v1331, 1.442695
    %v1346 = vpow.pop %v1345
    %v1347 = vmul.f32 %v1332, 1.442695
    %v1348 = vpow.pop %v1347
    %v1349 = vsel %vm583, %v1334, 0.0
    %1350 = vadd.xlane.f32.xlu0 %v1349
    %v1351 = vpop.xlane.xlu0 %1350
    %v1352 = vsel %vm583, %v1336, 0.0
    %1353 = vadd.xlane.f32.xlu0 %v1352
    %v1354 = vpop.xlane.xlu0 %1353
    %v1355 = vsel %vm583, %v1338, 0.0
    %1356 = vadd.xlane.f32.xlu0 %v1355
    %v1357 = vpop.xlane.xlu0 %1356
    %v1358 = vsel %vm583, %v1340, 0.0
    %1359 = vadd.xlane.f32.xlu0 %v1358
    %v1360 = vpop.xlane.xlu0 %1359
    %v1361 = vsel %vm583, %v1342, 0.0
    %1362 = vadd.xlane.f32.xlu0 %v1361
    %v1363 = vpop.xlane.xlu0 %1362
    %v1364 = vsel %vm583, %v1344, 0.0
    %1365 = vadd.xlane.f32.xlu0 %v1364
    %v1366 = vpop.xlane.xlu0 %1365
    %v1367 = vsel %vm583, %v1346, 0.0
    %1368 = vadd.xlane.f32.xlu0 %v1367
    %v1369 = vpop.xlane.xlu0 %1368
    %v1370 = vsel %vm583, %v1348, 0.0
    %1371 = vadd.xlane.f32.xlu0 %v1370
    %v1372 = vpop.xlane.xlu0 %1371
    %v1373 = vrcp.pop %v1351
    %v1374 = vrcp.pop %v1354
    %v1375 = vrcp.pop %v1357
    %v1376 = vrcp.pop %v1360
    %v1377 = vrcp.pop %v1363
    %v1378 = vrcp.pop %v1366
    %v1379 = vrcp.pop %v1369
    %v1380 = vrcp.pop %v1372
    %v1381 = vmul.f32 %v1334, %v1373
    %v1382 = vmul.f32 %v1336, %v1374
    %v1383 = vmul.f32 %v1338, %v1375
    %v1384 = vmul.f32 %v1340, %v1376
    %v1385 = vmul.f32 %v1342, %v1377
    %v1386 = vmul.f32 %v1344, %v1378
    %v1387 = vmul.f32 %v1346, %v1379
    %v1388 = vmul.f32 %v1348, %v1380
    %v1389 = vpack.c.bf16 %v1382, %v1381
    %v1390 = vpack.c.bf16 %v1384, %v1383
    %v1391 = vpack.c.bf16 %v1386, %v1385
    %v1392 = vpack.c.bf16 %v1388, %v1387
    %1397 = vrot.lane.b32.xlu0 %v1184, 64
    %v1398 = vpop.permute.xlu0 %1397
    %1399 = vrot.lane.b32.xlu0 %v1185, 64
    %v1400 = vpop.permute.xlu0 %1399
    %1401 = vrot.lane.b32.xlu0 %v1186, 64
    %v1402 = vpop.permute.xlu0 %1401
    %1403 = vrot.lane.b32.xlu0 %v1187, 64
    %v1404 = vpop.permute.xlu0 %1403
    %v1410 = vsel %vm583, %v1389, 0
    %v1413 = vsel %vm583, %v1390, 0
    %v1416 = vsel %vm583, %v1391, 0
    %v1419 = vsel %vm583, %v1392, 0
    %1421 = vmatprep.subr.bf16.mxu0 0
    %1422 = vmatpush1.bf16.msra.mxu0 %v1398
    %1423 = vmatprep.subr.bf16.mxu0 0
    %1424 = vmatpush1.bf16.msra.mxu0 %v1400
    %1425 = vmatprep.subr.bf16.mxu0 0
    %1426 = vmatpush1.bf16.msra.mxu0 %v1402
    %1427 = vmatprep.subr.bf16.mxu0 0
    %1428 = vmatpush1.bf16.msra.mxu0 %v1404
    %1429 = vmatprep.subr.bf16.mxu0 0
    %1430 = vmatpush1.bf16.msra.mxu0 0
    %1431 = vmatprep.subr.bf16.mxu0 0
    %1432 = vmatpush1.bf16.msra.mxu0 0
    %1433 = vmatprep.subr.bf16.mxu0 0
    %1434 = vmatpush1.bf16.msra.mxu0 0
    %1435 = vmatprep.subr.bf16.mxu0 0
    %1436 = vmatpush1.bf16.msra.mxu0 0
    %1437 = vmatprep.subr.bf16.mxu0 0
    %1438 = vmatpush1.bf16.msra.mxu0 0
    %1439 = vmatprep.subr.bf16.mxu0 0
    %1440 = vmatpush1.bf16.msra.mxu0 0
    %1441 = vmatprep.subr.bf16.mxu0 0
    %1442 = vmatpush1.bf16.msra.mxu0 0
    %1443 = vmatprep.subr.bf16.mxu0 0
    %1444 = vmatpush1.bf16.msra.mxu0 0
    %1445 = vmatprep.subr.bf16.mxu0 0
    %1446 = vmatpush1.bf16.msra.mxu0 0
    %1447 = vmatprep.subr.bf16.mxu0 0
    %1448 = vmatpush1.bf16.msra.mxu0 0
    %1449 = vmatprep.subr.bf16.mxu0 0
    %1450 = vmatpush1.bf16.msra.mxu0 0
    %1451 = vmatprep.subr.bf16.mxu0 0
    %1452 = vmatpush1.bf16.msra.mxu0 0
    %1453 = vmatprep.mubr.bf16.mxu0 0
    %1454 = vmatmul.mubr.bf16.gmra.mrb[0].mxu0 %v1410
    %v1455 = vpop.f32.mrb[0].mxu0
    %v1456 = vadd.f32 0.0, %v1455
    %v1457 = vpop.f32.mrb[0].mxu0
    %v1458 = vpop.f32.mrb[0].mxu0
    %v1459 = vadd.f32 0.0, %v1458
    %v1460 = vpop.f32.mrb[0].mxu0
    %1461 = vmatprep.mubr.bf16.mxu0 0
    %1462 = vmatmul.mubr.bf16.gmra.mrb[0].mxu0 %v1413
    %v1463 = vpop.f32.mrb[0].mxu0
    %v1464 = vadd.f32 0.0, %v1463
    %v1465 = vpop.f32.mrb[0].mxu0
    %v1466 = vpop.f32.mrb[0].mxu0
    %v1467 = vadd.f32 0.0, %v1466
    %v1468 = vpop.f32.mrb[0].mxu0
    %1469 = vmatprep.mubr.bf16.mxu0 0
    %1470 = vmatmul.mubr.bf16.gmra.mrb[0].mxu0 %v1416
    %v1471 = vpop.f32.mrb[0].mxu0
    %v1472 = vadd.f32 0.0, %v1471
    %v1473 = vpop.f32.mrb[0].mxu0
    %v1474 = vpop.f32.mrb[0].mxu0
    %v1475 = vadd.f32 0.0, %v1474
    %v1476 = vpop.f32.mrb[0].mxu0
    %1477 = vmatprep.mubr.bf16.mxu0 0
    %1478 = vmatmul.mubr.bf16.gmra.mrb[0].mxu0 %v1419
    %v1479 = vpop.f32.mrb[0].mxu0
    %v1480 = vadd.f32 0.0, %v1479
    %v1481 = vpop.f32.mrb[0].mxu0
    %v1482 = vpop.f32.mrb[0].mxu0
    %v1483 = vadd.f32 0.0, %v1482
    %v1484 = vpop.f32.mrb[0].mxu0
    %1485 = vdwg.mxu0
    %1494 = vrot.lane.b32.xlu0 %v1456, 64
    %v1495 = vpop.permute.xlu0 %1494
    %1496 = vrot.lane.b32.xlu0 %v1459, 64
    %v1497 = vpop.permute.xlu0 %1496
    %1498 = vrot.lane.b32.xlu0 %v1464, 64
    %v1499 = vpop.permute.xlu0 %1498
    %1500 = vrot.lane.b32.xlu0 %v1467, 64
    %v1501 = vpop.permute.xlu0 %1500
    %1502 = vrot.lane.b32.xlu0 %v1472, 64
    %v1503 = vpop.permute.xlu0 %1502
    %1504 = vrot.lane.b32.xlu0 %v1475, 64
    %v1505 = vpop.permute.xlu0 %1504
    %1506 = vrot.lane.b32.xlu0 %v1480, 64
    %v1507 = vpop.permute.xlu0 %1506
    %1508 = vrot.lane.b32.xlu0 %v1483, 64
    %v1509 = vpop.permute.xlu0 %1508
    %vm1518 = vcmask 1048064
    %1519 = vst.msk [vmem:[#allocation3] sm:$0xff] %vm1518, %v1495
    %1520 = vst.msk [vmem:[#allocation3 + $0x8] sm:$0xff] %vm1518, %v1497
    %1521 = vst.msk [vmem:[#allocation3 + $0x10] sm:$0xff] %vm1518, %v1499
    %1522 = vst.msk [vmem:[#allocation3 + $0x18] sm:$0xff] %vm1518, %v1501
    %1523 = vst.msk [vmem:[#allocation3 + $0x20] sm:$0xff] %vm1518, %v1503
    %1524 = vst.msk [vmem:[#allocation3 + $0x28] sm:$0xff] %vm1518, %v1505
    %1525 = vst.msk [vmem:[#allocation3 + $0x30] sm:$0xff] %vm1518, %v1507
    %1526 = vst.msk [vmem:[#allocation3 + $0x38] sm:$0xff] %vm1518, %v1509
    %v1527 = vld [vmem:[#allocation2 + $0xc0] sm:$0xff]
    %v1528 = vld [vmem:[#allocation2 + $0xd8] sm:$0xff]
    %v1529 = vld [vmem:[#allocation2 + $0xf0] sm:$0xff]
    %v1530 = vld [vmem:[#allocation2 + $0x108] sm:$0xff]
    %v1531 = vld [vmem:[#allocation2 + $0x120] sm:$0xff]
    %v1532 = vld [vmem:[#allocation2 + $0x138] sm:$0xff]
    %v1533 = vld [vmem:[#allocation2 + $0x150] sm:$0xff]
    %v1534 = vld [vmem:[#allocation2 + $0x168] sm:$0xff]
    %v1535 = vpack.c.bf16 %v1528, %v1527
    %v1536 = vpack.c.bf16 %v1530, %v1529
    %v1537 = vpack.c.bf16 %v1532, %v1531
    %v1538 = vpack.c.bf16 %v1534, %v1533
    %v1539 = vld [vmem:[#allocation2 + $0xc8] sm:$0xff]
    %v1540 = vld [vmem:[#allocation2 + $0xe0] sm:$0xff]
    %v1541 = vld [vmem:[#allocation2 + $0xf8] sm:$0xff]
    %v1542 = vld [vmem:[#allocation2 + $0x110] sm:$0xff]
    %v1543 = vld [vmem:[#allocation2 + $0x128] sm:$0xff]
    %v1544 = vld [vmem:[#allocation2 + $0x140] sm:$0xff]
    %v1545 = vld [vmem:[#allocation2 + $0x158] sm:$0xff]
    %v1546 = vld [vmem:[#allocation2 + $0x170] sm:$0xff]
    %v1547 = vpack.c.bf16 %v1540, %v1539
    %v1548 = vpack.c.bf16 %v1542, %v1541
    %v1549 = vpack.c.bf16 %v1544, %v1543
    %v1550 = vpack.c.bf16 %v1546, %v1545
    %v1551 = vld [vmem:[#allocation2 + $0xd0] sm:$0xff]
    %v1552 = vld [vmem:[#allocation2 + $0xe8] sm:$0xff]
    %v1553 = vld [vmem:[#allocation2 + $0x100] sm:$0xff]
    %v1554 = vld [vmem:[#allocation2 + $0x118] sm:$0xff]
    %v1555 = vld [vmem:[#allocation2 + $0x130] sm:$0xff]
    %v1556 = vld [vmem:[#allocation2 + $0x148] sm:$0xff]
    %v1557 = vld [vmem:[#allocation2 + $0x160] sm:$0xff]
    %v1558 = vld [vmem:[#allocation2 + $0x178] sm:$0xff]
    %v1559 = vpack.c.bf16 %v1552, %v1551
    %v1560 = vpack.c.bf16 %v1554, %v1553
    %v1561 = vpack.c.bf16 %v1556, %v1555
    %v1562 = vpack.c.bf16 %v1558, %v1557
    %1567 = vrot.lane.b32.xlu0 %v1535, 64
    %v1568 = vpop.permute.xlu0 %1567
    %1569 = vrot.lane.b32.xlu0 %v1536, 64
    %v1570 = vpop.permute.xlu0 %1569
    %1571 = vrot.lane.b32.xlu0 %v1537, 64
    %v1572 = vpop.permute.xlu0 %1571
    %1573 = vrot.lane.b32.xlu0 %v1538, 64
    %v1574 = vpop.permute.xlu0 %1573
    %1579 = vrot.lane.b32.xlu0 %v1547, 64
    %v1580 = vpop.permute.xlu0 %1579
    %1581 = vrot.lane.b32.xlu0 %v1548, 64
    %v1582 = vpop.permute.xlu0 %1581
    %1583 = vrot.lane.b32.xlu0 %v1549, 64
    %v1584 = vpop.permute.xlu0 %1583
    %1585 = vrot.lane.b32.xlu0 %v1550, 64
    %v1586 = vpop.permute.xlu0 %1585
    %v1588 = vsel %vm583, %v1568, 0
    %v1591 = vsel %vm583, %v1570, 0
    %v1594 = vsel %vm583, %v1572, 0
    %v1597 = vsel %vm583, %v1574, 0
    %v1600 = vsel %vm583, %v1580, 0
    %v1603 = vsel %vm583, %v1582, 0
    %v1606 = vsel %vm583, %v1584, 0
    %v1609 = vsel %vm583, %v1586, 0
    %1611 = vmatprep.subr.bf16.mxu0 0
    %1612 = vmatpush1.bf16.xpose.msra.mxu0 %v1600
    %1613 = vmatprep.subr.bf16.mxu0 0
    %1614 = vmatpush1.bf16.xpose.msra.mxu0 %v1603
    %1615 = vmatprep.subr.bf16.mxu0 0
    %1616 = vmatpush1.bf16.xpose.msra.mxu0 %v1606
    %1617 = vmatprep.subr.bf16.mxu0 0
    %1618 = vmatpush1.bf16.xpose.msra.mxu0 %v1609
    %1619 = vmatprep.subr.bf16.mxu0 0
    %1620 = vmatpush1.bf16.xpose.msra.mxu0 0
    %1621 = vmatprep.subr.bf16.mxu0 0
    %1622 = vmatpush1.bf16.xpose.msra.mxu0 0
    %1623 = vmatprep.subr.bf16.mxu0 0
    %1624 = vmatpush1.bf16.xpose.msra.mxu0 0
    %1625 = vmatprep.subr.bf16.mxu0 0
    %1626 = vmatpush1.bf16.xpose.msra.mxu0 0
    %1627 = vmatprep.subr.bf16.mxu0 0
    %1628 = vmatpush1.bf16.xpose.msra.mxu0 0
    %1629 = vmatprep.subr.bf16.mxu0 0
    %1630 = vmatpush1.bf16.xpose.msra.mxu0 0
    %1631 = vmatprep.subr.bf16.mxu0 0
    %1632 = vmatpush1.bf16.xpose.msra.mxu0 0
    %1633 = vmatprep.subr.bf16.mxu0 0
    %1634 = vmatpush1.bf16.xpose.msra.mxu0 0
    %1635 = vmatprep.subr.bf16.mxu0 0
    %1636 = vmatpush1.bf16.xpose.msra.mxu0 0
    %1637 = vmatprep.subr.bf16.mxu0 0
    %1638 = vmatpush1.bf16.xpose.msra.mxu0 0
    %1639 = vmatprep.subr.bf16.mxu0 0
    %1640 = vmatpush1.bf16.xpose.msra.mxu0 0
    %1641 = vmatprep.subr.bf16.mxu0 0
    %1642 = vmatpush1.bf16.xpose.msra.mxu0 0
    %1643 = vmatprep.mubr.bf16.mxu0 0
    %1644 = vmatmul.mubr.bf16.gmra.mrb[0].mxu0 %v1588
    %v1645 = vpop.f32.mrb[0].mxu0
    %v1646 = vadd.f32 %v539, %v1645
    %v1647 = vpop.f32.mrb[0].mxu0
    %v1648 = vpop.f32.mrb[0].mxu0
    %v1649 = vadd.f32 %v540, %v1648
    %v1650 = vpop.f32.mrb[0].mxu0
    %1651 = vmatprep.mubr.bf16.mxu0 0
    %1652 = vmatmul.mubr.bf16.gmra.mrb[0].mxu0 %v1591
    %v1653 = vpop.f32.mrb[0].mxu0
    %v1654 = vadd.f32 %v541, %v1653
    %v1655 = vpop.f32.mrb[0].mxu0
    %v1656 = vpop.f32.mrb[0].mxu0
    %v1657 = vadd.f32 %v542, %v1656
    %v1658 = vpop.f32.mrb[0].mxu0
    %1659 = vmatprep.mubr.bf16.mxu0 0
    %1660 = vmatmul.mubr.bf16.gmra.mrb[0].mxu0 %v1594
    %v1661 = vpop.f32.mrb[0].mxu0
    %v1662 = vadd.f32 %v543, %v1661
    %v1663 = vpop.f32.mrb[0].mxu0
    %v1664 = vpop.f32.mrb[0].mxu0
    %v1665 = vadd.f32 %v544, %v1664
    %v1666 = vpop.f32.mrb[0].mxu0
    %1667 = vmatprep.mubr.bf16.mxu0 0
    %1668 = vmatmul.mubr.bf16.gmra.mrb[0].mxu0 %v1597
    %v1669 = vpop.f32.mrb[0].mxu0
    %v1670 = vadd.f32 %v545, %v1669
    %v1671 = vpop.f32.mrb[0].mxu0
    %v1672 = vpop.f32.mrb[0].mxu0
    %v1673 = vadd.f32 %v546, %v1672
    %v1674 = vpop.f32.mrb[0].mxu0
    %1675 = vdwg.mxu0
    %v1676 = vsel %vm583, %v1646, -inf
    %1677 = vmax.xlane.f32.xlu0 %v1676
    %v1678 = vpop.xlane.xlu0 %1677
    %v1679 = vsel %vm583, %v1649, -inf
    %1680 = vmax.xlane.f32.xlu0 %v1679
    %v1681 = vpop.xlane.xlu0 %1680
    %v1682 = vsel %vm583, %v1654, -inf
    %1683 = vmax.xlane.f32.xlu0 %v1682
    %v1684 = vpop.xlane.xlu0 %1683
    %v1685 = vsel %vm583, %v1657, -inf
    %1686 = vmax.xlane.f32.xlu0 %v1685
    %v1687 = vpop.xlane.xlu0 %1686
    %v1688 = vsel %vm583, %v1662, -inf
    %1689 = vmax.xlane.f32.xlu0 %v1688
    %v1690 = vpop.xlane.xlu0 %1689
    %v1691 = vsel %vm583, %v1665, -inf
    %1692 = vmax.xlane.f32.xlu0 %v1691
    %v1693 = vpop.xlane.xlu0 %1692
    %v1694 = vsel %vm583, %v1670, -inf
    %1695 = vmax.xlane.f32.xlu0 %v1694
    %v1696 = vpop.xlane.xlu0 %1695
    %v1697 = vsel %vm583, %v1673, -inf
    %1698 = vmax.xlane.f32.xlu0 %v1697
    %v1699 = vpop.xlane.xlu0 %1698
    %v1700 = vsub.f32 %v1646, %v1678
    %v1701 = vsub.f32 %v1649, %v1681
    %v1702 = vsub.f32 %v1654, %v1684
    %v1703 = vsub.f32 %v1657, %v1687
    %v1704 = vsub.f32 %v1662, %v1690
    %v1705 = vsub.f32 %v1665, %v1693
    %v1706 = vsub.f32 %v1670, %v1696
    %v1707 = vsub.f32 %v1673, %v1699
    %v1708 = vmul.f32 %v1700, 1.442695
    %v1709 = vpow.pop %v1708
    %v1710 = vmul.f32 %v1701, 1.442695
    %v1711 = vpow.pop %v1710
    %v1712 = vmul.f32 %v1702, 1.442695
    %v1713 = vpow.pop %v1712
    %v1714 = vmul.f32 %v1703, 1.442695
    %v1715 = vpow.pop %v1714
    %v1716 = vmul.f32 %v1704, 1.442695
    %v1717 = vpow.pop %v1716
    %v1718 = vmul.f32 %v1705, 1.442695
    %v1719 = vpow.pop %v1718
    %v1720 = vmul.f32 %v1706, 1.442695
    %v1721 = vpow.pop %v1720
    %v1722 = vmul.f32 %v1707, 1.442695
    %v1723 = vpow.pop %v1722
    %v1724 = vsel %vm583, %v1709, 0.0
    %1725 = vadd.xlane.f32.xlu0 %v1724
    %v1726 = vpop.xlane.xlu0 %1725
    %v1727 = vsel %vm583, %v1711, 0.0
    %1728 = vadd.xlane.f32.xlu0 %v1727
    %v1729 = vpop.xlane.xlu0 %1728
    %v1730 = vsel %vm583, %v1713, 0.0
    %1731 = vadd.xlane.f32.xlu0 %v1730
    %v1732 = vpop.xlane.xlu0 %1731
    %v1733 = vsel %vm583, %v1715, 0.0
    %1734 = vadd.xlane.f32.xlu0 %v1733
    %v1735 = vpop.xlane.xlu0 %1734
    %v1736 = vsel %vm583, %v1717, 0.0
    %1737 = vadd.xlane.f32.xlu0 %v1736
    %v1738 = vpop.xlane.xlu0 %1737
    %v1739 = vsel %vm583, %v1719, 0.0
    %1740 = vadd.xlane.f32.xlu0 %v1739
    %v1741 = vpop.xlane.xlu0 %1740
    %v1742 = vsel %vm583, %v1721, 0.0
    %1743 = vadd.xlane.f32.xlu0 %v1742
    %v1744 = vpop.xlane.xlu0 %1743
    %v1745 = vsel %vm583, %v1723, 0.0
    %1746 = vadd.xlane.f32.xlu0 %v1745
    %v1747 = vpop.xlane.xlu0 %1746
    %v1748 = vrcp.pop %v1726
    %v1749 = vrcp.pop %v1729
    %v1750 = vrcp.pop %v1732
    %v1751 = vrcp.pop %v1735
    %v1752 = vrcp.pop %v1738
    %v1753 = vrcp.pop %v1741
    %v1754 = vrcp.pop %v1744
    %v1755 = vrcp.pop %v1747
    %v1756 = vmul.f32 %v1709, %v1748
    %v1757 = vmul.f32 %v1711, %v1749
    %v1758 = vmul.f32 %v1713, %v1750
    %v1759 = vmul.f32 %v1715, %v1751
    %v1760 = vmul.f32 %v1717, %v1752
    %v1761 = vmul.f32 %v1719, %v1753
    %v1762 = vmul.f32 %v1721, %v1754
    %v1763 = vmul.f32 %v1723, %v1755
    %v1764 = vpack.c.bf16 %v1757, %v1756
    %v1765 = vpack.c.bf16 %v1759, %v1758
    %v1766 = vpack.c.bf16 %v1761, %v1760
    %v1767 = vpack.c.bf16 %v1763, %v1762
    %1772 = vrot.lane.b32.xlu0 %v1559, 64
    %v1773 = vpop.permute.xlu0 %1772
    %1774 = vrot.lane.b32.xlu0 %v1560, 64
    %v1775 = vpop.permute.xlu0 %1774
    %1776 = vrot.lane.b32.xlu0 %v1561, 64
    %v1777 = vpop.permute.xlu0 %1776
    %1778 = vrot.lane.b32.xlu0 %v1562, 64
    %v1779 = vpop.permute.xlu0 %1778
    %v1785 = vsel %vm583, %v1764, 0
    %v1788 = vsel %vm583, %v1765, 0
    %v1791 = vsel %vm583, %v1766, 0
    %v1794 = vsel %vm583, %v1767, 0
    %1796 = vmatprep.subr.bf16.mxu0 0
    %1797 = vmatpush1.bf16.msra.mxu0 %v1773
    %1798 = vmatprep.subr.bf16.mxu0 0
    %1799 = vmatpush1.bf16.msra.mxu0 %v1775
    %1800 = vmatprep.subr.bf16.mxu0 0
    %1801 = vmatpush1.bf16.msra.mxu0 %v1777
    %1802 = vmatprep.subr.bf16.mxu0 0
    %1803 = vmatpush1.bf16.msra.mxu0 %v1779
    %1804 = vmatprep.subr.bf16.mxu0 0
    %1805 = vmatpush1.bf16.msra.mxu0 0
    %1806 = vmatprep.subr.bf16.mxu0 0
    %1807 = vmatpush1.bf16.msra.mxu0 0
    %1808 = vmatprep.subr.bf16.mxu0 0
    %1809 = vmatpush1.bf16.msra.mxu0 0
    %1810 = vmatprep.subr.bf16.mxu0 0
    %1811 = vmatpush1.bf16.msra.mxu0 0
    %1812 = vmatprep.subr.bf16.mxu0 0
    %1813 = vmatpush1.bf16.msra.mxu0 0
    %1814 = vmatprep.subr.bf16.mxu0 0
    %1815 = vmatpush1.bf16.msra.mxu0 0
    %1816 = vmatprep.subr.bf16.mxu0 0
    %1817 = vmatpush1.bf16.msra.mxu0 0
    %1818 = vmatprep.subr.bf16.mxu0 0
    %1819 = vmatpush1.bf16.msra.mxu0 0
    %1820 = vmatprep.subr.bf16.mxu0 0
    %1821 = vmatpush1.bf16.msra.mxu0 0
    %1822 = vmatprep.subr.bf16.mxu0 0
    %1823 = vmatpush1.bf16.msra.mxu0 0
    %1824 = vmatprep.subr.bf16.mxu0 0
    %1825 = vmatpush1.bf16.msra.mxu0 0
    %1826 = vmatprep.subr.bf16.mxu0 0
    %1827 = vmatpush1.bf16.msra.mxu0 0
    %1828 = vmatprep.mubr.bf16.mxu0 0
    %1829 = vmatmul.mubr.bf16.gmra.mrb[0].mxu0 %v1785
    %v1830 = vpop.f32.mrb[0].mxu0
    %v1831 = vadd.f32 0.0, %v1830
    %v1832 = vpop.f32.mrb[0].mxu0
    %v1833 = vpop.f32.mrb[0].mxu0
    %v1834 = vadd.f32 0.0, %v1833
    %v1835 = vpop.f32.mrb[0].mxu0
    %1836 = vmatprep.mubr.bf16.mxu0 0
    %1837 = vmatmul.mubr.bf16.gmra.mrb[0].mxu0 %v1788
    %v1838 = vpop.f32.mrb[0].mxu0
    %v1839 = vadd.f32 0.0, %v1838
    %v1840 = vpop.f32.mrb[0].mxu0
    %v1841 = vpop.f32.mrb[0].mxu0
    %v1842 = vadd.f32 0.0, %v1841
    %v1843 = vpop.f32.mrb[0].mxu0
    %1844 = vmatprep.mubr.bf16.mxu0 0
    %1845 = vmatmul.mubr.bf16.gmra.mrb[0].mxu0 %v1791
    %v1846 = vpop.f32.mrb[0].mxu0
    %v1847 = vadd.f32 0.0, %v1846
    %v1848 = vpop.f32.mrb[0].mxu0
    %v1849 = vpop.f32.mrb[0].mxu0
    %v1850 = vadd.f32 0.0, %v1849
    %v1851 = vpop.f32.mrb[0].mxu0
    %1852 = vmatprep.mubr.bf16.mxu0 0
    %1853 = vmatmul.mubr.bf16.gmra.mrb[0].mxu0 %v1794
    %v1854 = vpop.f32.mrb[0].mxu0
    %v1855 = vadd.f32 0.0, %v1854
    %v1856 = vpop.f32.mrb[0].mxu0
    %v1857 = vpop.f32.mrb[0].mxu0
    %v1858 = vadd.f32 0.0, %v1857
    %v1859 = vpop.f32.mrb[0].mxu0
    %1860 = vdwg.mxu0
    %1869 = vrot.lane.b32.xlu0 %v1831, 64
    %v1870 = vpop.permute.xlu0 %1869
    %1871 = vrot.lane.b32.xlu0 %v1834, 64
    %v1872 = vpop.permute.xlu0 %1871
    %1873 = vrot.lane.b32.xlu0 %v1839, 64
    %v1874 = vpop.permute.xlu0 %1873
    %1875 = vrot.lane.b32.xlu0 %v1842, 64
    %v1876 = vpop.permute.xlu0 %1875
    %1877 = vrot.lane.b32.xlu0 %v1847, 64
    %v1878 = vpop.permute.xlu0 %1877
    %1879 = vrot.lane.b32.xlu0 %v1850, 64
    %v1880 = vpop.permute.xlu0 %1879
    %1881 = vrot.lane.b32.xlu0 %v1855, 64
    %v1882 = vpop.permute.xlu0 %1881
    %1883 = vrot.lane.b32.xlu0 %v1858, 64
    %v1884 = vpop.permute.xlu0 %1883
    %1893 = vst.msk [vmem:[#allocation3 + $0x40] sm:$0xff] %vm1518, %v1870
    %1894 = vst.msk [vmem:[#allocation3 + $0x48] sm:$0xff] %vm1518, %v1872
    %1895 = vst.msk [vmem:[#allocation3 + $0x50] sm:$0xff] %vm1518, %v1874
    %1896 = vst.msk [vmem:[#allocation3 + $0x58] sm:$0xff] %vm1518, %v1876
    %1897 = vst.msk [vmem:[#allocation3 + $0x60] sm:$0xff] %vm1518, %v1878
    %1898 = vst.msk [vmem:[#allocation3 + $0x68] sm:$0xff] %vm1518, %v1880
    %1899 = vst.msk [vmem:[#allocation3 + $0x70] sm:$0xff] %vm1518, %v1882
    %1900 = vst.msk [vmem:[#allocation3 + $0x78] sm:$0xff] %vm1518, %v1884
    %v1901 = vld [vmem:[#allocation3] sm:$0xff]
    %v1902 = vld [vmem:[#allocation3 + $0x8] sm:$0xff]
    %v1903 = vld [vmem:[#allocation3 + $0x10] sm:$0xff]
    %v1904 = vld [vmem:[#allocation3 + $0x18] sm:$0xff]
    %v1905 = vld [vmem:[#allocation3 + $0x20] sm:$0xff]
    %v1906 = vld [vmem:[#allocation3 + $0x28] sm:$0xff]
    %v1907 = vld [vmem:[#allocation3 + $0x30] sm:$0xff]
    %v1908 = vld [vmem:[#allocation3 + $0x38] sm:$0xff]
    %v1909 = vld [vmem:[#allocation3 + $0x40] sm:$0xff]
    %v1910 = vld [vmem:[#allocation3 + $0x48] sm:$0xff]
    %v1911 = vld [vmem:[#allocation3 + $0x50] sm:$0xff]
    %v1912 = vld [vmem:[#allocation3 + $0x58] sm:$0xff]
    %v1913 = vld [vmem:[#allocation3 + $0x60] sm:$0xff]
    %v1914 = vld [vmem:[#allocation3 + $0x68] sm:$0xff]
    %v1915 = vld [vmem:[#allocation3 + $0x70] sm:$0xff]
    %v1916 = vld [vmem:[#allocation3 + $0x78] sm:$0xff]
    %v1917 = vpack.c.bf16 %v1902, %v1901
    %v1918 = vpack.c.bf16 %v1904, %v1903
    %v1919 = vpack.c.bf16 %v1906, %v1905
    %v1920 = vpack.c.bf16 %v1908, %v1907
    %v1921 = vpack.c.bf16 %v1910, %v1909
    %v1922 = vpack.c.bf16 %v1912, %v1911
    %v1923 = vpack.c.bf16 %v1914, %v1913
    %v1924 = vpack.c.bf16 %v1916, %v1915
    %v1925 = vld [vmem:[#allocation9] sm:$0xf]
    %v1926 = vld [vmem:[#allocation9 + $0x4] sm:$0xf]
    %v1927 = vld [vmem:[#allocation9 + $0x8] sm:$0xf]
    %v1928 = vld [vmem:[#allocation9 + $0xc] sm:$0xf]
    %v1929 = vld [vmem:[#allocation9 + $0x10] sm:$0xf]
    %v1930 = vld [vmem:[#allocation9 + $0x14] sm:$0xf]
    %v1931 = vld [vmem:[#allocation9 + $0x18] sm:$0xf]
    %v1932 = vld [vmem:[#allocation9 + $0x1c] sm:$0xf]
    %v1933 = vld [vmem:[#allocation9 + $0x20] sm:$0xf]
    %v1934 = vld [vmem:[#allocation9 + $0x24] sm:$0xf]
    %v1935 = vld [vmem:[#allocation9 + $0x28] sm:$0xf]
    %v1936 = vld [vmem:[#allocation9 + $0x2c] sm:$0xf]
    %v1937 = vld [vmem:[#allocation9 + $0x30] sm:$0xf]
    %v1938 = vld [vmem:[#allocation9 + $0x34] sm:$0xf]
    %v1939 = vld [vmem:[#allocation9 + $0x38] sm:$0xf]
    %v1940 = vld [vmem:[#allocation9 + $0x3c] sm:$0xf]
    %v1941 = vld [vmem:[%s4] sm:$0x1]
    %v1943 = vlaneseq
    %v1944 = vshrl.u32 %v1943, 7
    %v1945 = vsub.s32 0, %v1944
    %v1946 = vrot.slane %v1941, %v1945
    %v1964 = vunpack.c.l.b16 %v1925
    %v1965 = vunpack.c.l.b16 %v1926
    %v1966 = vunpack.c.l.b16 %v1927
    %v1967 = vunpack.c.l.b16 %v1928
    %v1968 = vunpack.c.l.b16 %v1929
    %v1969 = vunpack.c.l.b16 %v1930
    %v1970 = vunpack.c.l.b16 %v1931
    %v1971 = vunpack.c.l.b16 %v1932
    %v1972 = vunpack.c.l.b16 %v1933
    %v1973 = vunpack.c.l.b16 %v1934
    %v1974 = vunpack.c.l.b16 %v1935
    %v1975 = vunpack.c.l.b16 %v1936
    %v1976 = vunpack.c.l.b16 %v1937
    %v1977 = vunpack.c.l.b16 %v1938
    %v1978 = vunpack.c.l.b16 %v1939
    %v1979 = vunpack.c.l.b16 %v1940
    %v1980 = vpack.c.b16 %v1965, %v1964
    %v1981 = vpack.c.b16 %v1967, %v1966
    %v1982 = vpack.c.b16 %v1969, %v1968
    %v1983 = vpack.c.b16 %v1971, %v1970
    %v1984 = vpack.c.b16 %v1973, %v1972
    %v1985 = vpack.c.b16 %v1975, %v1974
    %v1986 = vpack.c.b16 %v1977, %v1976
    %v1987 = vpack.c.b16 %v1979, %v1978
    %1996 = vmatprep.subr.bf16.mxu0 0
    %1997 = vmatpush1.bf16.msra.mxu0 %v1980
    %1998 = vmatprep.subr.bf16.mxu0 0
    %1999 = vmatpush1.bf16.msra.mxu0 %v1981
    %2000 = vmatprep.subr.bf16.mxu0 0
    %2001 = vmatpush1.bf16.msra.mxu0 %v1982
    %2002 = vmatprep.subr.bf16.mxu0 0
    %2003 = vmatpush1.bf16.msra.mxu0 %v1983
    %2004 = vmatprep.subr.bf16.mxu0 0
    %2005 = vmatpush1.bf16.msra.mxu0 %v1984
    %2006 = vmatprep.subr.bf16.mxu0 0
    %2007 = vmatpush1.bf16.msra.mxu0 %v1985
    %2008 = vmatprep.subr.bf16.mxu0 0
    %2009 = vmatpush1.bf16.msra.mxu0 %v1986
    %2010 = vmatprep.subr.bf16.mxu0 0
    %2011 = vmatpush1.bf16.msra.mxu0 %v1987
    %2012 = vmatprep.subr.bf16.mxu0 0
    %2013 = vmatpush1.bf16.msra.mxu0 0
    %2014 = vmatprep.subr.bf16.mxu0 0
    %2015 = vmatpush1.bf16.msra.mxu0 0
    %2016 = vmatprep.subr.bf16.mxu0 0
    %2017 = vmatpush1.bf16.msra.mxu0 0
    %2018 = vmatprep.subr.bf16.mxu0 0
    %2019 = vmatpush1.bf16.msra.mxu0 0
    %2020 = vmatprep.subr.bf16.mxu0 0
    %2021 = vmatpush1.bf16.msra.mxu0 0
    %2022 = vmatprep.subr.bf16.mxu0 0
    %2023 = vmatpush1.bf16.msra.mxu0 0
    %2024 = vmatprep.subr.bf16.mxu0 0
    %2025 = vmatpush1.bf16.msra.mxu0 0
    %2026 = vmatprep.subr.bf16.mxu0 0
    %2027 = vmatpush1.bf16.msra.mxu0 0
    %2028 = vmatprep.mubr.bf16.mxu0 0
    %2029 = vmatmul.mubr.bf16.gmra.mrb[0].mxu0 %v1917
    %v2030 = vpop.f32.mrb[0].mxu0
    %v2031 = vadd.f32 %v1946, %v2030
    %v2032 = vpop.f32.mrb[0].mxu0
    %v2033 = vpop.f32.mrb[0].mxu0
    %v2034 = vadd.f32 %v1946, %v2033
    %v2035 = vpop.f32.mrb[0].mxu0
    %2036 = vmatprep.mubr.bf16.mxu0 0
    %2037 = vmatmul.mubr.bf16.gmra.mrb[0].mxu0 %v1918
    %v2038 = vpop.f32.mrb[0].mxu0
    %v2039 = vadd.f32 %v1946, %v2038
    %v2040 = vpop.f32.mrb[0].mxu0
    %v2041 = vpop.f32.mrb[0].mxu0
    %v2042 = vadd.f32 %v1946, %v2041
    %v2043 = vpop.f32.mrb[0].mxu0
    %2044 = vmatprep.mubr.bf16.mxu0 0
    %2045 = vmatmul.mubr.bf16.gmra.mrb[0].mxu0 %v1919
    %v2046 = vpop.f32.mrb[0].mxu0
    %v2047 = vadd.f32 %v1946, %v2046
    %v2048 = vpop.f32.mrb[0].mxu0
    %v2049 = vpop.f32.mrb[0].mxu0
    %v2050 = vadd.f32 %v1946, %v2049
    %v2051 = vpop.f32.mrb[0].mxu0
    %2052 = vmatprep.mubr.bf16.mxu0 0
    %2053 = vmatmul.mubr.bf16.gmra.mrb[0].mxu0 %v1920
    %v2054 = vpop.f32.mrb[0].mxu0
    %v2055 = vadd.f32 %v1946, %v2054
    %v2056 = vpop.f32.mrb[0].mxu0
    %v2057 = vpop.f32.mrb[0].mxu0
    %v2058 = vadd.f32 %v1946, %v2057
    %v2059 = vpop.f32.mrb[0].mxu0
    %2060 = vmatprep.mubr.bf16.mxu0 0
    %2061 = vmatmul.mubr.bf16.gmra.mrb[0].mxu0 %v1921
    %v2062 = vpop.f32.mrb[0].mxu0
    %v2063 = vadd.f32 %v1946, %v2062
    %v2064 = vpop.f32.mrb[0].mxu0
    %v2065 = vpop.f32.mrb[0].mxu0
    %v2066 = vadd.f32 %v1946, %v2065
    %v2067 = vpop.f32.mrb[0].mxu0
    %2068 = vmatprep.mubr.bf16.mxu0 0
    %2069 = vmatmul.mubr.bf16.gmra.mrb[0].mxu0 %v1922
    %v2070 = vpop.f32.mrb[0].mxu0
    %v2071 = vadd.f32 %v1946, %v2070
    %v2072 = vpop.f32.mrb[0].mxu0
    %v2073 = vpop.f32.mrb[0].mxu0
    %v2074 = vadd.f32 %v1946, %v2073
    %v2075 = vpop.f32.mrb[0].mxu0
    %2076 = vmatprep.mubr.bf16.mxu0 0
    %2077 = vmatmul.mubr.bf16.gmra.mrb[0].mxu0 %v1923
    %v2078 = vpop.f32.mrb[0].mxu0
    %v2079 = vadd.f32 %v1946, %v2078
    %v2080 = vpop.f32.mrb[0].mxu0
    %v2081 = vpop.f32.mrb[0].mxu0
    %v2082 = vadd.f32 %v1946, %v2081
    %v2083 = vpop.f32.mrb[0].mxu0
    %2084 = vmatprep.mubr.bf16.mxu0 0
    %2085 = vmatmul.mubr.bf16.gmra.mrb[0].mxu0 %v1924
    %v2086 = vpop.f32.mrb[0].mxu0
    %v2087 = vadd.f32 %v1946, %v2086
    %v2088 = vpop.f32.mrb[0].mxu0
    %v2089 = vpop.f32.mrb[0].mxu0
    %v2090 = vadd.f32 %v1946, %v2089
    %v2091 = vpop.f32.mrb[0].mxu0
    %2092 = vdwg.mxu0
    %2093 = vst [vmem:[#allocation12] sm:$0xff] %v2031
    %2094 = vst [vmem:[#allocation12 + $0x8] sm:$0xff] %v2034
    %2095 = vst [vmem:[#allocation12 + $0x10] sm:$0xff] %v2039
    %2096 = vst [vmem:[#allocation12 + $0x18] sm:$0xff] %v2042
    %2097 = vst [vmem:[#allocation12 + $0x20] sm:$0xff] %v2047
    %2098 = vst [vmem:[#allocation12 + $0x28] sm:$0xff] %v2050
    %2099 = vst [vmem:[#allocation12 + $0x30] sm:$0xff] %v2055
    %2100 = vst [vmem:[#allocation12 + $0x38] sm:$0xff] %v2058
    %2101 = vst [vmem:[#allocation12 + $0x40] sm:$0xff] %v2063
    %2102 = vst [vmem:[#allocation12 + $0x48] sm:$0xff] %v2066
    %2103 = vst [vmem:[#allocation12 + $0x50] sm:$0xff] %v2071
    %2104 = vst [vmem:[#allocation12 + $0x58] sm:$0xff] %v2074
    %2105 = vst [vmem:[#allocation12 + $0x60] sm:$0xff] %v2079
    %2106 = vst [vmem:[#allocation12 + $0x68] sm:$0xff] %v2082
    %2107 = vst [vmem:[#allocation12 + $0x70] sm:$0xff] %v2087
    %2108 = vst [vmem:[#allocation12 + $0x78] sm:$0xff] %v2090
    // Predicated region
    $region42: #{tpu_custom_call.1} parent=1 // pred_check
      _
    $region43: #{tpu_custom_call.1} parent=1 // pred_check_branch
      %2110 = sbr.rel (0) target = $region45
    $region44: #{tpu_custom_call.1} parent=1 // pred_region
      %s2112 = ssub.s32 2048, 2048
      %2113 = vsyncadd [#allocation6], %s2112
      %s2114 = sshll.u32 [#allocation12], 4
      %s2115 = int_to_ptr.vmem [resolvable:$true] %s2114
      %2120 = dma.vmem_to_hbm [thread:$0]  %s2115, 2048, %s6, [#allocation6], 128, 128, 8
    $region45: #{tpu_custom_call.1} parent=1 // pred_fallthru
      _
    // Predicated region
    $region46: #{tpu_custom_call.1} parent=1 // pred_check
      _
    $region47: #{tpu_custom_call.1} parent=1 // pred_check_branch
      %2122 = sbr.rel (0) target = $region49
    $region48: #{tpu_custom_call.1} parent=1 // pred_region
      %2123 = dma.done [#allocation6], 2048
    $region49: #{tpu_custom_call.1} parent=1 // pred_fallthru
      _
    %2124 = vsyncpa [#allocation5], 1
    %2125 = vsyncpa [#allocation8], 1
    %2126 = vsyncpa [#allocation11], 1
    %2127 = vsyncpa [#allocation6], 1

// kernel: tpu_custom_call.1
$region0: #{tpu_custom_call.1}
  #allocation0 [shape = 'u32[]', space=smem, size = 0x4, offset = 0x4, fixed_abs, tag = 'smem constant byte address 0x4 - core index']
  #allocation1 [shape = 'u32[144,128]{1,0:T(1,128)}', space=vmem, size = 0x12000, scoped, tag = 'internal scratch']
  #allocation2 [shape = 'f32[128,384]{1,0:T(8,128)}', space=vmem, size = 0x30000, scoped, tag = 'scratch operand']
  #allocation3 [shape = 'f32[128,128]{1,0:T(8,128)}', space=vmem, size = 0x10000, scoped, tag = 'scratch operand']
  %s0 = inlined_call_operand.hbm [shape: f32[2,64,128], index: 0, kind: input, shape index: {}]
  %s1 = inlined_call_operand.hbm [shape: bf16[128,384], index: 1, kind: input, shape index: {}]
  %s2 = inlined_call_operand.vmem [shape: f32[1,384], index: 2, kind: input, shape index: {}]
  %s3 = inlined_call_operand.hbm [shape: bf16[128,128], index: 3, kind: input, shape index: {}]
  %s4 = inlined_call_operand.vmem [shape: f32[1,128], index: 4, kind: input, shape index: {}]
  %s5 = inlined_call_operand.hbm [shape: f32[64,64], index: 5, kind: input, shape index: {}]
  %s6 = inlined_call_operand.hbm [shape: f32[2,64,128], index: 6, kind: output, shape index: {}]
  %s7 = sld [smem:[#allocation0]]
  $region50: #{tpu_custom_call.1} parent=0
    _
  %s9 = ssub.s32 1, %s7
  %s10 = scalar_select 0, %s9, %s7
  $region1: #{tpu_custom_call.1} parent=0
    #allocation4 [shape = 'u8[65536]{0}', space=vmem, size = 0x10000, scoped, tag = 'input window, operand 0, single buffered']
    #allocation5 [shape = 's32[1]{0}', space=sflag, size = 0x4, scoped, tag = 'scoped memory for tpu_custom_call.1']
    #allocation6 [shape = 's32[1]{0}', space=sflag, size = 0x4, scoped, tag = 'scoped memory for tpu_custom_call.1']
    #allocation7 [shape = 'u8[98304]{0}', space=vmem, size = 0x18000, scoped, tag = 'input window, operand 1, single buffered']
    #allocation8 [shape = 's32[1]{0}', space=sflag, size = 0x4, scoped, tag = 'scoped memory for tpu_custom_call.1']
    #allocation9 [shape = 'u8[32768]{0}', space=vmem, size = 0x8000, scoped, tag = 'input window, operand 3, single buffered']
    #allocation10 [shape = 'u8[32768]{0}', space=vmem, size = 0x8000, scoped, tag = 'input window, operand 5, single buffered']
    #allocation11 [shape = 's32[1]{0}', space=sflag, size = 0x4, scoped, tag = 'scoped memory for tpu_custom_call.1']
    #allocation12 [shape = 'u8[65536]{0}', space=vmem, size = 0x10000, scoped, tag = 'output window, operand 0, single buffered']
    %11 = vsyncpa [#allocation5], 0
    %12 = vsyncpa [#allocation8], 0
    %13 = vsyncpa [#allocation11], 0
    %14 = vsyncpa [#allocation6], 0
    // Predicated region
    $region2: #{tpu_custom_call.1} parent=1 // pred_check
      _
    $region3: #{tpu_custom_call.1} parent=1 // pred_check_branch
      %16 = sbr.rel (0) target = $region5
    $region4: #{tpu_custom_call.1} parent=1 // pred_region
      %s18 = ssub.s32 2048, 2048
      %19 = vsyncadd [#allocation5], %s18
      %s20 = sshll.u32 [#allocation4], 4
      %s21 = int_to_ptr.vmem [resolvable:$true] %s20
      %26 = dma.hbm_to_vmem [thread:$0]  %s0, 2048, %s21, [#allocation5], 128, 128, 8
    $region5: #{tpu_custom_call.1} parent=1 // pred_fallthru
      _
    // Predicated region
    $region6: #{tpu_custom_call.1} parent=1 // pred_check
      _
    $region7: #{tpu_custom_call.1} parent=1 // pred_check_branch
      %28 = sbr.rel (0) target = $region9
    $region8: #{tpu_custom_call.1} parent=1 // pred_region
      %s30 = ssub.s32 3072, 3072
      %31 = vsyncadd [#allocation8], %s30
      %s32 = sshll.u32 [#allocation7], 4
      %s33 = int_to_ptr.vmem [resolvable:$true] %s32
      %38 = dma.hbm_to_vmem [thread:$0]  %s1, 3072, %s33, [#allocation8], 192, 192, 12
    $region9: #{tpu_custom_call.1} parent=1 // pred_fallthru
      _
    // Predicated region
    $region10: #{tpu_custom_call.1} parent=1 // pred_check
      _
    $region11: #{tpu_custom_call.1} parent=1 // pred_check_branch
      %40 = sbr.rel (0) target = $region13
    $region12: #{tpu_custom_call.1} parent=1 // pred_region
      _
    $region13: #{tpu_custom_call.1} parent=1 // pred_fallthru
      _
    // Predicated region
    $region14: #{tpu_custom_call.1} parent=1 // pred_check
      _
    $region15: #{tpu_custom_call.1} parent=1 // pred_check_branch
      %42 = sbr.rel (0) target = $region17
    $region16: #{tpu_custom_call.1} parent=1 // pred_region
      %s44 = ssub.s32 1024, 1024
      %45 = vsyncadd [#allocation8], %s44
      %s46 = sshll.u32 [#allocation9], 4
      %s47 = int_to_ptr.vmem [resolvable:$true] %s46
      %52 = dma.hbm_to_vmem [thread:$0]  %s3, 1024, %s47, [#allocation8], 64, 64, 4
    $region17: #{tpu_custom_call.1} parent=1 // pred_fallthru
      _
    // Predicated region
    $region18: #{tpu_custom_call.1} parent=1 // pred_check
      _
    $region19: #{tpu_custom_call.1} parent=1 // pred_check_branch
      %54 = sbr.rel (0) target = $region21
    $region20: #{tpu_custom_call.1} parent=1 // pred_region
      _
    $region21: #{tpu_custom_call.1} parent=1 // pred_fallthru
      _
    // Predicated region
    $region22: #{tpu_custom_call.1} parent=1 // pred_check
      _
    $region23: #{tpu_custom_call.1} parent=1 // pred_check_branch
      %56 = sbr.rel (0) target = $region25
    $region24: #{tpu_custom_call.1} parent=1 // pred_region
      %s58 = ssub.s32 1024, 1024
      %59 = vsyncadd [#allocation11], %s58
      %s60 = sshll.u32 [#allocation10], 4
      %s61 = int_to_ptr.vmem [resolvable:$true] %s60
      %66 = dma.hbm_to_vmem [thread:$0]  %s5, 1024, %s61, [#allocation11], 128, 128, 8
    $region25: #{tpu_custom_call.1} parent=1 // pred_fallthru
      _
    // Predicated region
    $region26: #{tpu_custom_call.1} parent=1 // pred_check
      _
    $region27: #{tpu_custom_call.1} parent=1 // pred_check_branch
      %68 = sbr.rel (0) target = $region29
    $region28: #{tpu_custom_call.1} parent=1 // pred_region
      %69 = dma.done [#allocation5], 2048
    $region29: #{tpu_custom_call.1} parent=1 // pred_fallthru
      _
    // Predicated region
    $region30: #{tpu_custom_call.1} parent=1 // pred_check
      _
    $region31: #{tpu_custom_call.1} parent=1 // pred_check_branch
      %71 = sbr.rel (0) target = $region33
    $region32: #{tpu_custom_call.1} parent=1 // pred_region
      %72 = dma.done [#allocation8], 3072
    $region33: #{tpu_custom_call.1} parent=1 // pred_fallthru
      _
    // Predicated region
    $region34: #{tpu_custom_call.1} parent=1 // pred_check
      _
    $region35: #{tpu_custom_call.1} parent=1 // pred_check_branch
      %74 = sbr.rel (0) target = $region37
    $region36: #{tpu_custom_call.1} parent=1 // pred_region
      %75 = dma.done [#allocation8], 1024
    $region37: #{tpu_custom_call.1} parent=1 // pred_fallthru
      _
    // Predicated region
    $region38: #{tpu_custom_call.1} parent=1 // pred_check
      _
    $region39: #{tpu_custom_call.1} parent=1 // pred_check_branch
      %77 = sbr.rel (0) target = $region41
    $region40: #{tpu_custom_call.1} parent=1 // pred_region
      %78 = dma.done [#allocation11], 1024
    $region41: #{tpu_custom_call.1} parent=1 // pred_fallthru
      _
    %v80 = vld [vmem:[#allocation4] sm:$0xff]
    %v81 = vld [vmem:[#allocation4 + $0x8] sm:$0xff]
    %v82 = vld [vmem:[#allocation4 + $0x10] sm:$0xff]
    %v83 = vld [vmem:[#allocation4 + $0x18] sm:$0xff]
    %v84 = vld [vmem:[#allocation4 + $0x20] sm:$0xff]
    %v85 = vld [vmem:[#allocation4 + $0x28] sm:$0xff]
    %v86 = vld [vmem:[#allocation4 + $0x30] sm:$0xff]
    %v87 = vld [vmem:[#allocation4 + $0x38] sm:$0xff]
    %v88 = vld [vmem:[#allocation4 + $0x40] sm:$0xff]
    %v89 = vld [vmem:[#allocation4 + $0x48] sm:$0xff]
    %v90 = vld [vmem:[#allocation4 + $0x50] sm:$0xff]
    %v91 = vld [vmem:[#allocation4 + $0x58] sm:$0xff]
    %v92 = vld [vmem:[#allocation4 + $0x60] sm:$0xff]
    %v93 = vld [vmem:[#allocation4 + $0x68] sm:$0xff]
    %v94 = vld [vmem:[#allocation4 + $0x70] sm:$0xff]
    %v95 = vld [vmem:[#allocation4 + $0x78] sm:$0xff]
    %v96 = vpack.c.bf16 %v81, %v80
    %v97 = vpack.c.bf16 %v83, %v82
    %v98 = vpack.c.bf16 %v85, %v84
    %v99 = vpack.c.bf16 %v87, %v86
    %v100 = vpack.c.bf16 %v89, %v88
    %v101 = vpack.c.bf16 %v91, %v90
    %v102 = vpack.c.bf16 %v93, %v92
    %v103 = vpack.c.bf16 %v95, %v94
    %v104 = vld [vmem:[#allocation7] sm:$0xff]
    %v105 = vld [vmem:[#allocation7 + $0x8] sm:$0xf]
    %v106 = vld [vmem:[#allocation7 + $0xc] sm:$0xff]
    %v107 = vld [vmem:[#allocation7 + $0x14] sm:$0xf]
    %v108 = vld [vmem:[#allocation7 + $0x18] sm:$0xff]
    %v109 = vld [vmem:[#allocation7 + $0x20] sm:$0xf]
    %v110 = vld [vmem:[#allocation7 + $0x24] sm:$0xff]
    %v111 = vld [vmem:[#allocation7 + $0x2c] sm:$0xf]
    %v112 = vld [vmem:[#allocation7 + $0x30] sm:$0xff]
    %v113 = vld [vmem:[#allocation7 + $0x38] sm:$0xf]
    %v114 = vld [vmem:[#allocation7 + $0x3c] sm:$0xff]
    %v115 = vld [vmem:[#allocation7 + $0x44] sm:$0xf]
    %v116 = vld [vmem:[#allocation7 + $0x48] sm:$0xff]
    %v117 = vld [vmem:[#allocation7 + $0x50] sm:$0xf]
    %v118 = vld [vmem:[#allocation7 + $0x54] sm:$0xff]
    %v119 = vld [vmem:[#allocation7 + $0x5c] sm:$0xf]
    %v120 = vld [vmem:[#allocation7 + $0x60] sm:$0xff]
    %v121 = vld [vmem:[#allocation7 + $0x68] sm:$0xf]
    %v122 = vld [vmem:[#allocation7 + $0x6c] sm:$0xff]
    %v123 = vld [vmem:[#allocation7 + $0x74] sm:$0xf]
    %v124 = vld [vmem:[#allocation7 + $0x78] sm:$0xff]
    %v125 = vld [vmem:[#allocation7 + $0x80] sm:$0xf]
    %v126 = vld [vmem:[#allocation7 + $0x84] sm:$0xff]
    %v127 = vld [vmem:[#allocation7 + $0x8c] sm:$0xf]
    %v128 = vld [vmem:[#allocation7 + $0x90] sm:$0xff]
    %v129 = vld [vmem:[#allocation7 + $0x98] sm:$0xf]
    %v130 = vld [vmem:[#allocation7 + $0x9c] sm:$0xff]
    %v131 = vld [vmem:[#allocation7 + $0xa4] sm:$0xf]
    %v132 = vld [vmem:[#allocation7 + $0xa8] sm:$0xff]
    %v133 = vld [vmem:[#allocation7 + $0xb0] sm:$0xf]
    %v134 = vld [vmem:[#allocation7 + $0xb4] sm:$0xff]
    %v135 = vld [vmem:[#allocation7 + $0xbc] sm:$0xf]
    %v136 = vld [vmem:[%s2] sm:$0x7]
    %v138 = vlaneseq
    %v139 = vshrl.u32 %v138, 7
    %v140 = vsub.s32 0, %v139
    %v141 = vrot.slane %v136, %v140
    %v142 = vlaneseq
    %v143 = vshrl.u32 %v142, 7
    %v144 = vsub.s32 1, %v143
    %v145 = vrot.slane %v136, %v144
    %v146 = vlaneseq
    %v147 = vshrl.u32 %v146, 7
    %v148 = vsub.s32 2, %v147
    %v149 = vrot.slane %v136, %v148
    %v185 = vunpack.c.l.b16 %v104
    %v186 = vunpack.c.h.b16 %v104
    %v187 = vunpack.c.l.b16 %v105
    %v188 = vunpack.c.l.b16 %v106
    %v189 = vunpack.c.h.b16 %v106
    %v190 = vunpack.c.l.b16 %v107
    %v191 = vunpack.c.l.b16 %v108
    %v192 = vunpack.c.h.b16 %v108
    %v193 = vunpack.c.l.b16 %v109
    %v194 = vunpack.c.l.b16 %v110
    %v195 = vunpack.c.h.b16 %v110
    %v196 = vunpack.c.l.b16 %v111
    %v197 = vunpack.c.l.b16 %v112
    %v198 = vunpack.c.h.b16 %v112
    %v199 = vunpack.c.l.b16 %v113
    %v200 = vunpack.c.l.b16 %v114
    %v201 = vunpack.c.h.b16 %v114
    %v202 = vunpack.c.l.b16 %v115
    %v203 = vunpack.c.l.b16 %v116
    %v204 = vunpack.c.h.b16 %v116
    %v205 = vunpack.c.l.b16 %v117
    %v206 = vunpack.c.l.b16 %v118
    %v207 = vunpack.c.h.b16 %v118
    %v208 = vunpack.c.l.b16 %v119
    %v209 = vunpack.c.l.b16 %v120
    %v210 = vunpack.c.h.b16 %v120
    %v211 = vunpack.c.l.b16 %v121
    %v212 = vunpack.c.l.b16 %v122
    %v213 = vunpack.c.h.b16 %v122
    %v214 = vunpack.c.l.b16 %v123
    %v215 = vunpack.c.l.b16 %v124
    %v216 = vunpack.c.h.b16 %v124
    %v217 = vunpack.c.l.b16 %v125
    %v218 = vunpack.c.l.b16 %v126
    %v219 = vunpack.c.h.b16 %v126
    %v220 = vunpack.c.l.b16 %v127
    %v221 = vunpack.c.l.b16 %v128
    %v222 = vunpack.c.h.b16 %v128
    %v223 = vunpack.c.l.b16 %v129
    %v224 = vunpack.c.l.b16 %v130
    %v225 = vunpack.c.h.b16 %v130
    %v226 = vunpack.c.l.b16 %v131
    %v227 = vunpack.c.l.b16 %v132
    %v228 = vunpack.c.h.b16 %v132
    %v229 = vunpack.c.l.b16 %v133
    %v230 = vunpack.c.l.b16 %v134
    %v231 = vunpack.c.h.b16 %v134
    %v232 = vunpack.c.l.b16 %v135
    %v233 = vpack.c.b16 %v188, %v185
    %v234 = vpack.c.b16 %v189, %v186
    %v235 = vpack.c.b16 %v190, %v187
    %v236 = vpack.c.b16 %v194, %v191
    %v237 = vpack.c.b16 %v195, %v192
    %v238 = vpack.c.b16 %v196, %v193
    %v239 = vpack.c.b16 %v200, %v197
    %v240 = vpack.c.b16 %v201, %v198
    %v241 = vpack.c.b16 %v202, %v199
    %v242 = vpack.c.b16 %v206, %v203
    %v243 = vpack.c.b16 %v207, %v204
    %v244 = vpack.c.b16 %v208, %v205
    %v245 = vpack.c.b16 %v212, %v209
    %v246 = vpack.c.b16 %v213, %v210
    %v247 = vpack.c.b16 %v214, %v211
    %v248 = vpack.c.b16 %v218, %v215
    %v249 = vpack.c.b16 %v219, %v216
    %v250 = vpack.c.b16 %v220, %v217
    %v251 = vpack.c.b16 %v224, %v221
    %v252 = vpack.c.b16 %v225, %v222
    %v253 = vpack.c.b16 %v226, %v223
    %v254 = vpack.c.b16 %v230, %v227
    %v255 = vpack.c.b16 %v231, %v228
    %v256 = vpack.c.b16 %v232, %v229
    %281 = vmatprep.subr.bf16.mxu0 %v234
    %282 = vmatpush1.bf16.msra.mxu0 %v233
    %283 = vmatprep.subr.bf16.mxu0 %v237
    %284 = vmatpush1.bf16.msra.mxu0 %v236
    %285 = vmatprep.subr.bf16.mxu0 %v240
    %286 = vmatpush1.bf16.msra.mxu0 %v239
    %287 = vmatprep.subr.bf16.mxu0 %v243
    %288 = vmatpush1.bf16.msra.mxu0 %v242
    %289 = vmatprep.subr.bf16.mxu0 %v246
    %290 = vmatpush1.bf16.msra.mxu0 %v245
    %291 = vmatprep.subr.bf16.mxu0 %v249
    %292 = vmatpush1.bf16.msra.mxu0 %v248
    %293 = vmatprep.subr.bf16.mxu0 %v252
    %294 = vmatpush1.bf16.msra.mxu0 %v251
    %295 = vmatprep.subr.bf16.mxu0 %v255
    %296 = vmatpush1.bf16.msra.mxu0 %v254
    %297 = vmatprep.subr.bf16.mxu0 0
    %298 = vmatpush1.bf16.msra.mxu0 0
    %299 = vmatprep.subr.bf16.mxu0 0
    %300 = vmatpush1.bf16.msra.mxu0 0
    %301 = vmatprep.subr.bf16.mxu0 0
    %302 = vmatpush1.bf16.msra.mxu0 0
    %303 = vmatprep.subr.bf16.mxu0 0
    %304 = vmatpush1.bf16.msra.mxu0 0
    %305 = vmatprep.subr.bf16.mxu0 0
    %306 = vmatpush1.bf16.msra.mxu0 0
    %307 = vmatprep.subr.bf16.mxu0 0
    %308 = vmatpush1.bf16.msra.mxu0 0
    %309 = vmatprep.subr.bf16.mxu0 0
    %310 = vmatpush1.bf16.msra.mxu0 0
    %311 = vmatprep.subr.bf16.mxu0 0
    %312 = vmatpush1.bf16.msra.mxu0 0
    %313 = vmatprep.mubr.bf16.mxu0 0
    %314 = vmatmul.mubr.bf16.gmra.mrb[0].mxu0 %v96
    %v315 = vpop.f32.mrb[0].mxu0
    %v316 = vadd.f32 %v141, %v315
    %v317 = vpop.f32.mrb[0].mxu0
    %v318 = vadd.f32 %v145, %v317
    %v319 = vpop.f32.mrb[0].mxu0
    %v320 = vadd.f32 %v141, %v319
    %v321 = vpop.f32.mrb[0].mxu0
    %v322 = vadd.f32 %v145, %v321
    %323 = vmatprep.mubr.bf16.mxu0 0
    %324 = vmatmul.mubr.bf16.gmra.mrb[0].mxu0 %v97
    %v325 = vpop.f32.mrb[0].mxu0
    %v326 = vadd.f32 %v141, %v325
    %v327 = vpop.f32.mrb[0].mxu0
    %v328 = vadd.f32 %v145, %v327
    %v329 = vpop.f32.mrb[0].mxu0
    %v330 = vadd.f32 %v141, %v329
    %v331 = vpop.f32.mrb[0].mxu0
    %v332 = vadd.f32 %v145, %v331
    %333 = vmatprep.mubr.bf16.mxu0 0
    %334 = vmatmul.mubr.bf16.gmra.mrb[0].mxu0 %v98
    %v335 = vpop.f32.mrb[0].mxu0
    %v336 = vadd.f32 %v141, %v335
    %v337 = vpop.f32.mrb[0].mxu0
    %v338 = vadd.f32 %v145, %v337
    %v339 = vpop.f32.mrb[0].mxu0
    %v340 = vadd.f32 %v141, %v339
    %v341 = vpop.f32.mrb[0].mxu0
    %v342 = vadd.f32 %v145, %v341
    %343 = vmatprep.mubr.bf16.mxu0 0
    %344 = vmatmul.mubr.bf16.gmra.mrb[0].mxu0 %v99
    %v345 = vpop.f32.mrb[0].mxu0
    %v346 = vadd.f32 %v141, %v345
    %v347 = vpop.f32.mrb[0].mxu0
    %v348 = vadd.f32 %v145, %v347
    %v349 = vpop.f32.mrb[0].mxu0
    %v350 = vadd.f32 %v141, %v349
    %v351 = vpop.f32.mrb[0].mxu0
    %v352 = vadd.f32 %v145, %v351
    %353 = vmatprep.mubr.bf16.mxu0 0
    %354 = vmatmul.mubr.bf16.gmra.mrb[0].mxu0 %v100
    %v355 = vpop.f32.mrb[0].mxu0
    %v356 = vadd.f32 %v141, %v355
    %v357 = vpop.f32.mrb[0].mxu0
    %v358 = vadd.f32 %v145, %v357
    %v359 = vpop.f32.mrb[0].mxu0
    %v360 = vadd.f32 %v141, %v359
    %v361 = vpop.f32.mrb[0].mxu0
    %v362 = vadd.f32 %v145, %v361
    %363 = vmatprep.mubr.bf16.mxu0 0
    %364 = vmatmul.mubr.bf16.gmra.mrb[0].mxu0 %v101
    %v365 = vpop.f32.mrb[0].mxu0
    %v366 = vadd.f32 %v141, %v365
    %v367 = vpop.f32.mrb[0].mxu0
    %v368 = vadd.f32 %v145, %v367
    %v369 = vpop.f32.mrb[0].mxu0
    %v370 = vadd.f32 %v141, %v369
    %v371 = vpop.f32.mrb[0].mxu0
    %v372 = vadd.f32 %v145, %v371
    %373 = vmatprep.mubr.bf16.mxu0 0
    %374 = vmatmul.mubr.bf16.gmra.mrb[0].mxu0 %v102
    %v375 = vpop.f32.mrb[0].mxu0
    %v376 = vadd.f32 %v141, %v375
    %v377 = vpop.f32.mrb[0].mxu0
    %v378 = vadd.f32 %v145, %v377
    %v379 = vpop.f32.mrb[0].mxu0
    %v380 = vadd.f32 %v141, %v379
    %v381 = vpop.f32.mrb[0].mxu0
    %v382 = vadd.f32 %v145, %v381
    %383 = vmatprep.mubr.bf16.mxu0 0
    %384 = vmatmul.mubr.bf16.gmra.mrb[0].mxu0 %v103
    %v385 = vpop.f32.mrb[0].mxu0
    %v386 = vadd.f32 %v141, %v385
    %v387 = vpop.f32.mrb[0].mxu0
    %v388 = vadd.f32 %v145, %v387
    %v389 = vpop.f32.mrb[0].mxu0
    %v390 = vadd.f32 %v141, %v389
    %v391 = vpop.f32.mrb[0].mxu0
    %v392 = vadd.f32 %v145, %v391
    %393 = vdwg.mxu0
    %394 = vmatprep.subr.bf16.mxu0 0
    %395 = vmatpush1.bf16.msra.mxu0 %v235
    %396 = vmatprep.subr.bf16.mxu0 0
    %397 = vmatpush1.bf16.msra.mxu0 %v238
    %398 = vmatprep.subr.bf16.mxu0 0
    %399 = vmatpush1.bf16.msra.mxu0 %v241
    %400 = vmatprep.subr.bf16.mxu0 0
    %401 = vmatpush1.bf16.msra.mxu0 %v244
    %402 = vmatprep.subr.bf16.mxu0 0
    %403 = vmatpush1.bf16.msra.mxu0 %v247
    %404 = vmatprep.subr.bf16.mxu0 0
    %405 = vmatpush1.bf16.msra.mxu0 %v250
    %406 = vmatprep.subr.bf16.mxu0 0
    %407 = vmatpush1.bf16.msra.mxu0 %v253
    %408 = vmatprep.subr.bf16.mxu0 0
    %409 = vmatpush1.bf16.msra.mxu0 %v256
    %410 = vmatprep.subr.bf16.mxu0 0
    %411 = vmatpush1.bf16.msra.mxu0 0
    %412 = vmatprep.subr.bf16.mxu0 0
    %413 = vmatpush1.bf16.msra.mxu0 0
    %414 = vmatprep.subr.bf16.mxu0 0
    %415 = vmatpush1.bf16.msra.mxu0 0
    %416 = vmatprep.subr.bf16.mxu0 0
    %417 = vmatpush1.bf16.msra.mxu0 0
    %418 = vmatprep.subr.bf16.mxu0 0
    %419 = vmatpush1.bf16.msra.mxu0 0
    %420 = vmatprep.subr.bf16.mxu0 0
    %421 = vmatpush1.bf16.msra.mxu0 0
    %422 = vmatprep.subr.bf16.mxu0 0
    %423 = vmatpush1.bf16.msra.mxu0 0
    %424 = vmatprep.subr.bf16.mxu0 0
    %425 = vmatpush1.bf16.msra.mxu0 0
    %426 = vmatprep.mubr.bf16.mxu0 0
    %427 = vmatmul.mubr.bf16.gmra.mrb[0].mxu0 %v96
    %v428 = vpop.f32.mrb[0].mxu0
    %v429 = vadd.f32 %v149, %v428
    %v430 = vpop.f32.mrb[0].mxu0
    %v431 = vpop.f32.mrb[0].mxu0
    %v432 = vadd.f32 %v149, %v431
    %v433 = vpop.f32.mrb[0].mxu0
    %434 = vmatprep.mubr.bf16.mxu0 0
    %435 = vmatmul.mubr.bf16.gmra.mrb[0].mxu0 %v97
    %v436 = vpop.f32.mrb[0].mxu0
    %v437 = vadd.f32 %v149, %v436
    %v438 = vpop.f32.mrb[0].mxu0
    %v439 = vpop.f32.mrb[0].mxu0
    %v440 = vadd.f32 %v149, %v439
    %v441 = vpop.f32.mrb[0].mxu0
    %442 = vmatprep.mubr.bf16.mxu0 0
    %443 = vmatmul.mubr.bf16.gmra.mrb[0].mxu0 %v98
    %v444 = vpop.f32.mrb[0].mxu0
    %v445 = vadd.f32 %v149, %v444
    %v446 = vpop.f32.mrb[0].mxu0
    %v447 = vpop.f32.mrb[0].mxu0
    %v448 = vadd.f32 %v149, %v447
    %v449 = vpop.f32.mrb[0].mxu0
    %450 = vmatprep.mubr.bf16.mxu0 0
    %451 = vmatmul.mubr.bf16.gmra.mrb[0].mxu0 %v99
    %v452 = vpop.f32.mrb[0].mxu0
    %v453 = vadd.f32 %v149, %v452
    %v454 = vpop.f32.mrb[0].mxu0
    %v455 = vpop.f32.mrb[0].mxu0
    %v456 = vadd.f32 %v149, %v455
    %v457 = vpop.f32.mrb[0].mxu0
    %458 = vmatprep.mubr.bf16.mxu0 0
    %459 = vmatmul.mubr.bf16.gmra.mrb[0].mxu0 %v100
    %v460 = vpop.f32.mrb[0].mxu0
    %v461 = vadd.f32 %v149, %v460
    %v462 = vpop.f32.mrb[0].mxu0
    %v463 = vpop.f32.mrb[0].mxu0
    %v464 = vadd.f32 %v149, %v463
    %v465 = vpop.f32.mrb[0].mxu0
    %466 = vmatprep.mubr.bf16.mxu0 0
    %467 = vmatmul.mubr.bf16.gmra.mrb[0].mxu0 %v101
    %v468 = vpop.f32.mrb[0].mxu0
    %v469 = vadd.f32 %v149, %v468
    %v470 = vpop.f32.mrb[0].mxu0
    %v471 = vpop.f32.mrb[0].mxu0
    %v472 = vadd.f32 %v149, %v471
    %v473 = vpop.f32.mrb[0].mxu0
    %474 = vmatprep.mubr.bf16.mxu0 0
    %475 = vmatmul.mubr.bf16.gmra.mrb[0].mxu0 %v102
    %v476 = vpop.f32.mrb[0].mxu0
    %v477 = vadd.f32 %v149, %v476
    %v478 = vpop.f32.mrb[0].mxu0
    %v479 = vpop.f32.mrb[0].mxu0
    %v480 = vadd.f32 %v149, %v479
    %v481 = vpop.f32.mrb[0].mxu0
    %482 = vmatprep.mubr.bf16.mxu0 0
    %483 = vmatmul.mubr.bf16.gmra.mrb[0].mxu0 %v103
    %v484 = vpop.f32.mrb[0].mxu0
    %v485 = vadd.f32 %v149, %v484
    %v486 = vpop.f32.mrb[0].mxu0
    %v487 = vpop.f32.mrb[0].mxu0
    %v488 = vadd.f32 %v149, %v487
    %v489 = vpop.f32.mrb[0].mxu0
    %490 = vdwg.mxu0
    %491 = vst [vmem:[#allocation2] sm:$0xff] %v316
    %492 = vst [vmem:[#allocation2 + $0x8] sm:$0xff] %v318
    %493 = vst [vmem:[#allocation2 + $0x10] sm:$0xff] %v429
    %494 = vst [vmem:[#allocation2 + $0x18] sm:$0xff] %v320
    %495 = vst [vmem:[#allocation2 + $0x20] sm:$0xff] %v322
    %496 = vst [vmem:[#allocation2 + $0x28] sm:$0xff] %v432
    %497 = vst [vmem:[#allocation2 + $0x30] sm:$0xff] %v326
    %498 = vst [vmem:[#allocation2 + $0x38] sm:$0xff] %v328
    %499 = vst [vmem:[#allocation2 + $0x40] sm:$0xff] %v437
    %500 = vst [vmem:[#allocation2 + $0x48] sm:$0xff] %v330
    %501 = vst [vmem:[#allocation2 + $0x50] sm:$0xff] %v332
    %502 = vst [vmem:[#allocation2 + $0x58] sm:$0xff] %v440
    %503 = vst [vmem:[#allocation2 + $0x60] sm:$0xff] %v336
    %504 = vst [vmem:[#allocation2 + $0x68] sm:$0xff] %v338
    %505 = vst [vmem:[#allocation2 + $0x70] sm:$0xff] %v445
    %506 = vst [vmem:[#allocation2 + $0x78] sm:$0xff] %v340
    %507 = vst [vmem:[#allocation2 + $0x80] sm:$0xff] %v342
    %508 = vst [vmem:[#allocation2 + $0x88] sm:$0xff] %v448
    %509 = vst [vmem:[#allocation2 + $0x90] sm:$0xff] %v346
    %510 = vst [vmem:[#allocation2 + $0x98] sm:$0xff] %v348
    %511 = vst [vmem:[#allocation2 + $0xa0] sm:$0xff] %v453
    %512 = vst [vmem:[#allocation2 + $0xa8] sm:$0xff] %v350
    %513 = vst [vmem:[#allocation2 + $0xb0] sm:$0xff] %v352
    %514 = vst [vmem:[#allocation2 + $0xb8] sm:$0xff] %v456
    %515 = vst [vmem:[#allocation2 + $0xc0] sm:$0xff] %v356
    %516 = vst [vmem:[#allocation2 + $0xc8] sm:$0xff] %v358
    %517 = vst [vmem:[#allocation2 + $0xd0] sm:$0xff] %v461
    %518 = vst [vmem:[#allocation2 + $0xd8] sm:$0xff] %v360
    %519 = vst [vmem:[#allocation2 + $0xe0] sm:$0xff] %v362
    %520 = vst [vmem:[#allocation2 + $0xe8] sm:$0xff] %v464
    %521 = vst [vmem:[#allocation2 + $0xf0] sm:$0xff] %v366
    %522 = vst [vmem:[#allocation2 + $0xf8] sm:$0xff] %v368
    %523 = vst [vmem:[#allocation2 + $0x100] sm:$0xff] %v469
    %524 = vst [vmem:[#allocation2 + $0x108] sm:$0xff] %v370
    %525 = vst [vmem:[#allocation2 + $0x110] sm:$0xff] %v372
    %526 = vst [vmem:[#allocation2 + $0x118] sm:$0xff] %v472
    %527 = vst [vmem:[#allocation2 + $0x120] sm:$0xff] %v376
    %528 = vst [vmem:[#allocation2 + $0x128] sm:$0xff] %v378
    %529 = vst [vmem:[#allocation2 + $0x130] sm:$0xff] %v477
    %530 = vst [vmem:[#allocation2 + $0x138] sm:$0xff] %v380
    %531 = vst [vmem:[#allocation2 + $0x140] sm:$0xff] %v382
    %532 = vst [vmem:[#allocation2 + $0x148] sm:$0xff] %v480
    %533 = vst [vmem:[#allocation2 + $0x150] sm:$0xff] %v386
    %534 = vst [vmem:[#allocation2 + $0x158] sm:$0xff] %v388
    %535 = vst [vmem:[#allocation2 + $0x160] sm:$0xff] %v485
    %536 = vst [vmem:[#allocation2 + $0x168] sm:$0xff] %v390
    %537 = vst [vmem:[#allocation2 + $0x170] sm:$0xff] %v392
    %538 = vst [vmem:[#allocation2 + $0x178] sm:$0xff] %v488
    %v539 = vld [vmem:[#allocation10] sm:$0xff]
    %v540 = vld [vmem:[#allocation10 + $0x8] sm:$0xff]
    %v541 = vld [vmem:[#allocation10 + $0x10] sm:$0xff]
    %v542 = vld [vmem:[#allocation10 + $0x18] sm:$0xff]
    %v543 = vld [vmem:[#allocation10 + $0x20] sm:$0xff]
    %v544 = vld [vmem:[#allocation10 + $0x28] sm:$0xff]
    %v545 = vld [vmem:[#allocation10 + $0x30] sm:$0xff]
    %v546 = vld [vmem:[#allocation10 + $0x38] sm:$0xff]
    %v547 = vld [vmem:[#allocation2] sm:$0xff]
    %v548 = vld [vmem:[#allocation2 + $0x18] sm:$0xff]
    %v549 = vld [vmem:[#allocation2 + $0x30] sm:$0xff]
    %v550 = vld [vmem:[#allocation2 + $0x48] sm:$0xff]
    %v551 = vld [vmem:[#allocation2 + $0x60] sm:$0xff]
    %v552 = vld [vmem:[#allocation2 + $0x78] sm:$0xff]
    %v553 = vld [vmem:[#allocation2 + $0x90] sm:$0xff]
    %v554 = vld [vmem:[#allocation2 + $0xa8] sm:$0xff]
    %v555 = vpack.c.bf16 %v548, %v547
    %v556 = vpack.c.bf16 %v550, %v549
    %v557 = vpack.c.bf16 %v552, %v551
    %v558 = vpack.c.bf16 %v554, %v553
    %v559 = vld [vmem:[#allocation2 + $0x8] sm:$0xff]
    %v560 = vld [vmem:[#allocation2 + $0x20] sm:$0xff]
    %v561 = vld [vmem:[#allocation2 + $0x38] sm:$0xff]
    %v562 = vld [vmem:[#allocation2 + $0x50] sm:$0xff]
    %v563 = vld [vmem:[#allocation2 + $0x68] sm:$0xff]
    %v564 = vld [vmem:[#allocation2 + $0x80] sm:$0xff]
    %v565 = vld [vmem:[#allocation2 + $0x98] sm:$0xff]
    %v566 = vld [vmem:[#allocation2 + $0xb0] sm:$0xff]
    %v567 = vpack.c.bf16 %v560, %v559
    %v568 = vpack.c.bf16 %v562, %v561
    %v569 = vpack.c.bf16 %v564, %v563
    %v570 = vpack.c.bf16 %v566, %v565
    %v571 = vld [vmem:[#allocation2 + $0x10] sm:$0xff]
    %v572 = vld [vmem:[#allocation2 + $0x28] sm:$0xff]
    %v573 = vld [vmem:[#allocation2 + $0x40] sm:$0xff]
    %v574 = vld [vmem:[#allocation2 + $0x58] sm:$0xff]
    %v575 = vld [vmem:[#allocation2 + $0x70] sm:$0xff]
    %v576 = vld [vmem:[#allocation2 + $0x88] sm:$0xff]
    %v577 = vld [vmem:[#allocation2 + $0xa0] sm:$0xff]
    %v578 = vld [vmem:[#allocation2 + $0xb8] sm:$0xff]
    %v579 = vpack.c.bf16 %v572, %v571
    %v580 = vpack.c.bf16 %v574, %v573
    %v581 = vpack.c.bf16 %v576, %v575
    %v582 = vpack.c.bf16 %v578, %v577
    %vm583 = vcmask 523264
    %v585 = vsel %vm583, %v555, 0
    %v588 = vsel %vm583, %v556, 0
    %v591 = vsel %vm583, %v557, 0
    %v594 = vsel %vm583, %v558, 0
    %v597 = vsel %vm583, %v567, 0
    %v600 = vsel %vm583, %v568, 0
    %v603 = vsel %vm583, %v569, 0
    %v606 = vsel %vm583, %v570, 0
    %608 = vmatprep.subr.bf16.mxu0 0
    %609 = vmatpush1.bf16.xpose.msra.mxu0 %v597
    %610 = vmatprep.subr.bf16.mxu0 0
    %611 = vmatpush1.bf16.xpose.msra.mxu0 %v600
    %612 = vmatprep.subr.bf16.mxu0 0
    %613 = vmatpush1.bf16.xpose.msra.mxu0 %v603
    %614 = vmatprep.subr.bf16.mxu0 0
    %615 = vmatpush1.bf16.xpose.msra.mxu0 %v606
    %616 = vmatprep.subr.bf16.mxu0 0
    %617 = vmatpush1.bf16.xpose.msra.mxu0 0
    %618 = vmatprep.subr.bf16.mxu0 0
    %619 = vmatpush1.bf16.xpose.msra.mxu0 0
    %620 = vmatprep.subr.bf16.mxu0 0
    %621 = vmatpush1.bf16.xpose.msra.mxu0 0
    %622 = vmatprep.subr.bf16.mxu0 0
    %623 = vmatpush1.bf16.xpose.msra.mxu0 0
    %624 = vmatprep.subr.bf16.mxu0 0
    %625 = vmatpush1.bf16.xpose.msra.mxu0 0
    %626 = vmatprep.subr.bf16.mxu0 0
    %627 = vmatpush1.bf16.xpose.msra.mxu0 0
    %628 = vmatprep.subr.bf16.mxu0 0
    %629 = vmatpush1.bf16.xpose.msra.mxu0 0
    %630 = vmatprep.subr.bf16.mxu0 0
    %631 = vmatpush1.bf16.xpose.msra.mxu0 0
    %632 = vmatprep.subr.bf16.mxu0 0
    %633 = vmatpush1.bf16.xpose.msra.mxu0 0
    %634 = vmatprep.subr.bf16.mxu0 0
    %635 = vmatpush1.bf16.xpose.msra.mxu0 0
    %636 = vmatprep.subr.bf16.mxu0 0
    %637 = vmatpush1.bf16.xpose.msra.mxu0 0
    %638 = vmatprep.subr.bf16.mxu0 0
    %639 = vmatpush1.bf16.xpose.msra.mxu0 0
    %640 = vmatprep.mubr.bf16.mxu0 0
    %641 = vmatmul.mubr.bf16.gmra.mrb[0].mxu0 %v585
    %v642 = vpop.f32.mrb[0].mxu0
    %v643 = vadd.f32 %v539, %v642
    %v644 = vpop.f32.mrb[0].mxu0
    %v645 = vpop.f32.mrb[0].mxu0
    %v646 = vadd.f32 %v540, %v645
    %v647 = vpop.f32.mrb[0].mxu0
    %648 = vmatprep.mubr.bf16.mxu0 0
    %649 = vmatmul.mubr.bf16.gmra.mrb[0].mxu0 %v588
    %v650 = vpop.f32.mrb[0].mxu0
    %v651 = vadd.f32 %v541, %v650
    %v652 = vpop.f32.mrb[0].mxu0
    %v653 = vpop.f32.mrb[0].mxu0
    %v654 = vadd.f32 %v542, %v653
    %v655 = vpop.f32.mrb[0].mxu0
    %656 = vmatprep.mubr.bf16.mxu0 0
    %657 = vmatmul.mubr.bf16.gmra.mrb[0].mxu0 %v591
    %v658 = vpop.f32.mrb[0].mxu0
    %v659 = vadd.f32 %v543, %v658
    %v660 = vpop.f32.mrb[0].mxu0
    %v661 = vpop.f32.mrb[0].mxu0
    %v662 = vadd.f32 %v544, %v661
    %v663 = vpop.f32.mrb[0].mxu0
    %664 = vmatprep.mubr.bf16.mxu0 0
    %665 = vmatmul.mubr.bf16.gmra.mrb[0].mxu0 %v594
    %v666 = vpop.f32.mrb[0].mxu0
    %v667 = vadd.f32 %v545, %v666
    %v668 = vpop.f32.mrb[0].mxu0
    %v669 = vpop.f32.mrb[0].mxu0
    %v670 = vadd.f32 %v546, %v669
    %v671 = vpop.f32.mrb[0].mxu0
    %672 = vdwg.mxu0
    %v673 = vsel %vm583, %v643, -inf
    %674 = vmax.xlane.f32.xlu0 %v673
    %v675 = vpop.xlane.xlu0 %674
    %v676 = vsel %vm583, %v646, -inf
    %677 = vmax.xlane.f32.xlu0 %v676
    %v678 = vpop.xlane.xlu0 %677
    %v679 = vsel %vm583, %v651, -inf
    %680 = vmax.xlane.f32.xlu0 %v679
    %v681 = vpop.xlane.xlu0 %680
    %v682 = vsel %vm583, %v654, -inf
    %683 = vmax.xlane.f32.xlu0 %v682
    %v684 = vpop.xlane.xlu0 %683
    %v685 = vsel %vm583, %v659, -inf
    %686 = vmax.xlane.f32.xlu0 %v685
    %v687 = vpop.xlane.xlu0 %686
    %v688 = vsel %vm583, %v662, -inf
    %689 = vmax.xlane.f32.xlu0 %v688
    %v690 = vpop.xlane.xlu0 %689
    %v691 = vsel %vm583, %v667, -inf
    %692 = vmax.xlane.f32.xlu0 %v691
    %v693 = vpop.xlane.xlu0 %692
    %v694 = vsel %vm583, %v670, -inf
    %695 = vmax.xlane.f32.xlu0 %v694
    %v696 = vpop.xlane.xlu0 %695
    %v697 = vsub.f32 %v643, %v675
    %v698 = vsub.f32 %v646, %v678
    %v699 = vsub.f32 %v651, %v681
    %v700 = vsub.f32 %v654, %v684
    %v701 = vsub.f32 %v659, %v687
    %v702 = vsub.f32 %v662, %v690
    %v703 = vsub.f32 %v667, %v693
    %v704 = vsub.f32 %v670, %v696
    %v705 = vmul.f32 %v697, 1.442695
    %v706 = vpow.pop %v705
    %v707 = vmul.f32 %v698, 1.442695
    %v708 = vpow.pop %v707
    %v709 = vmul.f32 %v699, 1.442695
    %v710 = vpow.pop %v709
    %v711 = vmul.f32 %v700, 1.442695
    %v712 = vpow.pop %v711
    %v713 = vmul.f32 %v701, 1.442695
    %v714 = vpow.pop %v713
    %v715 = vmul.f32 %v702, 1.442695
    %v716 = vpow.pop %v715
    %v717 = vmul.f32 %v703, 1.442695
    %v718 = vpow.pop %v717
    %v719 = vmul.f32 %v704, 1.442695
    %v720 = vpow.pop %v719
    %v721 = vsel %vm583, %v706, 0.0
    %722 = vadd.xlane.f32.xlu0 %v721
    %v723 = vpop.xlane.xlu0 %722
    %v724 = vsel %vm583, %v708, 0.0
    %725 = vadd.xlane.f32.xlu0 %v724
    %v726 = vpop.xlane.xlu0 %725
    %v727 = vsel %vm583, %v710, 0.0
    %728 = vadd.xlane.f32.xlu0 %v727
    %v729 = vpop.xlane.xlu0 %728
    %v730 = vsel %vm583, %v712, 0.0
    %731 = vadd.xlane.f32.xlu0 %v730
    %v732 = vpop.xlane.xlu0 %731
    %v733 = vsel %vm583, %v714, 0.0
    %734 = vadd.xlane.f32.xlu0 %v733
    %v735 = vpop.xlane.xlu0 %734
    %v736 = vsel %vm583, %v716, 0.0
    %737 = vadd.xlane.f32.xlu0 %v736
    %v738 = vpop.xlane.xlu0 %737
    %v739 = vsel %vm583, %v718, 0.0
    %740 = vadd.xlane.f32.xlu0 %v739
    %v741 = vpop.xlane.xlu0 %740
    %v742 = vsel %vm583, %v720, 0.0
    %743 = vadd.xlane.f32.xlu0 %v742
    %v744 = vpop.xlane.xlu0 %743
    %v745 = vrcp.pop %v723
    %v746 = vrcp.pop %v726
    %v747 = vrcp.pop %v729
    %v748 = vrcp.pop %v732
    %v749 = vrcp.pop %v735
    %v750 = vrcp.pop %v738
    %v751 = vrcp.pop %v741
    %v752 = vrcp.pop %v744
    %v753 = vmul.f32 %v706, %v745
    %v754 = vmul.f32 %v708, %v746
    %v755 = vmul.f32 %v710, %v747
    %v756 = vmul.f32 %v712, %v748
    %v757 = vmul.f32 %v714, %v749
    %v758 = vmul.f32 %v716, %v750
    %v759 = vmul.f32 %v718, %v751
    %v760 = vmul.f32 %v720, %v752
    %v761 = vpack.c.bf16 %v754, %v753
    %v762 = vpack.c.bf16 %v756, %v755
    %v763 = vpack.c.bf16 %v758, %v757
    %v764 = vpack.c.bf16 %v760, %v759
    %v766 = vsel %vm583, %v761, 0
    %v769 = vsel %vm583, %v762, 0
    %v772 = vsel %vm583, %v763, 0
    %v775 = vsel %vm583, %v764, 0
    %777 = vmatprep.subr.bf16.mxu0 0
    %778 = vmatpush1.bf16.msra.mxu0 %v579
    %779 = vmatprep.subr.bf16.mxu0 0
    %780 = vmatpush1.bf16.msra.mxu0 %v580
    %781 = vmatprep.subr.bf16.mxu0 0
    %782 = vmatpush1.bf16.msra.mxu0 %v581
    %783 = vmatprep.subr.bf16.mxu0 0
    %784 = vmatpush1.bf16.msra.mxu0 %v582
    %785 = vmatprep.subr.bf16.mxu0 0
    %786 = vmatpush1.bf16.msra.mxu0 0
    %787 = vmatprep.subr.bf16.mxu0 0
    %788 = vmatpush1.bf16.msra.mxu0 0
    %789 = vmatprep.subr.bf16.mxu0 0
    %790 = vmatpush1.bf16.msra.mxu0 0
    %791 = vmatprep.subr.bf16.mxu0 0
    %792 = vmatpush1.bf16.msra.mxu0 0
    %793 = vmatprep.subr.bf16.mxu0 0
    %794 = vmatpush1.bf16.msra.mxu0 0
    %795 = vmatprep.subr.bf16.mxu0 0
    %796 = vmatpush1.bf16.msra.mxu0 0
    %797 = vmatprep.subr.bf16.mxu0 0
    %798 = vmatpush1.bf16.msra.mxu0 0
    %799 = vmatprep.subr.bf16.mxu0 0
    %800 = vmatpush1.bf16.msra.mxu0 0
    %801 = vmatprep.subr.bf16.mxu0 0
    %802 = vmatpush1.bf16.msra.mxu0 0
    %803 = vmatprep.subr.bf16.mxu0 0
    %804 = vmatpush1.bf16.msra.mxu0 0
    %805 = vmatprep.subr.bf16.mxu0 0
    %806 = vmatpush1.bf16.msra.mxu0 0
    %807 = vmatprep.subr.bf16.mxu0 0
    %808 = vmatpush1.bf16.msra.mxu0 0
    %809 = vmatprep.mubr.bf16.mxu0 0
    %810 = vmatmul.mubr.bf16.gmra.mrb[0].mxu0 %v766
    %v811 = vpop.f32.mrb[0].mxu0
    %v812 = vadd.f32 0.0, %v811
    %v813 = vpop.f32.mrb[0].mxu0
    %v814 = vpop.f32.mrb[0].mxu0
    %v815 = vadd.f32 0.0, %v814
    %v816 = vpop.f32.mrb[0].mxu0
    %817 = vmatprep.mubr.bf16.mxu0 0
    %818 = vmatmul.mubr.bf16.gmra.mrb[0].mxu0 %v769
    %v819 = vpop.f32.mrb[0].mxu0
    %v820 = vadd.f32 0.0, %v819
    %v821 = vpop.f32.mrb[0].mxu0
    %v822 = vpop.f32.mrb[0].mxu0
    %v823 = vadd.f32 0.0, %v822
    %v824 = vpop.f32.mrb[0].mxu0
    %825 = vmatprep.mubr.bf16.mxu0 0
    %826 = vmatmul.mubr.bf16.gmra.mrb[0].mxu0 %v772
    %v827 = vpop.f32.mrb[0].mxu0
    %v828 = vadd.f32 0.0, %v827
    %v829 = vpop.f32.mrb[0].mxu0
    %v830 = vpop.f32.mrb[0].mxu0
    %v831 = vadd.f32 0.0, %v830
    %v832 = vpop.f32.mrb[0].mxu0
    %833 = vmatprep.mubr.bf16.mxu0 0
    %834 = vmatmul.mubr.bf16.gmra.mrb[0].mxu0 %v775
    %v835 = vpop.f32.mrb[0].mxu0
    %v836 = vadd.f32 0.0, %v835
    %v837 = vpop.f32.mrb[0].mxu0
    %v838 = vpop.f32.mrb[0].mxu0
    %v839 = vadd.f32 0.0, %v838
    %v840 = vpop.f32.mrb[0].mxu0
    %841 = vdwg.mxu0
    %842 = vst.msk [vmem:[#allocation3] sm:$0xff] %vm583, %v812
    %843 = vst.msk [vmem:[#allocation3 + $0x8] sm:$0xff] %vm583, %v815
    %844 = vst.msk [vmem:[#allocation3 + $0x10] sm:$0xff] %vm583, %v820
    %845 = vst.msk [vmem:[#allocation3 + $0x18] sm:$0xff] %vm583, %v823
    %846 = vst.msk [vmem:[#allocation3 + $0x20] sm:$0xff] %vm583, %v828
    %847 = vst.msk [vmem:[#allocation3 + $0x28] sm:$0xff] %vm583, %v831
    %848 = vst.msk [vmem:[#allocation3 + $0x30] sm:$0xff] %vm583, %v836
    %849 = vst.msk [vmem:[#allocation3 + $0x38] sm:$0xff] %vm583, %v839
    %v850 = vld [vmem:[#allocation2 + $0xc0] sm:$0xff]
    %v851 = vld [vmem:[#allocation2 + $0xd8] sm:$0xff]
    %v852 = vld [vmem:[#allocation2 + $0xf0] sm:$0xff]
    %v853 = vld [vmem:[#allocation2 + $0x108] sm:$0xff]
    %v854 = vld [vmem:[#allocation2 + $0x120] sm:$0xff]
    %v855 = vld [vmem:[#allocation2 + $0x138] sm:$0xff]
    %v856 = vld [vmem:[#allocation2 + $0x150] sm:$0xff]
    %v857 = vld [vmem:[#allocation2 + $0x168] sm:$0xff]
    %v858 = vpack.c.bf16 %v851, %v850
    %v859 = vpack.c.bf16 %v853, %v852
    %v860 = vpack.c.bf16 %v855, %v854
    %v861 = vpack.c.bf16 %v857, %v856
    %v862 = vld [vmem:[#allocation2 + $0xc8] sm:$0xff]
    %v863 = vld [vmem:[#allocation2 + $0xe0] sm:$0xff]
    %v864 = vld [vmem:[#allocation2 + $0xf8] sm:$0xff]
    %v865 = vld [vmem:[#allocation2 + $0x110] sm:$0xff]
    %v866 = vld [vmem:[#allocation2 + $0x128] sm:$0xff]
    %v867 = vld [vmem:[#allocation2 + $0x140] sm:$0xff]
    %v868 = vld [vmem:[#allocation2 + $0x158] sm:$0xff]
    %v869 = vld [vmem:[#allocation2 + $0x170] sm:$0xff]
    %v870 = vpack.c.bf16 %v863, %v862
    %v871 = vpack.c.bf16 %v865, %v864
    %v872 = vpack.c.bf16 %v867, %v866
    %v873 = vpack.c.bf16 %v869, %v868
    %v874 = vld [vmem:[#allocation2 + $0xd0] sm:$0xff]
    %v875 = vld [vmem:[#allocation2 + $0xe8] sm:$0xff]
    %v876 = vld [vmem:[#allocation2 + $0x100] sm:$0xff]
    %v877 = vld [vmem:[#allocation2 + $0x118] sm:$0xff]
    %v878 = vld [vmem:[#allocation2 + $0x130] sm:$0xff]
    %v879 = vld [vmem:[#allocation2 + $0x148] sm:$0xff]
    %v880 = vld [vmem:[#allocation2 + $0x160] sm:$0xff]
    %v881 = vld [vmem:[#allocation2 + $0x178] sm:$0xff]
    %v882 = vpack.c.bf16 %v875, %v874
    %v883 = vpack.c.bf16 %v877, %v876
    %v884 = vpack.c.bf16 %v879, %v878
    %v885 = vpack.c.bf16 %v881, %v880
    %v887 = vsel %vm583, %v858, 0
    %v890 = vsel %vm583, %v859, 0
    %v893 = vsel %vm583, %v860, 0
    %v896 = vsel %vm583, %v861, 0
    %v899 = vsel %vm583, %v870, 0
    %v902 = vsel %vm583, %v871, 0
    %v905 = vsel %vm583, %v872, 0
    %v908 = vsel %vm583, %v873, 0
    %910 = vmatprep.subr.bf16.mxu0 0
    %911 = vmatpush1.bf16.xpose.msra.mxu0 %v899
    %912 = vmatprep.subr.bf16.mxu0 0
    %913 = vmatpush1.bf16.xpose.msra.mxu0 %v902
    %914 = vmatprep.subr.bf16.mxu0 0
    %915 = vmatpush1.bf16.xpose.msra.mxu0 %v905
    %916 = vmatprep.subr.bf16.mxu0 0
    %917 = vmatpush1.bf16.xpose.msra.mxu0 %v908
    %918 = vmatprep.subr.bf16.mxu0 0
    %919 = vmatpush1.bf16.xpose.msra.mxu0 0
    %920 = vmatprep.subr.bf16.mxu0 0
    %921 = vmatpush1.bf16.xpose.msra.mxu0 0
    %922 = vmatprep.subr.bf16.mxu0 0
    %923 = vmatpush1.bf16.xpose.msra.mxu0 0
    %924 = vmatprep.subr.bf16.mxu0 0
    %925 = vmatpush1.bf16.xpose.msra.mxu0 0
    %926 = vmatprep.subr.bf16.mxu0 0
    %927 = vmatpush1.bf16.xpose.msra.mxu0 0
    %928 = vmatprep.subr.bf16.mxu0 0
    %929 = vmatpush1.bf16.xpose.msra.mxu0 0
    %930 = vmatprep.subr.bf16.mxu0 0
    %931 = vmatpush1.bf16.xpose.msra.mxu0 0
    %932 = vmatprep.subr.bf16.mxu0 0
    %933 = vmatpush1.bf16.xpose.msra.mxu0 0
    %934 = vmatprep.subr.bf16.mxu0 0
    %935 = vmatpush1.bf16.xpose.msra.mxu0 0
    %936 = vmatprep.subr.bf16.mxu0 0
    %937 = vmatpush1.bf16.xpose.msra.mxu0 0
    %938 = vmatprep.subr.bf16.mxu0 0
    %939 = vmatpush1.bf16.xpose.msra.mxu0 0
    %940 = vmatprep.subr.bf16.mxu0 0
    %941 = vmatpush1.bf16.xpose.msra.mxu0 0
    %942 = vmatprep.mubr.bf16.mxu0 0
    %943 = vmatmul.mubr.bf16.gmra.mrb[0].mxu0 %v887
    %v944 = vpop.f32.mrb[0].mxu0
    %v945 = vadd.f32 %v539, %v944
    %v946 = vpop.f32.mrb[0].mxu0
    %v947 = vpop.f32.mrb[0].mxu0
    %v948 = vadd.f32 %v540, %v947
    %v949 = vpop.f32.mrb[0].mxu0
    %950 = vmatprep.mubr.bf16.mxu0 0
    %951 = vmatmul.mubr.bf16.gmra.mrb[0].mxu0 %v890
    %v952 = vpop.f32.mrb[0].mxu0
    %v953 = vadd.f32 %v541, %v952
    %v954 = vpop.f32.mrb[0].mxu0
    %v955 = vpop.f32.mrb[0].mxu0
    %v956 = vadd.f32 %v542, %v955
    %v957 = vpop.f32.mrb[0].mxu0
    %958 = vmatprep.mubr.bf16.mxu0 0
    %959 = vmatmul.mubr.bf16.gmra.mrb[0].mxu0 %v893
    %v960 = vpop.f32.mrb[0].mxu0
    %v961 = vadd.f32 %v543, %v960
    %v962 = vpop.f32.mrb[0].mxu0
    %v963 = vpop.f32.mrb[0].mxu0
    %v964 = vadd.f32 %v544, %v963
    %v965 = vpop.f32.mrb[0].mxu0
    %966 = vmatprep.mubr.bf16.mxu0 0
    %967 = vmatmul.mubr.bf16.gmra.mrb[0].mxu0 %v896
    %v968 = vpop.f32.mrb[0].mxu0
    %v969 = vadd.f32 %v545, %v968
    %v970 = vpop.f32.mrb[0].mxu0
    %v971 = vpop.f32.mrb[0].mxu0
    %v972 = vadd.f32 %v546, %v971
    %v973 = vpop.f32.mrb[0].mxu0
    %974 = vdwg.mxu0
    %v975 = vsel %vm583, %v945, -inf
    %976 = vmax.xlane.f32.xlu0 %v975
    %v977 = vpop.xlane.xlu0 %976
    %v978 = vsel %vm583, %v948, -inf
    %979 = vmax.xlane.f32.xlu0 %v978
    %v980 = vpop.xlane.xlu0 %979
    %v981 = vsel %vm583, %v953, -inf
    %982 = vmax.xlane.f32.xlu0 %v981
    %v983 = vpop.xlane.xlu0 %982
    %v984 = vsel %vm583, %v956, -inf
    %985 = vmax.xlane.f32.xlu0 %v984
    %v986 = vpop.xlane.xlu0 %985
    %v987 = vsel %vm583, %v961, -inf
    %988 = vmax.xlane.f32.xlu0 %v987
    %v989 = vpop.xlane.xlu0 %988
    %v990 = vsel %vm583, %v964, -inf
    %991 = vmax.xlane.f32.xlu0 %v990
    %v992 = vpop.xlane.xlu0 %991
    %v993 = vsel %vm583, %v969, -inf
    %994 = vmax.xlane.f32.xlu0 %v993
    %v995 = vpop.xlane.xlu0 %994
    %v996 = vsel %vm583, %v972, -inf
    %997 = vmax.xlane.f32.xlu0 %v996
    %v998 = vpop.xlane.xlu0 %997
    %v999 = vsub.f32 %v945, %v977
    %v1000 = vsub.f32 %v948, %v980
    %v1001 = vsub.f32 %v953, %v983
    %v1002 = vsub.f32 %v956, %v986
    %v1003 = vsub.f32 %v961, %v989
    %v1004 = vsub.f32 %v964, %v992
    %v1005 = vsub.f32 %v969, %v995
    %v1006 = vsub.f32 %v972, %v998
    %v1007 = vmul.f32 %v999, 1.442695
    %v1008 = vpow.pop %v1007
    %v1009 = vmul.f32 %v1000, 1.442695
    %v1010 = vpow.pop %v1009
    %v1011 = vmul.f32 %v1001, 1.442695
    %v1012 = vpow.pop %v1011
    %v1013 = vmul.f32 %v1002, 1.442695
    %v1014 = vpow.pop %v1013
    %v1015 = vmul.f32 %v1003, 1.442695
    %v1016 = vpow.pop %v1015
    %v1017 = vmul.f32 %v1004, 1.442695
    %v1018 = vpow.pop %v1017
    %v1019 = vmul.f32 %v1005, 1.442695
    %v1020 = vpow.pop %v1019
    %v1021 = vmul.f32 %v1006, 1.442695
    %v1022 = vpow.pop %v1021
    %v1023 = vsel %vm583, %v1008, 0.0
    %1024 = vadd.xlane.f32.xlu0 %v1023
    %v1025 = vpop.xlane.xlu0 %1024
    %v1026 = vsel %vm583, %v1010, 0.0
    %1027 = vadd.xlane.f32.xlu0 %v1026
    %v1028 = vpop.xlane.xlu0 %1027
    %v1029 = vsel %vm583, %v1012, 0.0
    %1030 = vadd.xlane.f32.xlu0 %v1029
    %v1031 = vpop.xlane.xlu0 %1030
    %v1032 = vsel %vm583, %v1014, 0.0
    %1033 = vadd.xlane.f32.xlu0 %v1032
    %v1034 = vpop.xlane.xlu0 %1033
    %v1035 = vsel %vm583, %v1016, 0.0
    %1036 = vadd.xlane.f32.xlu0 %v1035
    %v1037 = vpop.xlane.xlu0 %1036
    %v1038 = vsel %vm583, %v1018, 0.0
    %1039 = vadd.xlane.f32.xlu0 %v1038
    %v1040 = vpop.xlane.xlu0 %1039
    %v1041 = vsel %vm583, %v1020, 0.0
    %1042 = vadd.xlane.f32.xlu0 %v1041
    %v1043 = vpop.xlane.xlu0 %1042
    %v1044 = vsel %vm583, %v1022, 0.0
    %1045 = vadd.xlane.f32.xlu0 %v1044
    %v1046 = vpop.xlane.xlu0 %1045
    %v1047 = vrcp.pop %v1025
    %v1048 = vrcp.pop %v1028
    %v1049 = vrcp.pop %v1031
    %v1050 = vrcp.pop %v1034
    %v1051 = vrcp.pop %v1037
    %v1052 = vrcp.pop %v1040
    %v1053 = vrcp.pop %v1043
    %v1054 = vrcp.pop %v1046
    %v1055 = vmul.f32 %v1008, %v1047
    %v1056 = vmul.f32 %v1010, %v1048
    %v1057 = vmul.f32 %v1012, %v1049
    %v1058 = vmul.f32 %v1014, %v1050
    %v1059 = vmul.f32 %v1016, %v1051
    %v1060 = vmul.f32 %v1018, %v1052
    %v1061 = vmul.f32 %v1020, %v1053
    %v1062 = vmul.f32 %v1022, %v1054
    %v1063 = vpack.c.bf16 %v1056, %v1055
    %v1064 = vpack.c.bf16 %v1058, %v1057
    %v1065 = vpack.c.bf16 %v1060, %v1059
    %v1066 = vpack.c.bf16 %v1062, %v1061
    %v1068 = vsel %vm583, %v1063, 0
    %v1071 = vsel %vm583, %v1064, 0
    %v1074 = vsel %vm583, %v1065, 0
    %v1077 = vsel %vm583, %v1066, 0
    %1079 = vmatprep.subr.bf16.mxu0 0
    %1080 = vmatpush1.bf16.msra.mxu0 %v882
    %1081 = vmatprep.subr.bf16.mxu0 0
    %1082 = vmatpush1.bf16.msra.mxu0 %v883
    %1083 = vmatprep.subr.bf16.mxu0 0
    %1084 = vmatpush1.bf16.msra.mxu0 %v884
    %1085 = vmatprep.subr.bf16.mxu0 0
    %1086 = vmatpush1.bf16.msra.mxu0 %v885
    %1087 = vmatprep.subr.bf16.mxu0 0
    %1088 = vmatpush1.bf16.msra.mxu0 0
    %1089 = vmatprep.subr.bf16.mxu0 0
    %1090 = vmatpush1.bf16.msra.mxu0 0
    %1091 = vmatprep.subr.bf16.mxu0 0
    %1092 = vmatpush1.bf16.msra.mxu0 0
    %1093 = vmatprep.subr.bf16.mxu0 0
    %1094 = vmatpush1.bf16.msra.mxu0 0
    %1095 = vmatprep.subr.bf16.mxu0 0
    %1096 = vmatpush1.bf16.msra.mxu0 0
    %1097 = vmatprep.subr.bf16.mxu0 0
    %1098 = vmatpush1.bf16.msra.mxu0 0
    %1099 = vmatprep.subr.bf16.mxu0 0
    %1100 = vmatpush1.bf16.msra.mxu0 0
    %1101 = vmatprep.subr.bf16.mxu0 0
    %1102 = vmatpush1.bf16.msra.mxu0 0
    %1103 = vmatprep.subr.bf16.mxu0 0
    %1104 = vmatpush1.bf16.msra.mxu0 0
    %1105 = vmatprep.subr.bf16.mxu0 0
    %1106 = vmatpush1.bf16.msra.mxu0 0
    %1107 = vmatprep.subr.bf16.mxu0 0
    %1108 = vmatpush1.bf16.msra.mxu0 0
    %1109 = vmatprep.subr.bf16.mxu0 0
    %1110 = vmatpush1.bf16.msra.mxu0 0
    %1111 = vmatprep.mubr.bf16.mxu0 0
    %1112 = vmatmul.mubr.bf16.gmra.mrb[0].mxu0 %v1068
    %v1113 = vpop.f32.mrb[0].mxu0
    %v1114 = vadd.f32 0.0, %v1113
    %v1115 = vpop.f32.mrb[0].mxu0
    %v1116 = vpop.f32.mrb[0].mxu0
    %v1117 = vadd.f32 0.0, %v1116
    %v1118 = vpop.f32.mrb[0].mxu0
    %1119 = vmatprep.mubr.bf16.mxu0 0
    %1120 = vmatmul.mubr.bf16.gmra.mrb[0].mxu0 %v1071
    %v1121 = vpop.f32.mrb[0].mxu0
    %v1122 = vadd.f32 0.0, %v1121
    %v1123 = vpop.f32.mrb[0].mxu0
    %v1124 = vpop.f32.mrb[0].mxu0
    %v1125 = vadd.f32 0.0, %v1124
    %v1126 = vpop.f32.mrb[0].mxu0
    %1127 = vmatprep.mubr.bf16.mxu0 0
    %1128 = vmatmul.mubr.bf16.gmra.mrb[0].mxu0 %v1074
    %v1129 = vpop.f32.mrb[0].mxu0
    %v1130 = vadd.f32 0.0, %v1129
    %v1131 = vpop.f32.mrb[0].mxu0
    %v1132 = vpop.f32.mrb[0].mxu0
    %v1133 = vadd.f32 0.0, %v1132
    %v1134 = vpop.f32.mrb[0].mxu0
    %1135 = vmatprep.mubr.bf16.mxu0 0
    %1136 = vmatmul.mubr.bf16.gmra.mrb[0].mxu0 %v1077
    %v1137 = vpop.f32.mrb[0].mxu0
    %v1138 = vadd.f32 0.0, %v1137
    %v1139 = vpop.f32.mrb[0].mxu0
    %v1140 = vpop.f32.mrb[0].mxu0
    %v1141 = vadd.f32 0.0, %v1140
    %v1142 = vpop.f32.mrb[0].mxu0
    %1143 = vdwg.mxu0
    %1144 = vst.msk [vmem:[#allocation3 + $0x40] sm:$0xff] %vm583, %v1114
    %1145 = vst.msk [vmem:[#allocation3 + $0x48] sm:$0xff] %vm583, %v1117
    %1146 = vst.msk [vmem:[#allocation3 + $0x50] sm:$0xff] %vm583, %v1122
    %1147 = vst.msk [vmem:[#allocation3 + $0x58] sm:$0xff] %vm583, %v1125
    %1148 = vst.msk [vmem:[#allocation3 + $0x60] sm:$0xff] %vm583, %v1130
    %1149 = vst.msk [vmem:[#allocation3 + $0x68] sm:$0xff] %vm583, %v1133
    %1150 = vst.msk [vmem:[#allocation3 + $0x70] sm:$0xff] %vm583, %v1138
    %1151 = vst.msk [vmem:[#allocation3 + $0x78] sm:$0xff] %vm583, %v1141
    %v1152 = vld [vmem:[#allocation2] sm:$0xff]
    %v1153 = vld [vmem:[#allocation2 + $0x18] sm:$0xff]
    %v1154 = vld [vmem:[#allocation2 + $0x30] sm:$0xff]
    %v1155 = vld [vmem:[#allocation2 + $0x48] sm:$0xff]
    %v1156 = vld [vmem:[#allocation2 + $0x60] sm:$0xff]
    %v1157 = vld [vmem:[#allocation2 + $0x78] sm:$0xff]
    %v1158 = vld [vmem:[#allocation2 + $0x90] sm:$0xff]
    %v1159 = vld [vmem:[#allocation2 + $0xa8] sm:$0xff]
    %v1160 = vpack.c.bf16 %v1153, %v1152
    %v1161 = vpack.c.bf16 %v1155, %v1154
    %v1162 = vpack.c.bf16 %v1157, %v1156
    %v1163 = vpack.c.bf16 %v1159, %v1158
    %v1164 = vld [vmem:[#allocation2 + $0x8] sm:$0xff]
    %v1165 = vld [vmem:[#allocation2 + $0x20] sm:$0xff]
    %v1166 = vld [vmem:[#allocation2 + $0x38] sm:$0xff]
    %v1167 = vld [vmem:[#allocation2 + $0x50] sm:$0xff]
    %v1168 = vld [vmem:[#allocation2 + $0x68] sm:$0xff]
    %v1169 = vld [vmem:[#allocation2 + $0x80] sm:$0xff]
    %v1170 = vld [vmem:[#allocation2 + $0x98] sm:$0xff]
    %v1171 = vld [vmem:[#allocation2 + $0xb0] sm:$0xff]
    %v1172 = vpack.c.bf16 %v1165, %v1164
    %v1173 = vpack.c.bf16 %v1167, %v1166
    %v1174 = vpack.c.bf16 %v1169, %v1168
    %v1175 = vpack.c.bf16 %v1171, %v1170
    %v1176 = vld [vmem:[#allocation2 + $0x10] sm:$0xff]
    %v1177 = vld [vmem:[#allocation2 + $0x28] sm:$0xff]
    %v1178 = vld [vmem:[#allocation2 + $0x40] sm:$0xff]
    %v1179 = vld [vmem:[#allocation2 + $0x58] sm:$0xff]
    %v1180 = vld [vmem:[#allocation2 + $0x70] sm:$0xff]
    %v1181 = vld [vmem:[#allocation2 + $0x88] sm:$0xff]
    %v1182 = vld [vmem:[#allocation2 + $0xa0] sm:$0xff]
    %v1183 = vld [vmem:[#allocation2 + $0xb8] sm:$0xff]
    %v1184 = vpack.c.bf16 %v1177, %v1176
    %v1185 = vpack.c.bf16 %v1179, %v1178
    %v1186 = vpack.c.bf16 %v1181, %v1180
    %v1187 = vpack.c.bf16 %v1183, %v1182
    %1192 = vrot.lane.b32.xlu0 %v1160, 64
    %v1193 = vpop.permute.xlu0 %1192
    %1194 = vrot.lane.b32.xlu0 %v1161, 64
    %v1195 = vpop.permute.xlu0 %1194
    %1196 = vrot.lane.b32.xlu0 %v1162, 64
    %v1197 = vpop.permute.xlu0 %1196
    %1198 = vrot.lane.b32.xlu0 %v1163, 64
    %v1199 = vpop.permute.xlu0 %1198
    %1204 = vrot.lane.b32.xlu0 %v1172, 64
    %v1205 = vpop.permute.xlu0 %1204
    %1206 = vrot.lane.b32.xlu0 %v1173, 64
    %v1207 = vpop.permute.xlu0 %1206
    %1208 = vrot.lane.b32.xlu0 %v1174, 64
    %v1209 = vpop.permute.xlu0 %1208
    %1210 = vrot.lane.b32.xlu0 %v1175, 64
    %v1211 = vpop.permute.xlu0 %1210
    %v1213 = vsel %vm583, %v1193, 0
    %v1216 = vsel %vm583, %v1195, 0
    %v1219 = vsel %vm583, %v1197, 0
    %v1222 = vsel %vm583, %v1199, 0
    %v1225 = vsel %vm583, %v1205, 0
    %v1228 = vsel %vm583, %v1207, 0
    %v1231 = vsel %vm583, %v1209, 0
    %v1234 = vsel %vm583, %v1211, 0
    %1236 = vmatprep.subr.bf16.mxu0 0
    %1237 = vmatpush1.bf16.xpose.msra.mxu0 %v1225
    %1238 = vmatprep.subr.bf16.mxu0 0
    %1239 = vmatpush1.bf16.xpose.msra.mxu0 %v1228
    %1240 = vmatprep.subr.bf16.mxu0 0
    %1241 = vmatpush1.bf16.xpose.msra.mxu0 %v1231
    %1242 = vmatprep.subr.bf16.mxu0 0
    %1243 = vmatpush1.bf16.xpose.msra.mxu0 %v1234
    %1244 = vmatprep.subr.bf16.mxu0 0
    %1245 = vmatpush1.bf16.xpose.msra.mxu0 0
    %1246 = vmatprep.subr.bf16.mxu0 0
    %1247 = vmatpush1.bf16.xpose.msra.mxu0 0
    %1248 = vmatprep.subr.bf16.mxu0 0
    %1249 = vmatpush1.bf16.xpose.msra.mxu0 0
    %1250 = vmatprep.subr.bf16.mxu0 0
    %1251 = vmatpush1.bf16.xpose.msra.mxu0 0
    %1252 = vmatprep.subr.bf16.mxu0 0
    %1253 = vmatpush1.bf16.xpose.msra.mxu0 0
    %1254 = vmatprep.subr.bf16.mxu0 0
    %1255 = vmatpush1.bf16.xpose.msra.mxu0 0
    %1256 = vmatprep.subr.bf16.mxu0 0
    %1257 = vmatpush1.bf16.xpose.msra.mxu0 0
    %1258 = vmatprep.subr.bf16.mxu0 0
    %1259 = vmatpush1.bf16.xpose.msra.mxu0 0
    %1260 = vmatprep.subr.bf16.mxu0 0
    %1261 = vmatpush1.bf16.xpose.msra.mxu0 0
    %1262 = vmatprep.subr.bf16.mxu0 0
    %1263 = vmatpush1.bf16.xpose.msra.mxu0 0
    %1264 = vmatprep.subr.bf16.mxu0 0
    %1265 = vmatpush1.bf16.xpose.msra.mxu0 0
    %1266 = vmatprep.subr.bf16.mxu0 0
    %1267 = vmatpush1.bf16.xpose.msra.mxu0 0
    %1268 = vmatprep.mubr.bf16.mxu0 0
    %1269 = vmatmul.mubr.bf16.gmra.mrb[0].mxu0 %v1213
    %v1270 = vpop.f32.mrb[0].mxu0
    %v1271 = vadd.f32 %v539, %v1270
    %v1272 = vpop.f32.mrb[0].mxu0
    %v1273 = vpop.f32.mrb[0].mxu0
    %v1274 = vadd.f32 %v540, %v1273
    %v1275 = vpop.f32.mrb[0].mxu0
    %1276 = vmatprep.mubr.bf16.mxu0 0
    %1277 = vmatmul.mubr.bf16.gmra.mrb[0].mxu0 %v1216
    %v1278 = vpop.f32.mrb[0].mxu0
    %v1279 = vadd.f32 %v541, %v1278
    %v1280 = vpop.f32.mrb[0].mxu0
    %v1281 = vpop.f32.mrb[0].mxu0
    %v1282 = vadd.f32 %v542, %v1281
    %v1283 = vpop.f32.mrb[0].mxu0
    %1284 = vmatprep.mubr.bf16.mxu0 0
    %1285 = vmatmul.mubr.bf16.gmra.mrb[0].mxu0 %v1219
    %v1286 = vpop.f32.mrb[0].mxu0
    %v1287 = vadd.f32 %v543, %v1286
    %v1288 = vpop.f32.mrb[0].mxu0
    %v1289 = vpop.f32.mrb[0].mxu0
    %v1290 = vadd.f32 %v544, %v1289
    %v1291 = vpop.f32.mrb[0].mxu0
    %1292 = vmatprep.mubr.bf16.mxu0 0
    %1293 = vmatmul.mubr.bf16.gmra.mrb[0].mxu0 %v1222
    %v1294 = vpop.f32.mrb[0].mxu0
    %v1295 = vadd.f32 %v545, %v1294
    %v1296 = vpop.f32.mrb[0].mxu0
    %v1297 = vpop.f32.mrb[0].mxu0
    %v1298 = vadd.f32 %v546, %v1297
    %v1299 = vpop.f32.mrb[0].mxu0
    %1300 = vdwg.mxu0
    %v1301 = vsel %vm583, %v1271, -inf
    %1302 = vmax.xlane.f32.xlu0 %v1301
    %v1303 = vpop.xlane.xlu0 %1302
    %v1304 = vsel %vm583, %v1274, -inf
    %1305 = vmax.xlane.f32.xlu0 %v1304
    %v1306 = vpop.xlane.xlu0 %1305
    %v1307 = vsel %vm583, %v1279, -inf
    %1308 = vmax.xlane.f32.xlu0 %v1307
    %v1309 = vpop.xlane.xlu0 %1308
    %v1310 = vsel %vm583, %v1282, -inf
    %1311 = vmax.xlane.f32.xlu0 %v1310
    %v1312 = vpop.xlane.xlu0 %1311
    %v1313 = vsel %vm583, %v1287, -inf
    %1314 = vmax.xlane.f32.xlu0 %v1313
    %v1315 = vpop.xlane.xlu0 %1314
    %v1316 = vsel %vm583, %v1290, -inf
    %1317 = vmax.xlane.f32.xlu0 %v1316
    %v1318 = vpop.xlane.xlu0 %1317
    %v1319 = vsel %vm583, %v1295, -inf
    %1320 = vmax.xlane.f32.xlu0 %v1319
    %v1321 = vpop.xlane.xlu0 %1320
    %v1322 = vsel %vm583, %v1298, -inf
    %1323 = vmax.xlane.f32.xlu0 %v1322
    %v1324 = vpop.xlane.xlu0 %1323
    %v1325 = vsub.f32 %v1271, %v1303
    %v1326 = vsub.f32 %v1274, %v1306
    %v1327 = vsub.f32 %v1279, %v1309
    %v1328 = vsub.f32 %v1282, %v1312
    %v1329 = vsub.f32 %v1287, %v1315
    %v1330 = vsub.f32 %v1290, %v1318
    %v1331 = vsub.f32 %v1295, %v1321
    %v1332 = vsub.f32 %v1298, %v1324
    %v1333 = vmul.f32 %v1325, 1.442695
    %v1334 = vpow.pop %v1333
    %v1335 = vmul.f32 %v1326, 1.442695
    %v1336 = vpow.pop %v1335
    %v1337 = vmul.f32 %v1327, 1.442695
    %v1338 = vpow.pop %v1337
    %v1339 = vmul.f32 %v1328, 1.442695
    %v1340 = vpow.pop %v1339
    %v1341 = vmul.f32 %v1329, 1.442695
    %v1342 = vpow.pop %v1341
    %v1343 = vmul.f32 %v1330, 1.442695
    %v1344 = vpow.pop %v1343
    %v1345 = vmul.f32 %v1331, 1.442695
    %v1346 = vpow.pop %v1345
    %v1347 = vmul.f32 %v1332, 1.442695
    %v1348 = vpow.pop %v1347
    %v1349 = vsel %vm583, %v1334, 0.0
    %1350 = vadd.xlane.f32.xlu0 %v1349
    %v1351 = vpop.xlane.xlu0 %1350
    %v1352 = vsel %vm583, %v1336, 0.0
    %1353 = vadd.xlane.f32.xlu0 %v1352
    %v1354 = vpop.xlane.xlu0 %1353
    %v1355 = vsel %vm583, %v1338, 0.0
    %1356 = vadd.xlane.f32.xlu0 %v1355
    %v1357 = vpop.xlane.xlu0 %1356
    %v1358 = vsel %vm583, %v1340, 0.0
    %1359 = vadd.xlane.f32.xlu0 %v1358
    %v1360 = vpop.xlane.xlu0 %1359
    %v1361 = vsel %vm583, %v1342, 0.0
    %1362 = vadd.xlane.f32.xlu0 %v1361
    %v1363 = vpop.xlane.xlu0 %1362
    %v1364 = vsel %vm583, %v1344, 0.0
    %1365 = vadd.xlane.f32.xlu0 %v1364
    %v1366 = vpop.xlane.xlu0 %1365
    %v1367 = vsel %vm583, %v1346, 0.0
    %1368 = vadd.xlane.f32.xlu0 %v1367
    %v1369 = vpop.xlane.xlu0 %1368
    %v1370 = vsel %vm583, %v1348, 0.0
    %1371 = vadd.xlane.f32.xlu0 %v1370
    %v1372 = vpop.xlane.xlu0 %1371
    %v1373 = vrcp.pop %v1351
    %v1374 = vrcp.pop %v1354
    %v1375 = vrcp.pop %v1357
    %v1376 = vrcp.pop %v1360
    %v1377 = vrcp.pop %v1363
    %v1378 = vrcp.pop %v1366
    %v1379 = vrcp.pop %v1369
    %v1380 = vrcp.pop %v1372
    %v1381 = vmul.f32 %v1334, %v1373
    %v1382 = vmul.f32 %v1336, %v1374
    %v1383 = vmul.f32 %v1338, %v1375
    %v1384 = vmul.f32 %v1340, %v1376
    %v1385 = vmul.f32 %v1342, %v1377
    %v1386 = vmul.f32 %v1344, %v1378
    %v1387 = vmul.f32 %v1346, %v1379
    %v1388 = vmul.f32 %v1348, %v1380
    %v1389 = vpack.c.bf16 %v1382, %v1381
    %v1390 = vpack.c.bf16 %v1384, %v1383
    %v1391 = vpack.c.bf16 %v1386, %v1385
    %v1392 = vpack.c.bf16 %v1388, %v1387
    %1397 = vrot.lane.b32.xlu0 %v1184, 64
    %v1398 = vpop.permute.xlu0 %1397
    %1399 = vrot.lane.b32.xlu0 %v1185, 64
    %v1400 = vpop.permute.xlu0 %1399
    %1401 = vrot.lane.b32.xlu0 %v1186, 64
    %v1402 = vpop.permute.xlu0 %1401
    %1403 = vrot.lane.b32.xlu0 %v1187, 64
    %v1404 = vpop.permute.xlu0 %1403
    %v1410 = vsel %vm583, %v1389, 0
    %v1413 = vsel %vm583, %v1390, 0
    %v1416 = vsel %vm583, %v1391, 0
    %v1419 = vsel %vm583, %v1392, 0
    %1421 = vmatprep.subr.bf16.mxu0 0
    %1422 = vmatpush1.bf16.msra.mxu0 %v1398
    %1423 = vmatprep.subr.bf16.mxu0 0
    %1424 = vmatpush1.bf16.msra.mxu0 %v1400
    %1425 = vmatprep.subr.bf16.mxu0 0
    %1426 = vmatpush1.bf16.msra.mxu0 %v1402
    %1427 = vmatprep.subr.bf16.mxu0 0
    %1428 = vmatpush1.bf16.msra.mxu0 %v1404
    %1429 = vmatprep.subr.bf16.mxu0 0
    %1430 = vmatpush1.bf16.msra.mxu0 0
    %1431 = vmatprep.subr.bf16.mxu0 0
    %1432 = vmatpush1.bf16.msra.mxu0 0
    %1433 = vmatprep.subr.bf16.mxu0 0
    %1434 = vmatpush1.bf16.msra.mxu0 0
    %1435 = vmatprep.subr.bf16.mxu0 0
    %1436 = vmatpush1.bf16.msra.mxu0 0
    %1437 = vmatprep.subr.bf16.mxu0 0
    %1438 = vmatpush1.bf16.msra.mxu0 0
    %1439 = vmatprep.subr.bf16.mxu0 0
    %1440 = vmatpush1.bf16.msra.mxu0 0
    %1441 = vmatprep.subr.bf16.mxu0 0
    %1442 = vmatpush1.bf16.msra.mxu0 0
    %1443 = vmatprep.subr.bf16.mxu0 0
    %1444 = vmatpush1.bf16.msra.mxu0 0
    %1445 = vmatprep.subr.bf16.mxu0 0
    %1446 = vmatpush1.bf16.msra.mxu0 0
    %1447 = vmatprep.subr.bf16.mxu0 0
    %1448 = vmatpush1.bf16.msra.mxu0 0
    %1449 = vmatprep.subr.bf16.mxu0 0
    %1450 = vmatpush1.bf16.msra.mxu0 0
    %1451 = vmatprep.subr.bf16.mxu0 0
    %1452 = vmatpush1.bf16.msra.mxu0 0
    %1453 = vmatprep.mubr.bf16.mxu0 0
    %1454 = vmatmul.mubr.bf16.gmra.mrb[0].mxu0 %v1410
    %v1455 = vpop.f32.mrb[0].mxu0
    %v1456 = vadd.f32 0.0, %v1455
    %v1457 = vpop.f32.mrb[0].mxu0
    %v1458 = vpop.f32.mrb[0].mxu0
    %v1459 = vadd.f32 0.0, %v1458
    %v1460 = vpop.f32.mrb[0].mxu0
    %1461 = vmatprep.mubr.bf16.mxu0 0
    %1462 = vmatmul.mubr.bf16.gmra.mrb[0].mxu0 %v1413
    %v1463 = vpop.f32.mrb[0].mxu0
    %v1464 = vadd.f32 0.0, %v1463
    %v1465 = vpop.f32.mrb[0].mxu0
    %v1466 = vpop.f32.mrb[0].mxu0
    %v1467 = vadd.f32 0.0, %v1466
    %v1468 = vpop.f32.mrb[0].mxu0
    %1469 = vmatprep.mubr.bf16.mxu0 0
    %1470 = vmatmul.mubr.bf16.gmra.mrb[0].mxu0 %v1416
    %v1471 = vpop.f32.mrb[0].mxu0
    %v1472 = vadd.f32 0.0, %v1471
    %v1473 = vpop.f32.mrb[0].mxu0
    %v1474 = vpop.f32.mrb[0].mxu0
    %v1475 = vadd.f32 0.0, %v1474
    %v1476 = vpop.f32.mrb[0].mxu0
    %1477 = vmatprep.mubr.bf16.mxu0 0
    %1478 = vmatmul.mubr.bf16.gmra.mrb[0].mxu0 %v1419
    %v1479 = vpop.f32.mrb[0].mxu0
    %v1480 = vadd.f32 0.0, %v1479
    %v1481 = vpop.f32.mrb[0].mxu0
    %v1482 = vpop.f32.mrb[0].mxu0
    %v1483 = vadd.f32 0.0, %v1482
    %v1484 = vpop.f32.mrb[0].mxu0
    %1485 = vdwg.mxu0
    %1494 = vrot.lane.b32.xlu0 %v1456, 64
    %v1495 = vpop.permute.xlu0 %1494
    %1496 = vrot.lane.b32.xlu0 %v1459, 64
    %v1497 = vpop.permute.xlu0 %1496
    %1498 = vrot.lane.b32.xlu0 %v1464, 64
    %v1499 = vpop.permute.xlu0 %1498
    %1500 = vrot.lane.b32.xlu0 %v1467, 64
    %v1501 = vpop.permute.xlu0 %1500
    %1502 = vrot.lane.b32.xlu0 %v1472, 64
    %v1503 = vpop.permute.xlu0 %1502
    %1504 = vrot.lane.b32.xlu0 %v1475, 64
    %v1505 = vpop.permute.xlu0 %1504
    %1506 = vrot.lane.b32.xlu0 %v1480, 64
    %v1507 = vpop.permute.xlu0 %1506
    %1508 = vrot.lane.b32.xlu0 %v1483, 64
    %v1509 = vpop.permute.xlu0 %1508
    %vm1518 = vcmask 1048064
    %1519 = vst.msk [vmem:[#allocation3] sm:$0xff] %vm1518, %v1495
    %1520 = vst.msk [vmem:[#allocation3 + $0x8] sm:$0xff] %vm1518, %v1497
    %1521 = vst.msk [vmem:[#allocation3 + $0x10] sm:$0xff] %vm1518, %v1499
    %1522 = vst.msk [vmem:[#allocation3 + $0x18] sm:$0xff] %vm1518, %v1501
    %1523 = vst.msk [vmem:[#allocation3 + $0x20] sm:$0xff] %vm1518, %v1503
    %1524 = vst.msk [vmem:[#allocation3 + $0x28] sm:$0xff] %vm1518, %v1505
    %1525 = vst.msk [vmem:[#allocation3 + $0x30] sm:$0xff] %vm1518, %v1507
    %1526 = vst.msk [vmem:[#allocation3 + $0x38] sm:$0xff] %vm1518, %v1509
    %v1527 = vld [vmem:[#allocation2 + $0xc0] sm:$0xff]
    %v1528 = vld [vmem:[#allocation2 + $0xd8] sm:$0xff]
    %v1529 = vld [vmem:[#allocation2 + $0xf0] sm:$0xff]
    %v1530 = vld [vmem:[#allocation2 + $0x108] sm:$0xff]
    %v1531 = vld [vmem:[#allocation2 + $0x120] sm:$0xff]
    %v1532 = vld [vmem:[#allocation2 + $0x138] sm:$0xff]
    %v1533 = vld [vmem:[#allocation2 + $0x150] sm:$0xff]
    %v1534 = vld [vmem:[#allocation2 + $0x168] sm:$0xff]
    %v1535 = vpack.c.bf16 %v1528, %v1527
    %v1536 = vpack.c.bf16 %v1530, %v1529
    %v1537 = vpack.c.bf16 %v1532, %v1531
    %v1538 = vpack.c.bf16 %v1534, %v1533
    %v1539 = vld [vmem:[#allocation2 + $0xc8] sm:$0xff]
    %v1540 = vld [vmem:[#allocation2 + $0xe0] sm:$0xff]
    %v1541 = vld [vmem:[#allocation2 + $0xf8] sm:$0xff]
    %v1542 = vld [vmem:[#allocation2 + $0x110] sm:$0xff]
    %v1543 = vld [vmem:[#allocation2 + $0x128] sm:$0xff]
    %v1544 = vld [vmem:[#allocation2 + $0x140] sm:$0xff]
    %v1545 = vld [vmem:[#allocation2 + $0x158] sm:$0xff]
    %v1546 = vld [vmem:[#allocation2 + $0x170] sm:$0xff]
    %v1547 = vpack.c.bf16 %v1540, %v1539
    %v1548 = vpack.c.bf16 %v1542, %v1541
    %v1549 = vpack.c.bf16 %v1544, %v1543
    %v1550 = vpack.c.bf16 %v1546, %v1545
    %v1551 = vld [vmem:[#allocation2 + $0xd0] sm:$0xff]
    %v1552 = vld [vmem:[#allocation2 + $0xe8] sm:$0xff]
    %v1553 = vld [vmem:[#allocation2 + $0x100] sm:$0xff]
    %v1554 = vld [vmem:[#allocation2 + $0x118] sm:$0xff]
    %v1555 = vld [vmem:[#allocation2 + $0x130] sm:$0xff]
    %v1556 = vld [vmem:[#allocation2 + $0x148] sm:$0xff]
    %v1557 = vld [vmem:[#allocation2 + $0x160] sm:$0xff]
    %v1558 = vld [vmem:[#allocation2 + $0x178] sm:$0xff]
    %v1559 = vpack.c.bf16 %v1552, %v1551
    %v1560 = vpack.c.bf16 %v1554, %v1553
    %v1561 = vpack.c.bf16 %v1556, %v1555
    %v1562 = vpack.c.bf16 %v1558, %v1557
    %1567 = vrot.lane.b32.xlu0 %v1535, 64
    %v1568 = vpop.permute.xlu0 %1567
    %1569 = vrot.lane.b32.xlu0 %v1536, 64
    %v1570 = vpop.permute.xlu0 %1569
    %1571 = vrot.lane.b32.xlu0 %v1537, 64
    %v1572 = vpop.permute.xlu0 %1571
    %1573 = vrot.lane.b32.xlu0 %v1538, 64
    %v1574 = vpop.permute.xlu0 %1573
    %1579 = vrot.lane.b32.xlu0 %v1547, 64
    %v1580 = vpop.permute.xlu0 %1579
    %1581 = vrot.lane.b32.xlu0 %v1548, 64
    %v1582 = vpop.permute.xlu0 %1581
    %1583 = vrot.lane.b32.xlu0 %v1549, 64
    %v1584 = vpop.permute.xlu0 %1583
    %1585 = vrot.lane.b32.xlu0 %v1550, 64
    %v1586 = vpop.permute.xlu0 %1585
    %v1588 = vsel %vm583, %v1568, 0
    %v1591 = vsel %vm583, %v1570, 0
    %v1594 = vsel %vm583, %v1572, 0
    %v1597 = vsel %vm583, %v1574, 0
    %v1600 = vsel %vm583, %v1580, 0
    %v1603 = vsel %vm583, %v1582, 0
    %v1606 = vsel %vm583, %v1584, 0
    %v1609 = vsel %vm583, %v1586, 0
    %1611 = vmatprep.subr.bf16.mxu0 0
    %1612 = vmatpush1.bf16.xpose.msra.mxu0 %v1600
    %1613 = vmatprep.subr.bf16.mxu0 0
    %1614 = vmatpush1.bf16.xpose.msra.mxu0 %v1603
    %1615 = vmatprep.subr.bf16.mxu0 0
    %1616 = vmatpush1.bf16.xpose.msra.mxu0 %v1606
    %1617 = vmatprep.subr.bf16.mxu0 0
    %1618 = vmatpush1.bf16.xpose.msra.mxu0 %v1609
    %1619 = vmatprep.subr.bf16.mxu0 0
    %1620 = vmatpush1.bf16.xpose.msra.mxu0 0
    %1621 = vmatprep.subr.bf16.mxu0 0
    %1622 = vmatpush1.bf16.xpose.msra.mxu0 0
    %1623 = vmatprep.subr.bf16.mxu0 0
    %1624 = vmatpush1.bf16.xpose.msra.mxu0 0
    %1625 = vmatprep.subr.bf16.mxu0 0
    %1626 = vmatpush1.bf16.xpose.msra.mxu0 0
    %1627 = vmatprep.subr.bf16.mxu0 0
    %1628 = vmatpush1.bf16.xpose.msra.mxu0 0
    %1629 = vmatprep.subr.bf16.mxu0 0
    %1630 = vmatpush1.bf16.xpose.msra.mxu0 0
    %1631 = vmatprep.subr.bf16.mxu0 0
    %1632 = vmatpush1.bf16.xpose.msra.mxu0 0
    %1633 = vmatprep.subr.bf16.mxu0 0
    %1634 = vmatpush1.bf16.xpose.msra.mxu0 0
    %1635 = vmatprep.subr.bf16.mxu0 0
    %1636 = vmatpush1.bf16.xpose.msra.mxu0 0
    %1637 = vmatprep.subr.bf16.mxu0 0
    %1638 = vmatpush1.bf16.xpose.msra.mxu0 0
    %1639 = vmatprep.subr.bf16.mxu0 0
    %1640 = vmatpush1.bf16.xpose.msra.mxu0 0
    %1641 = vmatprep.subr.bf16.mxu0 0
    %1642 = vmatpush1.bf16.xpose.msra.mxu0 0
    %1643 = vmatprep.mubr.bf16.mxu0 0
    %1644 = vmatmul.mubr.bf16.gmra.mrb[0].mxu0 %v1588
    %v1645 = vpop.f32.mrb[0].mxu0
    %v1646 = vadd.f32 %v539, %v1645
    %v1647 = vpop.f32.mrb[0].mxu0
    %v1648 = vpop.f32.mrb[0].mxu0
    %v1649 = vadd.f32 %v540, %v1648
    %v1650 = vpop.f32.mrb[0].mxu0
    %1651 = vmatprep.mubr.bf16.mxu0 0
    %1652 = vmatmul.mubr.bf16.gmra.mrb[0].mxu0 %v1591
    %v1653 = vpop.f32.mrb[0].mxu0
    %v1654 = vadd.f32 %v541, %v1653
    %v1655 = vpop.f32.mrb[0].mxu0
    %v1656 = vpop.f32.mrb[0].mxu0
    %v1657 = vadd.f32 %v542, %v1656
    %v1658 = vpop.f32.mrb[0].mxu0
    %1659 = vmatprep.mubr.bf16.mxu0 0
    %1660 = vmatmul.mubr.bf16.gmra.mrb[0].mxu0 %v1594
    %v1661 = vpop.f32.mrb[0].mxu0
    %v1662 = vadd.f32 %v543, %v1661
    %v1663 = vpop.f32.mrb[0].mxu0
    %v1664 = vpop.f32.mrb[0].mxu0
    %v1665 = vadd.f32 %v544, %v1664
    %v1666 = vpop.f32.mrb[0].mxu0
    %1667 = vmatprep.mubr.bf16.mxu0 0
    %1668 = vmatmul.mubr.bf16.gmra.mrb[0].mxu0 %v1597
    %v1669 = vpop.f32.mrb[0].mxu0
    %v1670 = vadd.f32 %v545, %v1669
    %v1671 = vpop.f32.mrb[0].mxu0
    %v1672 = vpop.f32.mrb[0].mxu0
    %v1673 = vadd.f32 %v546, %v1672
    %v1674 = vpop.f32.mrb[0].mxu0
    %1675 = vdwg.mxu0
    %v1676 = vsel %vm583, %v1646, -inf
    %1677 = vmax.xlane.f32.xlu0 %v1676
    %v1678 = vpop.xlane.xlu0 %1677
    %v1679 = vsel %vm583, %v1649, -inf
    %1680 = vmax.xlane.f32.xlu0 %v1679
    %v1681 = vpop.xlane.xlu0 %1680
    %v1682 = vsel %vm583, %v1654, -inf
    %1683 = vmax.xlane.f32.xlu0 %v1682
    %v1684 = vpop.xlane.xlu0 %1683
    %v1685 = vsel %vm583, %v1657, -inf
    %1686 = vmax.xlane.f32.xlu0 %v1685
    %v1687 = vpop.xlane.xlu0 %1686
    %v1688 = vsel %vm583, %v1662, -inf
    %1689 = vmax.xlane.f32.xlu0 %v1688
    %v1690 = vpop.xlane.xlu0 %1689
    %v1691 = vsel %vm583, %v1665, -inf
    %1692 = vmax.xlane.f32.xlu0 %v1691
    %v1693 = vpop.xlane.xlu0 %1692
    %v1694 = vsel %vm583, %v1670, -inf
    %1695 = vmax.xlane.f32.xlu0 %v1694
    %v1696 = vpop.xlane.xlu0 %1695
    %v1697 = vsel %vm583, %v1673, -inf
    %1698 = vmax.xlane.f32.xlu0 %v1697
    %v1699 = vpop.xlane.xlu0 %1698
    %v1700 = vsub.f32 %v1646, %v1678
    %v1701 = vsub.f32 %v1649, %v1681
    %v1702 = vsub.f32 %v1654, %v1684
    %v1703 = vsub.f32 %v1657, %v1687
    %v1704 = vsub.f32 %v1662, %v1690
    %v1705 = vsub.f32 %v1665, %v1693
    %v1706 = vsub.f32 %v1670, %v1696
    %v1707 = vsub.f32 %v1673, %v1699
    %v1708 = vmul.f32 %v1700, 1.442695
    %v1709 = vpow.pop %v1708
    %v1710 = vmul.f32 %v1701, 1.442695
    %v1711 = vpow.pop %v1710
    %v1712 = vmul.f32 %v1702, 1.442695
    %v1713 = vpow.pop %v1712
    %v1714 = vmul.f32 %v1703, 1.442695
    %v1715 = vpow.pop %v1714
    %v1716 = vmul.f32 %v1704, 1.442695
    %v1717 = vpow.pop %v1716
    %v1718 = vmul.f32 %v1705, 1.442695
    %v1719 = vpow.pop %v1718
    %v1720 = vmul.f32 %v1706, 1.442695
    %v1721 = vpow.pop %v1720
    %v1722 = vmul.f32 %v1707, 1.442695
    %v1723 = vpow.pop %v1722
    %v1724 = vsel %vm583, %v1709, 0.0
    %1725 = vadd.xlane.f32.xlu0 %v1724
    %v1726 = vpop.xlane.xlu0 %1725
    %v1727 = vsel %vm583, %v1711, 0.0
    %1728 = vadd.xlane.f32.xlu0 %v1727
    %v1729 = vpop.xlane.xlu0 %1728
    %v1730 = vsel %vm583, %v1713, 0.0
    %1731 = vadd.xlane.f32.xlu0 %v1730
    %v1732 = vpop.xlane.xlu0 %1731
    %v1733 = vsel %vm583, %v1715, 0.0
    %1734 = vadd.xlane.f32.xlu0 %v1733
    %v1735 = vpop.xlane.xlu0 %1734
    %v1736 = vsel %vm583, %v1717, 0.0
    %1737 = vadd.xlane.f32.xlu0 %v1736
    %v1738 = vpop.xlane.xlu0 %1737
    %v1739 = vsel %vm583, %v1719, 0.0
    %1740 = vadd.xlane.f32.xlu0 %v1739
    %v1741 = vpop.xlane.xlu0 %1740
    %v1742 = vsel %vm583, %v1721, 0.0
    %1743 = vadd.xlane.f32.xlu0 %v1742
    %v1744 = vpop.xlane.xlu0 %1743
    %v1745 = vsel %vm583, %v1723, 0.0
    %1746 = vadd.xlane.f32.xlu0 %v1745
    %v1747 = vpop.xlane.xlu0 %1746
    %v1748 = vrcp.pop %v1726
    %v1749 = vrcp.pop %v1729
    %v1750 = vrcp.pop %v1732
    %v1751 = vrcp.pop %v1735
    %v1752 = vrcp.pop %v1738
    %v1753 = vrcp.pop %v1741
    %v1754 = vrcp.pop %v1744
    %v1755 = vrcp.pop %v1747
    %v1756 = vmul.f32 %v1709, %v1748
    %v1757 = vmul.f32 %v1711, %v1749
    %v1758 = vmul.f32 %v1713, %v1750
    %v1759 = vmul.f32 %v1715, %v1751
    %v1760 = vmul.f32 %v1717, %v1752
    %v1761 = vmul.f32 %v1719, %v1753
    %v1762 = vmul.f32 %v1721, %v1754
    %v1763 = vmul.f32 %v1723, %v1755
    %v1764 = vpack.c.bf16 %v1757, %v1756
    %v1765 = vpack.c.bf16 %v1759, %v1758
    %v1766 = vpack.c.bf16 %v1761, %v1760
    %v1767 = vpack.c.bf16 %v1763, %v1762
    %1772 = vrot.lane.b32.xlu0 %v1559, 64
    %v1773 = vpop.permute.xlu0 %1772
    %1774 = vrot.lane.b32.xlu0 %v1560, 64
    %v1775 = vpop.permute.xlu0 %1774
    %1776 = vrot.lane.b32.xlu0 %v1561, 64
    %v1777 = vpop.permute.xlu0 %1776
    %1778 = vrot.lane.b32.xlu0 %v1562, 64
    %v1779 = vpop.permute.xlu0 %1778
    %v1785 = vsel %vm583, %v1764, 0
    %v1788 = vsel %vm583, %v1765, 0
    %v1791 = vsel %vm583, %v1766, 0
    %v1794 = vsel %vm583, %v1767, 0
    %1796 = vmatprep.subr.bf16.mxu0 0
    %1797 = vmatpush1.bf16.msra.mxu0 %v1773
    %1798 = vmatprep.subr.bf16.mxu0 0
    %1799 = vmatpush1.bf16.msra.mxu0 %v1775
    %1800 = vmatprep.subr.bf16.mxu0 0
    %1801 = vmatpush1.bf16.msra.mxu0 %v1777
    %1802 = vmatprep.subr.bf16.mxu0 0
    %1803 = vmatpush1.bf16.msra.mxu0 %v1779
    %1804 = vmatprep.subr.bf16.mxu0 0
    %1805 = vmatpush1.bf16.msra.mxu0 0
    %1806 = vmatprep.subr.bf16.mxu0 0
    %1807 = vmatpush1.bf16.msra.mxu0 0
    %1808 = vmatprep.subr.bf16.mxu0 0
    %1809 = vmatpush1.bf16.msra.mxu0 0
    %1810 = vmatprep.subr.bf16.mxu0 0
    %1811 = vmatpush1.bf16.msra.mxu0 0
    %1812 = vmatprep.subr.bf16.mxu0 0
    %1813 = vmatpush1.bf16.msra.mxu0 0
    %1814 = vmatprep.subr.bf16.mxu0 0
    %1815 = vmatpush1.bf16.msra.mxu0 0
    %1816 = vmatprep.subr.bf16.mxu0 0
    %1817 = vmatpush1.bf16.msra.mxu0 0
    %1818 = vmatprep.subr.bf16.mxu0 0
    %1819 = vmatpush1.bf16.msra.mxu0 0
    %1820 = vmatprep.subr.bf16.mxu0 0
    %1821 = vmatpush1.bf16.msra.mxu0 0
    %1822 = vmatprep.subr.bf16.mxu0 0
    %1823 = vmatpush1.bf16.msra.mxu0 0
    %1824 = vmatprep.subr.bf16.mxu0 0
    %1825 = vmatpush1.bf16.msra.mxu0 0
    %1826 = vmatprep.subr.bf16.mxu0 0
    %1827 = vmatpush1.bf16.msra.mxu0 0
    %1828 = vmatprep.mubr.bf16.mxu0 0
    %1829 = vmatmul.mubr.bf16.gmra.mrb[0].mxu0 %v1785
    %v1830 = vpop.f32.mrb[0].mxu0
    %v1831 = vadd.f32 0.0, %v1830
    %v1832 = vpop.f32.mrb[0].mxu0
    %v1833 = vpop.f32.mrb[0].mxu0
    %v1834 = vadd.f32 0.0, %v1833
    %v1835 = vpop.f32.mrb[0].mxu0
    %1836 = vmatprep.mubr.bf16.mxu0 0
    %1837 = vmatmul.mubr.bf16.gmra.mrb[0].mxu0 %v1788
    %v1838 = vpop.f32.mrb[0].mxu0
    %v1839 = vadd.f32 0.0, %v1838
    %v1840 = vpop.f32.mrb[0].mxu0
    %v1841 = vpop.f32.mrb[0].mxu0
    %v1842 = vadd.f32 0.0, %v1841
    %v1843 = vpop.f32.mrb[0].mxu0
    %1844 = vmatprep.mubr.bf16.mxu0 0
    %1845 = vmatmul.mubr.bf16.gmra.mrb[0].mxu0 %v1791
    %v1846 = vpop.f32.mrb[0].mxu0
    %v1847 = vadd.f32 0.0, %v1846
    %v1848 = vpop.f32.mrb[0].mxu0
    %v1849 = vpop.f32.mrb[0].mxu0
    %v1850 = vadd.f32 0.0, %v1849
    %v1851 = vpop.f32.mrb[0].mxu0
    %1852 = vmatprep.mubr.bf16.mxu0 0
    %1853 = vmatmul.mubr.bf16.gmra.mrb[0].mxu0 %v1794
    %v1854 = vpop.f32.mrb[0].mxu0
    %v1855 = vadd.f32 0.0, %v1854
    %v1856 = vpop.f32.mrb[0].mxu0
    %v1857 = vpop.f32.mrb[0].mxu0
    %v1858 = vadd.f32 0.0, %v1857
    %v1859 = vpop.f32.mrb[0].mxu0
    %1860 = vdwg.mxu0
    %1869 = vrot.lane.b32.xlu0 %v1831, 64
    %v1870 = vpop.permute.xlu0 %1869
    %1871 = vrot.lane.b32.xlu0 %v1834, 64
    %v1872 = vpop.permute.xlu0 %1871
    %1873 = vrot.lane.b32.xlu0 %v1839, 64
    %v1874 = vpop.permute.xlu0 %1873
    %1875 = vrot.lane.b32.xlu0 %v1842, 64
    %v1876 = vpop.permute.xlu0 %1875
    %1877 = vrot.lane.b32.xlu0 %v1847, 64
    %v1878 = vpop.permute.xlu0 %1877
    %1879 = vrot.lane.b32.xlu0 %v1850, 64
    %v1880 = vpop.permute.xlu0 %1879
    %1881 = vrot.lane.b32.xlu0 %v1855, 64
    %v1882 = vpop.permute.xlu0 %1881
    %1883 = vrot.lane.b32.xlu0 %v1858, 64
    %v1884 = vpop.permute.xlu0 %1883
    %1893 = vst.msk [vmem:[#allocation3 + $0x40] sm:$0xff] %vm1518, %v1870
    %1894 = vst.msk [vmem:[#allocation3 + $0x48] sm:$0xff] %vm1518, %v1872
    %1895 = vst.msk [vmem:[#allocation3 + $0x50] sm:$0xff] %vm1518, %v1874
    %1896 = vst.msk [vmem:[#allocation3 + $0x58] sm:$0xff] %vm1518, %v1876
    %1897 = vst.msk [vmem:[#allocation3 + $0x60] sm:$0xff] %vm1518, %v1878
    %1898 = vst.msk [vmem:[#allocation3 + $0x68] sm:$0xff] %vm1518, %v1880
    %1899 = vst.msk [vmem:[#allocation3 + $0x70] sm:$0xff] %vm1518, %v1882
    %1900 = vst.msk [vmem:[#allocation3 + $0x78] sm:$0xff] %vm1518, %v1884
    %v1901 = vld [vmem:[#allocation3] sm:$0xff]
    %v1902 = vld [vmem:[#allocation3 + $0x8] sm:$0xff]
    %v1903 = vld [vmem:[#allocation3 + $0x10] sm:$0xff]
    %v1904 = vld [vmem:[#allocation3 + $0x18] sm:$0xff]
    %v1905 = vld [vmem:[#allocation3 + $0x20] sm:$0xff]
    %v1906 = vld [vmem:[#allocation3 + $0x28] sm:$0xff]
    %v1907 = vld [vmem:[#allocation3 + $0x30] sm:$0xff]
    %v1908 = vld [vmem:[#allocation3 + $0x38] sm:$0xff]
    %v1909 = vld [vmem:[#allocation3 + $0x40] sm:$0xff]
    %v1910 = vld [vmem:[#allocation3 + $0x48] sm:$0xff]
    %v1911 = vld [vmem:[#allocation3 + $0x50] sm:$0xff]
    %v1912 = vld [vmem:[#allocation3 + $0x58] sm:$0xff]
    %v1913 = vld [vmem:[#allocation3 + $0x60] sm:$0xff]
    %v1914 = vld [vmem:[#allocation3 + $0x68] sm:$0xff]
    %v1915 = vld [vmem:[#allocation3 + $0x70] sm:$0xff]
    %v1916 = vld [vmem:[#allocation3 + $0x78] sm:$0xff]
    %v1917 = vpack.c.bf16 %v1902, %v1901
    %v1918 = vpack.c.bf16 %v1904, %v1903
    %v1919 = vpack.c.bf16 %v1906, %v1905
    %v1920 = vpack.c.bf16 %v1908, %v1907
    %v1921 = vpack.c.bf16 %v1910, %v1909
    %v1922 = vpack.c.bf16 %v1912, %v1911
    %v1923 = vpack.c.bf16 %v1914, %v1913
    %v1924 = vpack.c.bf16 %v1916, %v1915
    %v1925 = vld [vmem:[#allocation9] sm:$0xf]
    %v1926 = vld [vmem:[#allocation9 + $0x4] sm:$0xf]
    %v1927 = vld [vmem:[#allocation9 + $0x8] sm:$0xf]
    %v1928 = vld [vmem:[#allocation9 + $0xc] sm:$0xf]
    %v1929 = vld [vmem:[#allocation9 + $0x10] sm:$0xf]
    %v1930 = vld [vmem:[#allocation9 + $0x14] sm:$0xf]
    %v1931 = vld [vmem:[#allocation9 + $0x18] sm:$0xf]
    %v1932 = vld [vmem:[#allocation9 + $0x1c] sm:$0xf]
    %v1933 = vld [vmem:[#allocation9 + $0x20] sm:$0xf]
    %v1934 = vld [vmem:[#allocation9 + $0x24] sm:$0xf]
    %v1935 = vld [vmem:[#allocation9 + $0x28] sm:$0xf]
    %v1936 = vld [vmem:[#allocation9 + $0x2c] sm:$0xf]
    %v1937 = vld [vmem:[#allocation9 + $0x30] sm:$0xf]
    %v1938 = vld [vmem:[#allocation9 + $0x34] sm:$0xf]
    %v1939 = vld [vmem:[#allocation9 + $0x38] sm:$0xf]
    %v1940 = vld [vmem:[#allocation9 + $0x3c] sm:$0xf]
    %v1941 = vld [vmem:[%s4] sm:$0x1]
    %v1943 = vlaneseq
    %v1944 = vshrl.u32 %v1943, 7
    %v1945 = vsub.s32 0, %v1944
    %v1946 = vrot.slane %v1941, %v1945
    %v1964 = vunpack.c.l.b16 %v1925
    %v1965 = vunpack.c.l.b16 %v1926
    %v1966 = vunpack.c.l.b16 %v1927
    %v1967 = vunpack.c.l.b16 %v1928
    %v1968 = vunpack.c.l.b16 %v1929
    %v1969 = vunpack.c.l.b16 %v1930
    %v1970 = vunpack.c.l.b16 %v1931
    %v1971 = vunpack.c.l.b16 %v1932
    %v1972 = vunpack.c.l.b16 %v1933
    %v1973 = vunpack.c.l.b16 %v1934
    %v1974 = vunpack.c.l.b16 %v1935
    %v1975 = vunpack.c.l.b16 %v1936
    %v1976 = vunpack.c.l.b16 %v1937
    %v1977 = vunpack.c.l.b16 %v1938
    %v1978 = vunpack.c.l.b16 %v1939
    %v1979 = vunpack.c.l.b16 %v1940
    %v1980 = vpack.c.b16 %v1965, %v1964
    %v1981 = vpack.c.b16 %v1967, %v1966
    %v1982 = vpack.c.b16 %v1969, %v1968
    %v1983 = vpack.c.b16 %v1971, %v1970
    %v1984 = vpack.c.b16 %v1973, %v1972
    %v1985 = vpack.c.b16 %v1975, %v1974
    %v1986 = vpack.c.b16 %v1977, %v1976
    %v1987 = vpack.c.b16 %v1979, %v1978
    %1996 = vmatprep.subr.bf16.mxu0 0
    %1997 = vmatpush1.bf16.msra.mxu0 %v1980
    %1998 = vmatprep.subr.bf16.mxu0 0
    %1999 = vmatpush1.bf16.msra.mxu0 %v1981
    %2000 = vmatprep.subr.bf16.mxu0 0
    %2001 = vmatpush1.bf16.msra.mxu0 %v1982
    %2002 = vmatprep.subr.bf16.mxu0 0
    %2003 = vmatpush1.bf16.msra.mxu0 %v1983
    %2004 = vmatprep.subr.bf16.mxu0 0
    %2005 = vmatpush1.bf16.msra.mxu0 %v1984
    %2006 = vmatprep.subr.bf16.mxu0 0
    %2007 = vmatpush1.bf16.msra.mxu0 %v1985
    %2008 = vmatprep.subr.bf16.mxu0 0
    %2009 = vmatpush1.bf16.msra.mxu0 %v1986
    %2010 = vmatprep.subr.bf16.mxu0 0
    %2011 = vmatpush1.bf16.msra.mxu0 %v1987
    %2012 = vmatprep.subr.bf16.mxu0 0
    %2013 = vmatpush1.bf16.msra.mxu0 0
    %2014 = vmatprep.subr.bf16.mxu0 0
    %2015 = vmatpush1.bf16.msra.mxu0 0
    %2016 = vmatprep.subr.bf16.mxu0 0
    %2017 = vmatpush1.bf16.msra.mxu0 0
    %2018 = vmatprep.subr.bf16.mxu0 0
    %2019 = vmatpush1.bf16.msra.mxu0 0
    %2020 = vmatprep.subr.bf16.mxu0 0
    %2021 = vmatpush1.bf16.msra.mxu0 0
    %2022 = vmatprep.subr.bf16.mxu0 0
    %2023 = vmatpush1.bf16.msra.mxu0 0
    %2024 = vmatprep.subr.bf16.mxu0 0
    %2025 = vmatpush1.bf16.msra.mxu0 0
    %2026 = vmatprep.subr.bf16.mxu0 0
    %2027 = vmatpush1.bf16.msra.mxu0 0
    %2028 = vmatprep.mubr.bf16.mxu0 0
    %2029 = vmatmul.mubr.bf16.gmra.mrb[0].mxu0 %v1917
    %v2030 = vpop.f32.mrb[0].mxu0
    %v2031 = vadd.f32 %v1946, %v2030
    %v2032 = vpop.f32.mrb[0].mxu0
    %v2033 = vpop.f32.mrb[0].mxu0
    %v2034 = vadd.f32 %v1946, %v2033
    %v2035 = vpop.f32.mrb[0].mxu0
    %2036 = vmatprep.mubr.bf16.mxu0 0
    %2037 = vmatmul.mubr.bf16.gmra.mrb[0].mxu0 %v1918
    %v2038 = vpop.f32.mrb[0].mxu0
    %v2039 = vadd.f32 %v1946, %v2038
    %v2040 = vpop.f32.mrb[0].mxu0
    %v2041 = vpop.f32.mrb[0].mxu0
    %v2042 = vadd.f32 %v1946, %v2041
    %v2043 = vpop.f32.mrb[0].mxu0
    %2044 = vmatprep.mubr.bf16.mxu0 0
    %2045 = vmatmul.mubr.bf16.gmra.mrb[0].mxu0 %v1919
    %v2046 = vpop.f32.mrb[0].mxu0
    %v2047 = vadd.f32 %v1946, %v2046
    %v2048 = vpop.f32.mrb[0].mxu0
    %v2049 = vpop.f32.mrb[0].mxu0
    %v2050 = vadd.f32 %v1946, %v2049
    %v2051 = vpop.f32.mrb[0].mxu0
    %2052 = vmatprep.mubr.bf16.mxu0 0
    %2053 = vmatmul.mubr.bf16.gmra.mrb[0].mxu0 %v1920
    %v2054 = vpop.f32.mrb[0].mxu0
    %v2055 = vadd.f32 %v1946, %v2054
    %v2056 = vpop.f32.mrb[0].mxu0
    %v2057 = vpop.f32.mrb[0].mxu0
    %v2058 = vadd.f32 %v1946, %v2057
    %v2059 = vpop.f32.mrb[0].mxu0
    %2060 = vmatprep.mubr.bf16.mxu0 0
    %2061 = vmatmul.mubr.bf16.gmra.mrb[0].mxu0 %v1921
    %v2062 = vpop.f32.mrb[0].mxu0
    %v2063 = vadd.f32 %v1946, %v2062
    %v2064 = vpop.f32.mrb[0].mxu0
    %v2065 = vpop.f32.mrb[0].mxu0
    %v2066 = vadd.f32 %v1946, %v2065
    %v2067 = vpop.f32.mrb[0].mxu0
    %2068 = vmatprep.mubr.bf16.mxu0 0
    %2069 = vmatmul.mubr.bf16.gmra.mrb[0].mxu0 %v1922
    %v2070 = vpop.f32.mrb[0].mxu0
    %v2071 = vadd.f32 %v1946, %v2070
    %v2072 = vpop.f32.mrb[0].mxu0
    %v2073 = vpop.f32.mrb[0].mxu0
    %v2074 = vadd.f32 %v1946, %v2073
    %v2075 = vpop.f32.mrb[0].mxu0
    %2076 = vmatprep.mubr.bf16.mxu0 0
    %2077 = vmatmul.mubr.bf16.gmra.mrb[0].mxu0 %v1923
    %v2078 = vpop.f32.mrb[0].mxu0
    %v2079 = vadd.f32 %v1946, %v2078
    %v2080 = vpop.f32.mrb[0].mxu0
    %v2081 = vpop.f32.mrb[0].mxu0
    %v2082 = vadd.f32 %v1946, %v2081
    %v2083 = vpop.f32.mrb[0].mxu0
    %2084 = vmatprep.mubr.bf16.mxu0 0
    %2085 = vmatmul.mubr.bf16.gmra.mrb[0].mxu0 %v1924
    %v2086 = vpop.f32.mrb[0].mxu0
    %v2087 = vadd.f32 %v1946, %v2086
    %v2088 = vpop.f32.mrb[0].mxu0
    %v2089 = vpop.f32.mrb[0].mxu0
    %v2090 = vadd.f32 %v1946, %v2089
    %v2091 = vpop.f32.mrb[0].mxu0
    %2092 = vdwg.mxu0
    %2093 = vst [vmem:[#allocation12] sm:$0xff] %v2031
    %2094 = vst [vmem:[#allocation12 + $0x8] sm:$0xff] %v2034
    %2095 = vst [vmem:[#allocation12 + $0x10] sm:$0xff] %v2039
    %2096 = vst [vmem:[#allocation12 + $0x18] sm:$0xff] %v2042
    %2097 = vst [vmem:[#allocation12 + $0x20] sm:$0xff] %v2047
    %2098 = vst [vmem:[#allocation12 + $0x28] sm:$0xff] %v2050
    %2099 = vst [vmem:[#allocation12 + $0x30] sm:$0xff] %v2055
    %2100 = vst [vmem:[#allocation12 + $0x38] sm:$0xff] %v2058
    %2101 = vst [vmem:[#allocation12 + $0x40] sm:$0xff] %v2063
    %2102 = vst [vmem:[#allocation12 + $0x48] sm:$0xff] %v2066
    %2103 = vst [vmem:[#allocation12 + $0x50] sm:$0xff] %v2071
    %2104 = vst [vmem:[#allocation12 + $0x58] sm:$0xff] %v2074
    %2105 = vst [vmem:[#allocation12 + $0x60] sm:$0xff] %v2079
    %2106 = vst [vmem:[#allocation12 + $0x68] sm:$0xff] %v2082
    %2107 = vst [vmem:[#allocation12 + $0x70] sm:$0xff] %v2087
    %2108 = vst [vmem:[#allocation12 + $0x78] sm:$0xff] %v2090
    // Predicated region
    $region42: #{tpu_custom_call.1} parent=1 // pred_check
      _
    $region43: #{tpu_custom_call.1} parent=1 // pred_check_branch
      %2110 = sbr.rel (0) target = $region45
    $region44: #{tpu_custom_call.1} parent=1 // pred_region
      %s2112 = ssub.s32 2048, 2048
      %2113 = vsyncadd [#allocation6], %s2112
      %s2114 = sshll.u32 [#allocation12], 4
      %s2115 = int_to_ptr.vmem [resolvable:$true] %s2114
      %2120 = dma.vmem_to_hbm [thread:$0]  %s2115, 2048, %s6, [#allocation6], 128, 128, 8
    $region45: #{tpu_custom_call.1} parent=1 // pred_fallthru
      _
    // Predicated region
    $region46: #{tpu_custom_call.1} parent=1 // pred_check
      _
    $region47: #{tpu_custom_call.1} parent=1 // pred_check_branch
      %2122 = sbr.rel (0) target = $region49
    $region48: #{tpu_custom_call.1} parent=1 // pred_region
      %2123 = dma.done [#allocation6], 2048
    $region49: #{tpu_custom_call.1} parent=1 // pred_fallthru
      _
    %2124 = vsyncpa [#allocation5], 1
    %2125 = vsyncpa [#allocation8], 1
    %2126 = vsyncpa [#allocation11], 1
    %2127 = vsyncpa [#allocation6], 1

</llo_original>
